<compile_context>
chip_gen: v6e
topology: v6e:2x2x1
jax: 0.10.0
libtpu: 0.0.40
codegen_flags: <defaults>
</compile_context>

<pallas_src>
import jax
import jax.numpy as jnp
from jax.experimental import pallas as pl
from jax.experimental.pallas import tpu as pltpu

EPS = 1e-8        # CoorsNorm clamp epsilon
LN_EPS = 1e-5     # torch.nn.LayerNorm default eps (only used by the reference)
SCALE = 1.0 / 50.0

_HIGH = jax.lax.Precision.HIGHEST


def _silu(x):
    # x * sigmoid(x) == 0.5 * x * (1 + tanh(x/2)) : one EUP transcendental.
    return 0.5 * x * (1.0 + jnp.tanh(0.5 * x))


def _dot_t(a, b, precision=None):
    """a @ b.T (contract dim-1 of both operands), f32 accumulate."""
    return jax.lax.dot_general(a, b, (((1,), (1,)), ((), ())),
                               precision=precision,
                               preferred_element_type=jnp.float32)


def _egnn_kernel(
    feats_ref, coors_ref,                 # full-row blocks: (N, D), (N, 3)
    feats_i_ref, coors_i_ref,             # i-tile blocks:   (TI, D), (TI, 3)
    w1i_ref, w1j_ref, w1d_ref, b1_ref,    # edge MLP layer 1 (split over concat, lane-padded)
    w2_ref, b2_ref,                       # edge MLP layer 2 (rows lane-padded)
    w3_ref, b3_ref,                       # coors MLP layer 1
    w4_ref, b4_ref,                       # coors MLP layer 2 ((4M -> 1) as a (1, 4M) row)
    w5f_ref, w5m_ref, b5_ref,             # node MLP layer 1 (split over concat)
    w6_ref, b6_ref,                       # node MLP layer 2
    lnb_ref,                              # CoorsNorm LayerNorm(1) bias, (1, 1)
    node_out_ref, coors_out_ref,          # (TI, D), (TI, 3)
):
    f32 = jnp.float32
    n = feats_ref.shape[0]
    ti = feats_i_ref.shape[0]
    hp = w1i_ref.shape[1]
    m = w2_ref.shape[1]

    fa = feats_ref[...].astype(f32)       # (N, D)
    ca = coors_ref[...].astype(f32)       # (N, 3)
    fi = feats_i_ref[...].astype(f32)     # (TI, D)
    ci = coors_i_ref[...].astype(f32)     # (TI, 3)

    # ---- Geometry on the MXU (hoisted): dist(i,j) = |cj|^2 - 2 ci.cj + |ci|^2 ----
    r2_j = jnp.sum(ca * ca, axis=1, keepdims=True)                     # (N, 1)
    r2_i = jnp.sum(ci * ci, axis=1, keepdims=True)                     # (TI, 1)
    lhs_aug = jnp.concatenate([ci, jnp.ones((ti, 1), f32)], axis=1)    # (TI, 4)
    rhs_aug = jnp.concatenate([-2.0 * ca, r2_j], axis=1)               # (N, 4)
    dist = jnp.maximum(r2_i + _dot_t(lhs_aug, rhs_aug, precision=_HIGH), 0.0)  # (TI, N)

    # ---- Edge MLP layer 1, decomposed over concat(feats_i, feats_j, rel_dist) ----
    #   edge_in @ W1 == feats_i @ W1[:D] + feats_j @ W1[D:2D] + rel_dist * W1[2D]
    hi = jnp.dot(fi, w1i_ref[...], preferred_element_type=f32, precision=_HIGH) + b1_ref[...]
    hj = jnp.dot(fa, w1j_ref[...], preferred_element_type=f32, precision=_HIGH)

    h3 = (hi[:, None, :] + hj[None, :, :]
          + dist[:, :, None] * w1d_ref[...][None, :, :])               # (TI, N, Hp)
    h = _silu(h3.reshape(ti * n, hp))                                  # (TI*N, Hp)

    # ---- Edge MLP layer 2 : one big MXU matmul per i-tile ----
    m_ij = _silu(jnp.dot(h, w2_ref[...], preferred_element_type=f32) + b2_ref[...])   # (TI*N, M)

    # ---- Coors MLP -> per-edge coordinate weight ----
    g = _silu(jnp.dot(m_ij, w3_ref[...], preferred_element_type=f32) + b3_ref[...])   # (TI*N, 4M)
    g3 = g.reshape(ti, n, g.shape[1])
    cw = jnp.sum(g3 * w4_ref[...][None, :, :], axis=-1) + b4_ref[...]                 # (TI, N)

    # ---- Fused CoorsNorm:  rel/clamp(||rel||,eps) == rel * rsqrt(max(dist,eps^2)) ----
    # dist == 0 (diagonal / coincident points) contributes exactly 0 in the reference.
    inv = jnp.where(dist > 0.0,
                    jax.lax.rsqrt(jnp.maximum(dist, EPS * EPS)),
                    0.0)                                                               # (TI, N)
    wp = cw * inv * (lnb_ref[...] * SCALE)                                             # (TI, N)

    # delta_i = sum_j wp_ij (c_i - c_j) = rowsum(wp) * c_i - wp @ C   (one MXU matmul)
    rowsum = jnp.sum(wp, axis=1, keepdims=True)                                        # (TI, 1)
    delta = rowsum * ci - jnp.dot(wp, ca, preferred_element_type=f32, precision=_HIGH)
    coors_out_ref[...] = (ci + delta).astype(coors_out_ref.dtype)

    # ---- Node MLP for this i-tile (m_i never touches HBM) ----
    m_i = jnp.sum(m_ij.reshape(ti, n, m), axis=1)                                      # (TI, M)
    nh = _silu(jnp.dot(fi, w5f_ref[...], preferred_element_type=f32, precision=_HIGH)
               + jnp.dot(m_i, w5m_ref[...], preferred_element_type=f32, precision=_HIGH)
               + b5_ref[...])                                                          # (TI, 2D)
    node = jnp.dot(nh, w6_ref[...], preferred_element_type=f32, precision=_HIGH) \
        + b6_ref[...] + fi
    node_out_ref[...] = node.astype(node_out_ref.dtype)


def _pick_tile_i(n, hp, budget_bytes=3 << 20):
    """Largest legal i-tile (multiple of 8 dividing n, or n itself) keeping the
    (tile*n, hp) f32 edge activation under a conservative VMEM budget (v7x-safe)."""
    def cost(t):
        return t * n * hp * 4
    if cost(n) <= budget_bytes:
        return n
    divs = [t for t in range(8, n, 8) if n % t == 0]
    fitting = [t for t in divs if cost(t) <= budget_bytes]
    if fitting:
        return max(fitting)
    return min(divs) if divs else n


@jax.jit
def egnn_forward(feats, coors, params):
    """feats: (B, N, D), coors: (B, N, 3). Returns (node_out, coors_out)."""
    B, N, D = feats.shape
    w1, b1 = params["w1"], params["b1"]
    w2, b2 = params["w2"], params["b2"]
    w3, b3 = params["w3"], params["b3"]
    w4, b4 = params["w4"], params["b4"]
    w5, b5 = params["w5"], params["b5"]
    w6, b6 = params["w6"], params["b6"]
    ln_b = params["ln_b"]          # params["ln_w"] is mathematically dead (var==0 path)

    H = w1.shape[1]                # 2*(2D+1), e.g. 130
    M = w2.shape[1]
    Hp = ((H + 127) // 128) * 128  # lane-pad the edge hidden dim to whole lane tiles
    pad = Hp - H

    # Zero-pad so padded hidden units are exactly 0 and contribute nothing (exact).
    w1i = jnp.pad(w1[:D], ((0, 0), (0, pad)))
    w1j = jnp.pad(w1[D:2 * D], ((0, 0), (0, pad)))
    w1d = jnp.pad(w1[2 * D:2 * D + 1], ((0, 0), (0, pad)))
    b1p = jnp.pad(b1, (0, pad)).reshape(1, Hp)
    w2p = jnp.pad(w2, ((0, pad), (0, 0)))

    weight_args = (
        w1i, w1j, w1d, b1p,
        w2p, b2.reshape(1, M),
        w3, b3.reshape(1, -1),
        w4.reshape(1, -1), b4.reshape(1, 1),
        w5[:D], w5[D:], b5.reshape(1, -1),
        w6, b6.reshape(1, D),
        ln_b.reshape(1, 1),
    )

    TI = _pick_tile_i(N, Hp)
    NI = N // TI

    # Advisory cost estimate for XLA's scheduler.
    flops = int(2 * B * N * N * (Hp * M + 4 * M * M)
                + 2 * B * NI * N * D * Hp                      # hj recompute per i-tile
                + 2 * B * N * (D * Hp + (D + M) * 2 * D + 2 * D * D + 2 * 3 * N))
    transcendentals = int(B * N * N * (Hp + 5 * M) + B * N * 2 * D)
    param_bytes = 4 * (3 * D * Hp + 2 * Hp + Hp * M + M + 4 * M * M + 8 * M + 1
                       + (D + M) * 2 * D + 2 * D + 2 * D * D + D + 1)
    bytes_accessed = int(4 * 2 * B * N * (D + 3) + param_bytes)

    node_out, coors_out = pl.pallas_call(
        _egnn_kernel,
        out_shape=(
            jax.ShapeDtypeStruct((B, N, D), feats.dtype),
            jax.ShapeDtypeStruct((B, N, 3), coors.dtype),
        ),
        grid_spec=pltpu.PrefetchScalarGridSpec(
            num_scalar_prefetch=0,
            grid=(B, NI),
            in_specs=[
                pl.BlockSpec((None, N, D), lambda b, it: (b, 0, 0)),    # feats (all rows)
                pl.BlockSpec((None, N, 3), lambda b, it: (b, 0, 0)),    # coors (all rows)
                pl.BlockSpec((None, TI, D), lambda b, it: (b, it, 0)),  # feats i-tile
                pl.BlockSpec((None, TI, 3), lambda b, it: (b, it, 0)),  # coors i-tile
            ] + [pl.BlockSpec(w.shape, lambda b, it: (0, 0)) for w in weight_args],
            out_specs=[
                pl.BlockSpec((None, TI, D), lambda b, it: (b, it, 0)),
                pl.BlockSpec((None, TI, 3), lambda b, it: (b, it, 0)),
            ],
        ),
        compiler_params=pltpu.CompilerParams(
            dimension_semantics=("parallel", "parallel"),
            vmem_limit_bytes=32 * 1024 * 1024,
        ),
        cost_estimate=pl.CostEstimate(
            flops=flops, transcendentals=transcendentals, bytes_accessed=bytes_accessed),
    )(feats, coors, feats, coors, *weight_args)
    return node_out, coors_out


def _egnn_reference(feats, coors, params):
    """Pure-JAX mirror of the PyTorch EGNN.forward (literal CoorsNorm / LayerNorm math)."""
    def silu(x):
        return x * jax.nn.sigmoid(x)

    w1, b1 = params["w1"], params["b1"]
    w2, b2 = params["w2"], params["b2"]
    w3, b3 = params["w3"], params["b3"]
    w4, b4 = params["w4"], params["b4"]
    w5, b5 = params["w5"], params["b5"]
    w6, b6 = params["w6"], params["b6"]
    ln_w, ln_b = params["ln_w"], params["ln_b"]

    B, N, D = feats.shape
    rel_coors = coors[:, :, None, :] - coors[:, None, :, :]            # (B,N,N,3)
    rel_dist = jnp.sum(rel_coors ** 2, axis=-1, keepdims=True)         # (B,N,N,1)
    feats_i = jnp.broadcast_to(feats[:, :, None, :], (B, N, N, D))
    feats_j = jnp.broadcast_to(feats[:, None, :, :], (B, N, N, D))
    edge_in = jnp.concatenate([feats_i, feats_j, rel_dist], axis=-1)   # (B,N,N,2D+1)

    m_ij = silu(silu(edge_in @ w1 + b1) @ w2 + b2)                     # (B,N,N,M)
    coor_w = (silu(m_ij @ w3 + b3) @ w4 + b4)[..., 0]                  # (B,N,N)

    # CoorsNorm, written out literally (LayerNorm over a size-1 feature dim).
    norm = jnp.sqrt(jnp.sum(rel_coors ** 2, axis=-1, keepdims=True))
    normed = rel_coors / jnp.maximum(norm, EPS)
    mean = norm
    var = jnp.zeros_like(norm)
    phase = (norm - mean) * jax.lax.rsqrt(var + LN_EPS) * ln_w + ln_b
    rel_n = phase * normed

    coors_out = jnp.einsum("bij,bijc->bic", coor_w * SCALE, rel_n) + coors
    m_i = jnp.sum(m_ij, axis=2)
    node_in = jnp.concatenate([feats, m_i], axis=-1)
    node_out = silu(node_in @ w5 + b5) @ w6 + b6 + feats
    return node_out, coors_out


if __name__ == "__main__":
    key = jax.random.PRNGKey(0)
    B, N, D, M = 2, 8, 32, 32           # batch=2, seq=8, dim=32, m_dim=32
    E = 2 * D + 1                       # edge_input_dim = 65
    H = 2 * E                           # edge hidden    = 130

    ks = jax.random.split(key, 16)

    def w_init(k, shape):
        return (jax.random.normal(k, shape, jnp.float32) / jnp.sqrt(shape[0])).astype(jnp.float32)

    def b_init(k, shape):
        return 0.1 * jax.random.normal(k, shape, jnp.float32)

    feats = jax.random.normal(ks[0], (B, N, D), jnp.float32)
    coors = jax.random.normal(ks[1], (B, N, 3), jnp.float32)

    params = dict(
        w1=w_init(ks[2], (E, H)),          b1=b_init(ks[3], (H,)),
        w2=w_init(ks[4], (H, M)),          b2=b_init(ks[5], (M,)),
        w3=w_init(ks[6], (M, 4 * M)),      b3=b_init(ks[7], (4 * M,)),
        w4=w_init(ks[8], (4 * M, 1)),      b4=b_init(ks[9], (1,)),
        w5=w_init(ks[10], (D + M, 2 * D)), b5=b_init(ks[11], (2 * D,)),
        w6=w_init(ks[12], (2 * D, D)),     b6=b_init(ks[13], (D,)),
        # CoorsNorm's LayerNorm(1): weight is mathematically dead (var==0 path),
        # phase reduces to exactly the bias -> use a non-trivial bias for the test.
        ln_w=jnp.ones((1,), jnp.float32),
        ln_b=0.5 + 0.1 * jax.random.normal(ks[14], (1,), jnp.float32),
    )

    node_out, coors_out = egnn_forward(feats, coors, params)
    node_out = jax.block_until_ready(node_out)
    coors_out = jax.block_until_ready(coors_out)

    node_want, coors_want = _egnn_reference(feats, coors, params)

    assert node_out.shape == (B, N, D) and node_out.dtype == feats.dtype
    assert coors_out.shape == (B, N, 3) and coors_out.dtype == coors.dtype
    # Tolerance covers TPU MXU default-precision (bf16-pass) f32 matmuls in the hot
    # edge path (geometry / layer-1 / node matmuls run at precision=HIGHEST).
    assert jnp.allclose(node_out, node_want, atol=5e-2, rtol=5e-2), "node_out mismatch"
    assert jnp.allclose(coors_out, coors_want, atol=5e-2, rtol=5e-2), "coors_out mismatch"

    print("KERNEL_OK")
</pallas_src>

<mosaic_0001>
module attributes {stable_mosaic.version = 11 : i64} {
  func.func @_egnn_kernel(%arg0: i32, %arg1: i32, %arg2: memref<1x8x32xf32, #tpu.memory_space<vmem>>, %arg3: memref<1x8x3xf32, #tpu.memory_space<vmem>>, %arg4: memref<1x8x32xf32, #tpu.memory_space<vmem>>, %arg5: memref<1x8x3xf32, #tpu.memory_space<vmem>>, %arg6: memref<32x256xf32, #tpu.memory_space<vmem>>, %arg7: memref<32x256xf32, #tpu.memory_space<vmem>>, %arg8: memref<1x256xf32, #tpu.memory_space<vmem>>, %arg9: memref<1x256xf32, #tpu.memory_space<vmem>>, %arg10: memref<256x32xf32, #tpu.memory_space<vmem>>, %arg11: memref<1x32xf32, #tpu.memory_space<vmem>>, %arg12: memref<32x128xf32, #tpu.memory_space<vmem>>, %arg13: memref<1x128xf32, #tpu.memory_space<vmem>>, %arg14: memref<1x128xf32, #tpu.memory_space<vmem>>, %arg15: memref<1x1xf32, #tpu.memory_space<vmem>>, %arg16: memref<32x64xf32, #tpu.memory_space<vmem>>, %arg17: memref<32x64xf32, #tpu.memory_space<vmem>>, %arg18: memref<1x64xf32, #tpu.memory_space<vmem>>, %arg19: memref<64x32xf32, #tpu.memory_space<vmem>>, %arg20: memref<1x32xf32, #tpu.memory_space<vmem>>, %arg21: memref<1x1xf32, #tpu.memory_space<vmem>>, %arg22: memref<1x8x32xf32, #tpu.memory_space<vmem>>, %arg23: memref<1x8x3xf32, #tpu.memory_space<vmem>>) attributes {dimension_semantics = [#tpu.dimension_semantics<parallel>, #tpu.dimension_semantics<parallel>], iteration_bounds = array<i64: 2, 1>, scalar_prefetch = 0 : i64, scratch_operands = 0 : i64, tpu.core_type = #tpu.core_type<tc>, window_params = [{transform_indices = @transform_0, window_bounds = array<i64: 1, 8, 32>}, {transform_indices = @transform_1, window_bounds = array<i64: 1, 8, 3>}, {transform_indices = @transform_2, window_bounds = array<i64: 1, 8, 32>}, {transform_indices = @transform_3, window_bounds = array<i64: 1, 8, 3>}, {pipeline_mode = #tpu.pipeline_mode<synchronous>, transform_indices = @transform_4, window_bounds = array<i64: 32, 256>}, {pipeline_mode = #tpu.pipeline_mode<synchronous>, transform_indices = @transform_5, window_bounds = array<i64: 32, 256>}, {pipeline_mode = #tpu.pipeline_mode<synchronous>, transform_indices = @transform_6, window_bounds = array<i64: 1, 256>}, {pipeline_mode = #tpu.pipeline_mode<synchronous>, transform_indices = @transform_7, window_bounds = array<i64: 1, 256>}, {pipeline_mode = #tpu.pipeline_mode<synchronous>, transform_indices = @transform_8, window_bounds = array<i64: 256, 32>}, {pipeline_mode = #tpu.pipeline_mode<synchronous>, transform_indices = @transform_9, window_bounds = array<i64: 1, 32>}, {pipeline_mode = #tpu.pipeline_mode<synchronous>, transform_indices = @transform_10, window_bounds = array<i64: 32, 128>}, {pipeline_mode = #tpu.pipeline_mode<synchronous>, transform_indices = @transform_11, window_bounds = array<i64: 1, 128>}, {pipeline_mode = #tpu.pipeline_mode<synchronous>, transform_indices = @transform_12, window_bounds = array<i64: 1, 128>}, {pipeline_mode = #tpu.pipeline_mode<synchronous>, transform_indices = @transform_13, window_bounds = array<i64: 1, 1>}, {pipeline_mode = #tpu.pipeline_mode<synchronous>, transform_indices = @transform_14, window_bounds = array<i64: 32, 64>}, {pipeline_mode = #tpu.pipeline_mode<synchronous>, transform_indices = @transform_15, window_bounds = array<i64: 32, 64>}, {pipeline_mode = #tpu.pipeline_mode<synchronous>, transform_indices = @transform_16, window_bounds = array<i64: 1, 64>}, {pipeline_mode = #tpu.pipeline_mode<synchronous>, transform_indices = @transform_17, window_bounds = array<i64: 64, 32>}, {pipeline_mode = #tpu.pipeline_mode<synchronous>, transform_indices = @transform_18, window_bounds = array<i64: 1, 32>}, {pipeline_mode = #tpu.pipeline_mode<synchronous>, transform_indices = @transform_19, window_bounds = array<i64: 1, 1>}, {transform_indices = @transform_20, window_bounds = array<i64: 1, 8, 32>}, {transform_indices = @transform_21, window_bounds = array<i64: 1, 8, 3>}]} {
    %c0 = arith.constant 0 : index
    %c0_0 = arith.constant 0 : index
    %c0_1 = arith.constant 0 : index
    %0 = vector.load %arg2[%c0, %c0_0, %c0_1] : memref<1x8x32xf32, #tpu.memory_space<vmem>>, vector<1x8x32xf32>
    %1 = vector.shape_cast %0 : vector<1x8x32xf32> to vector<8x32xf32>
    %c0_2 = arith.constant 0 : index
    %c0_3 = arith.constant 0 : index
    %c0_4 = arith.constant 0 : index
    %2 = vector.load %arg3[%c0_2, %c0_3, %c0_4] : memref<1x8x3xf32, #tpu.memory_space<vmem>>, vector<1x8x3xf32>
    %3 = vector.shape_cast %2 : vector<1x8x3xf32> to vector<8x3xf32>
    %c0_5 = arith.constant 0 : index
    %c0_6 = arith.constant 0 : index
    %c0_7 = arith.constant 0 : index
    %4 = vector.load %arg4[%c0_5, %c0_6, %c0_7] : memref<1x8x32xf32, #tpu.memory_space<vmem>>, vector<1x8x32xf32>
    %5 = vector.shape_cast %4 : vector<1x8x32xf32> to vector<8x32xf32>
    %c0_8 = arith.constant 0 : index
    %c0_9 = arith.constant 0 : index
    %c0_10 = arith.constant 0 : index
    %6 = vector.load %arg5[%c0_8, %c0_9, %c0_10] : memref<1x8x3xf32, #tpu.memory_space<vmem>>, vector<1x8x3xf32>
    %7 = vector.shape_cast %6 : vector<1x8x3xf32> to vector<8x3xf32>
    %8 = arith.mulf %3, %3 : vector<8x3xf32>
    %cst = arith.constant dense<0.000000e+00> : vector<8xf32>
    %9 = vector.multi_reduction <add>, %8, %cst [1] : vector<8x3xf32> to vector<8xf32>
    %10 = vector.shape_cast %9 : vector<8xf32> to vector<8x1xf32>
    %11 = arith.mulf %7, %7 : vector<8x3xf32>
    %cst_11 = arith.constant dense<0.000000e+00> : vector<8xf32>
    %12 = vector.multi_reduction <add>, %11, %cst_11 [1] : vector<8x3xf32> to vector<8xf32>
    %13 = vector.shape_cast %12 : vector<8xf32> to vector<8x1xf32>
    %cst_12 = arith.constant 1.000000e+00 : f32
    %14 = vector.broadcast %cst_12 : f32 to vector<8x1xf32>
    %15 = tpu.concatenate %7, %14 in 1 : vector<8x3xf32>, vector<8x1xf32> -> vector<8x4xf32>
    %cst_13 = arith.constant -2.000000e+00 : f32
    %16 = vector.broadcast %cst_13 : f32 to vector<8x3xf32>
    %17 = arith.mulf %16, %3 : vector<8x3xf32>
    %18 = tpu.concatenate %17, %10 in 1 : vector<8x3xf32>, vector<8x1xf32> -> vector<8x4xf32>
    %cst_14 = arith.constant dense<0.000000e+00> : vector<8x8xf32>
    %19 = tpu.matmul %15, %18, %cst_14 {dimension_numbers = #tpu.dot_dimension_numbers<[1], [1], [0], [0], [0, 0, 1, 0], [], []>, precision = #tpu.contract_precision<fp32>} : vector<8x4xf32>, vector<8x4xf32>, vector<8x8xf32> -> vector<8x8xf32>
    %20 = vector.broadcast %13 : vector<8x1xf32> to vector<8x8xf32>
    %21 = arith.addf %20, %19 : vector<8x8xf32>
    %cst_15 = arith.constant 0.000000e+00 : f32
    %22 = vector.broadcast %cst_15 : f32 to vector<8x8xf32>
    %23 = arith.maximumf %21, %22 : vector<8x8xf32>
    %c0_16 = arith.constant 0 : index
    %c0_17 = arith.constant 0 : index
    %24 = vector.load %arg6[%c0_16, %c0_17] : memref<32x256xf32, #tpu.memory_space<vmem>>, vector<32x256xf32>
    %cst_18 = arith.constant dense<0.000000e+00> : vector<8x256xf32>
    %25 = tpu.matmul %5, %24, %cst_18 {dimension_numbers = #tpu.dot_dimension_numbers<[1], [0], [0], [1], [0, 0, 1, 1], [], []>, precision = #tpu.contract_precision<fp32>} : vector<8x32xf32>, vector<32x256xf32>, vector<8x256xf32> -> vector<8x256xf32>
    %c0_19 = arith.constant 0 : index
    %c0_20 = arith.constant 0 : index
    %26 = vector.load %arg9[%c0_19, %c0_20] : memref<1x256xf32, #tpu.memory_space<vmem>>, vector<1x256xf32>
    %27 = vector.broadcast %26 : vector<1x256xf32> to vector<8x256xf32>
    %28 = arith.addf %25, %27 : vector<8x256xf32>
    %c0_21 = arith.constant 0 : index
    %c0_22 = arith.constant 0 : index
    %29 = vector.load %arg7[%c0_21, %c0_22] : memref<32x256xf32, #tpu.memory_space<vmem>>, vector<32x256xf32>
    %cst_23 = arith.constant dense<0.000000e+00> : vector<8x256xf32>
    %30 = tpu.matmul %1, %29, %cst_23 {dimension_numbers = #tpu.dot_dimension_numbers<[1], [0], [0], [1], [0, 0, 1, 1], [], []>, precision = #tpu.contract_precision<fp32>} : vector<8x32xf32>, vector<32x256xf32>, vector<8x256xf32> -> vector<8x256xf32>
    %31 = vector.shape_cast %28 : vector<8x256xf32> to vector<8x1x256xf32>
    %32 = vector.shape_cast %30 : vector<8x256xf32> to vector<1x8x256xf32>
    %33 = vector.broadcast %31 : vector<8x1x256xf32> to vector<8x8x256xf32>
    %34 = vector.broadcast %32 : vector<1x8x256xf32> to vector<8x8x256xf32>
    %35 = arith.addf %33, %34 : vector<8x8x256xf32>
    %36 = vector.shape_cast %23 : vector<8x8xf32> to vector<8x8x1xf32>
    %c0_24 = arith.constant 0 : index
    %c0_25 = arith.constant 0 : index
    %37 = vector.load %arg8[%c0_24, %c0_25] : memref<1x256xf32, #tpu.memory_space<vmem>>, vector<1x256xf32>
    %38 = vector.shape_cast %37 : vector<1x256xf32> to vector<1x1x256xf32>
    %39 = vector.broadcast %36 : vector<8x8x1xf32> to vector<8x8x256xf32>
    %40 = vector.broadcast %38 : vector<1x1x256xf32> to vector<8x8x256xf32>
    %41 = arith.mulf %39, %40 : vector<8x8x256xf32>
    %42 = arith.addf %35, %41 : vector<8x8x256xf32>
    %43 = vector.shape_cast %42 : vector<8x8x256xf32> to vector<64x256xf32>
    %cst_26 = arith.constant 5.000000e-01 : f32
    %44 = vector.broadcast %cst_26 : f32 to vector<64x256xf32>
    %45 = arith.mulf %44, %43 : vector<64x256xf32>
    %cst_27 = arith.constant 5.000000e-01 : f32
    %46 = vector.broadcast %cst_27 : f32 to vector<64x256xf32>
    %47 = arith.mulf %46, %43 : vector<64x256xf32>
    %48 = math.tanh %47 : vector<64x256xf32>
    %cst_28 = arith.constant 1.000000e+00 : f32
    %49 = vector.broadcast %cst_28 : f32 to vector<64x256xf32>
    %50 = arith.addf %49, %48 : vector<64x256xf32>
    %51 = arith.mulf %45, %50 : vector<64x256xf32>
    %c0_29 = arith.constant 0 : index
    %c0_30 = arith.constant 0 : index
    %52 = vector.load %arg10[%c0_29, %c0_30] : memref<256x32xf32, #tpu.memory_space<vmem>>, vector<256x32xf32>
    %cst_31 = arith.constant dense<0.000000e+00> : vector<64x32xf32>
    %53 = tpu.matmul %51, %52, %cst_31 {dimension_numbers = #tpu.dot_dimension_numbers<[1], [0], [0], [1], [0, 0, 1, 1], [], []>} : vector<64x256xf32>, vector<256x32xf32>, vector<64x32xf32> -> vector<64x32xf32>
    %c0_32 = arith.constant 0 : index
    %c0_33 = arith.constant 0 : index
    %54 = vector.load %arg11[%c0_32, %c0_33] : memref<1x32xf32, #tpu.memory_space<vmem>>, vector<1x32xf32>
    %55 = vector.broadcast %54 : vector<1x32xf32> to vector<64x32xf32>
    %56 = arith.addf %53, %55 : vector<64x32xf32>
    %cst_34 = arith.constant 5.000000e-01 : f32
    %57 = vector.broadcast %cst_34 : f32 to vector<64x32xf32>
    %58 = arith.mulf %57, %56 : vector<64x32xf32>
    %cst_35 = arith.constant 5.000000e-01 : f32
    %59 = vector.broadcast %cst_35 : f32 to vector<64x32xf32>
    %60 = arith.mulf %59, %56 : vector<64x32xf32>
    %61 = math.tanh %60 : vector<64x32xf32>
    %cst_36 = arith.constant 1.000000e+00 : f32
    %62 = vector.broadcast %cst_36 : f32 to vector<64x32xf32>
    %63 = arith.addf %62, %61 : vector<64x32xf32>
    %64 = arith.mulf %58, %63 : vector<64x32xf32>
    %c0_37 = arith.constant 0 : index
    %c0_38 = arith.constant 0 : index
    %65 = vector.load %arg12[%c0_37, %c0_38] : memref<32x128xf32, #tpu.memory_space<vmem>>, vector<32x128xf32>
    %cst_39 = arith.constant dense<0.000000e+00> : vector<64x128xf32>
    %66 = tpu.matmul %64, %65, %cst_39 {dimension_numbers = #tpu.dot_dimension_numbers<[1], [0], [0], [1], [0, 0, 1, 1], [], []>} : vector<64x32xf32>, vector<32x128xf32>, vector<64x128xf32> -> vector<64x128xf32>
    %c0_40 = arith.constant 0 : index
    %c0_41 = arith.constant 0 : index
    %67 = vector.load %arg13[%c0_40, %c0_41] : memref<1x128xf32, #tpu.memory_space<vmem>>, vector<1x128xf32>
    %68 = vector.broadcast %67 : vector<1x128xf32> to vector<64x128xf32>
    %69 = arith.addf %66, %68 : vector<64x128xf32>
    %cst_42 = arith.constant 5.000000e-01 : f32
    %70 = vector.broadcast %cst_42 : f32 to vector<64x128xf32>
    %71 = arith.mulf %70, %69 : vector<64x128xf32>
    %cst_43 = arith.constant 5.000000e-01 : f32
    %72 = vector.broadcast %cst_43 : f32 to vector<64x128xf32>
    %73 = arith.mulf %72, %69 : vector<64x128xf32>
    %74 = math.tanh %73 : vector<64x128xf32>
    %cst_44 = arith.constant 1.000000e+00 : f32
    %75 = vector.broadcast %cst_44 : f32 to vector<64x128xf32>
    %76 = arith.addf %75, %74 : vector<64x128xf32>
    %77 = arith.mulf %71, %76 : vector<64x128xf32>
    %78 = vector.shape_cast %77 : vector<64x128xf32> to vector<8x8x128xf32>
    %c0_45 = arith.constant 0 : index
    %c0_46 = arith.constant 0 : index
    %79 = vector.load %arg14[%c0_45, %c0_46] : memref<1x128xf32, #tpu.memory_space<vmem>>, vector<1x128xf32>
    %80 = vector.shape_cast %79 : vector<1x128xf32> to vector<1x1x128xf32>
    %81 = vector.broadcast %80 : vector<1x1x128xf32> to vector<8x8x128xf32>
    %82 = arith.mulf %78, %81 : vector<8x8x128xf32>
    %cst_47 = arith.constant dense<0.000000e+00> : vector<8x8xf32>
    %83 = vector.multi_reduction <add>, %82, %cst_47 [2] : vector<8x8x128xf32> to vector<8x8xf32>
    %c0_48 = arith.constant 0 : index
    %c0_49 = arith.constant 0 : index
    %84 = vector.load %arg15[%c0_48, %c0_49] : memref<1x1xf32, #tpu.memory_space<vmem>>, vector<1x1xf32>
    %85 = vector.broadcast %84 : vector<1x1xf32> to vector<8x8xf32>
    %86 = arith.addf %83, %85 : vector<8x8xf32>
    %cst_50 = arith.constant 0.000000e+00 : f32
    %87 = vector.broadcast %cst_50 : f32 to vector<8x8xf32>
    %88 = arith.cmpf ogt, %23, %87 : vector<8x8xf32>
    %cst_51 = arith.constant 1.000000e-16 : f32
    %89 = vector.broadcast %cst_51 : f32 to vector<8x8xf32>
    %90 = arith.maximumf %23, %89 : vector<8x8xf32>
    %91 = math.rsqrt %90 : vector<8x8xf32>
    %cst_52 = arith.constant 0.000000e+00 : f32
    %92 = vector.broadcast %cst_52 : f32 to vector<8x8xf32>
    %93 = arith.select %88, %91, %92 : vector<8x8xi1>, vector<8x8xf32>
    %94 = arith.mulf %86, %93 : vector<8x8xf32>
    %c0_53 = arith.constant 0 : index
    %c0_54 = arith.constant 0 : index
    %95 = vector.load %arg21[%c0_53, %c0_54] : memref<1x1xf32, #tpu.memory_space<vmem>>, vector<1x1xf32>
    %cst_55 = arith.constant 2.000000e-02 : f32
    %96 = vector.broadcast %cst_55 : f32 to vector<1x1xf32>
    %97 = arith.mulf %95, %96 : vector<1x1xf32>
    %98 = vector.broadcast %97 : vector<1x1xf32> to vector<8x8xf32>
    %99 = arith.mulf %94, %98 : vector<8x8xf32>
    %cst_56 = arith.constant dense<0.000000e+00> : vector<8xf32>
    %100 = vector.multi_reduction <add>, %99, %cst_56 [1] : vector<8x8xf32> to vector<8xf32>
    %101 = vector.shape_cast %100 : vector<8xf32> to vector<8x1xf32>
    %102 = vector.broadcast %101 : vector<8x1xf32> to vector<8x3xf32>
    %103 = arith.mulf %102, %7 : vector<8x3xf32>
    %cst_57 = arith.constant dense<0.000000e+00> : vector<8x3xf32>
    %104 = tpu.matmul %99, %3, %cst_57 {dimension_numbers = #tpu.dot_dimension_numbers<[1], [0], [0], [1], [0, 0, 1, 1], [], []>, precision = #tpu.contract_precision<fp32>} : vector<8x8xf32>, vector<8x3xf32>, vector<8x3xf32> -> vector<8x3xf32>
    %105 = arith.subf %103, %104 : vector<8x3xf32>
    %106 = arith.addf %7, %105 : vector<8x3xf32>
    %c0_58 = arith.constant 0 : index
    %c0_59 = arith.constant 0 : index
    %c0_60 = arith.constant 0 : index
    %107 = vector.load %arg23[%c0_58, %c0_59, %c0_60] : memref<1x8x3xf32, #tpu.memory_space<vmem>>, vector<1x8x3xf32>
    %108 = vector.shape_cast %107 : vector<1x8x3xf32> to vector<8x3xf32>
    %109 = vector.shape_cast %106 : vector<8x3xf32> to vector<1x8x3xf32>
    tpu.vector_store %arg23[%c0_58, %c0_59, %c0_60], %109 {strides = array<i32>} : memref<1x8x3xf32, #tpu.memory_space<vmem>>, vector<1x8x3xf32>,
    %110 = vector.shape_cast %64 : vector<64x32xf32> to vector<8x8x32xf32>
    %cst_61 = arith.constant dense<0.000000e+00> : vector<8x32xf32>
    %111 = vector.multi_reduction <add>, %110, %cst_61 [1] : vector<8x8x32xf32> to vector<8x32xf32>
    %c0_62 = arith.constant 0 : index
    %c0_63 = arith.constant 0 : index
    %112 = vector.load %arg16[%c0_62, %c0_63] : memref<32x64xf32, #tpu.memory_space<vmem>>, vector<32x64xf32>
    %cst_64 = arith.constant dense<0.000000e+00> : vector<8x64xf32>
    %113 = tpu.matmul %5, %112, %cst_64 {dimension_numbers = #tpu.dot_dimension_numbers<[1], [0], [0], [1], [0, 0, 1, 1], [], []>, precision = #tpu.contract_precision<fp32>} : vector<8x32xf32>, vector<32x64xf32>, vector<8x64xf32> -> vector<8x64xf32>
    %c0_65 = arith.constant 0 : index
    %c0_66 = arith.constant 0 : index
    %114 = vector.load %arg17[%c0_65, %c0_66] : memref<32x64xf32, #tpu.memory_space<vmem>>, vector<32x64xf32>
    %cst_67 = arith.constant dense<0.000000e+00> : vector<8x64xf32>
    %115 = tpu.matmul %111, %114, %cst_67 {dimension_numbers = #tpu.dot_dimension_numbers<[1], [0], [0], [1], [0, 0, 1, 1], [], []>, precision = #tpu.contract_precision<fp32>} : vector<8x32xf32>, vector<32x64xf32>, vector<8x64xf32> -> vector<8x64xf32>
    %116 = arith.addf %113, %115 : vector<8x64xf32>
    %c0_68 = arith.constant 0 : index
    %c0_69 = arith.constant 0 : index
    %117 = vector.load %arg18[%c0_68, %c0_69] : memref<1x64xf32, #tpu.memory_space<vmem>>, vector<1x64xf32>
    %118 = vector.broadcast %117 : vector<1x64xf32> to vector<8x64xf32>
    %119 = arith.addf %116, %118 : vector<8x64xf32>
    %cst_70 = arith.constant 5.000000e-01 : f32
    %120 = vector.broadcast %cst_70 : f32 to vector<8x64xf32>
    %121 = arith.mulf %120, %119 : vector<8x64xf32>
    %cst_71 = arith.constant 5.000000e-01 : f32
    %122 = vector.broadcast %cst_71 : f32 to vector<8x64xf32>
    %123 = arith.mulf %122, %119 : vector<8x64xf32>
    %124 = math.tanh %123 : vector<8x64xf32>
    %cst_72 = arith.constant 1.000000e+00 : f32
    %125 = vector.broadcast %cst_72 : f32 to vector<8x64xf32>
    %126 = arith.addf %125, %124 : vector<8x64xf32>
    %127 = arith.mulf %121, %126 : vector<8x64xf32>
    %c0_73 = arith.constant 0 : index
    %c0_74 = arith.constant 0 : index
    %128 = vector.load %arg19[%c0_73, %c0_74] : memref<64x32xf32, #tpu.memory_space<vmem>>, vector<64x32xf32>
    %cst_75 = arith.constant dense<0.000000e+00> : vector<8x32xf32>
    %129 = tpu.matmul %127, %128, %cst_75 {dimension_numbers = #tpu.dot_dimension_numbers<[1], [0], [0], [1], [0, 0, 1, 1], [], []>, precision = #tpu.contract_precision<fp32>} : vector<8x64xf32>, vector<64x32xf32>, vector<8x32xf32> -> vector<8x32xf32>
    %c0_76 = arith.constant 0 : index
    %c0_77 = arith.constant 0 : index
    %130 = vector.load %arg20[%c0_76, %c0_77] : memref<1x32xf32, #tpu.memory_space<vmem>>, vector<1x32xf32>
    %131 = vector.broadcast %130 : vector<1x32xf32> to vector<8x32xf32>
    %132 = arith.addf %129, %131 : vector<8x32xf32>
    %133 = arith.addf %132, %5 : vector<8x32xf32>
    %c0_78 = arith.constant 0 : index
    %c0_79 = arith.constant 0 : index
    %c0_80 = arith.constant 0 : index
    %134 = vector.load %arg22[%c0_78, %c0_79, %c0_80] : memref<1x8x32xf32, #tpu.memory_space<vmem>>, vector<1x8x32xf32>
    %135 = vector.shape_cast %134 : vector<1x8x32xf32> to vector<8x32xf32>
    %136 = vector.shape_cast %133 : vector<8x32xf32> to vector<1x8x32xf32>
    tpu.vector_store %arg22[%c0_78, %c0_79, %c0_80], %136 {strides = array<i32>} : memref<1x8x32xf32, #tpu.memory_space<vmem>>, vector<1x8x32xf32>,
    return
  }
  func.func @transform_0(%arg0: i32, %arg1: i32) -> (i32, i32, i32) {
    %c0_i32 = arith.constant 0 : i32
    %c0_i32_0 = arith.constant 0 : i32
    %c0_i32_1 = arith.constant 0 : i32
    return %arg0, %c0_i32, %c0_i32_0 : i32, i32, i32
  }
  func.func @transform_1(%arg0: i32, %arg1: i32) -> (i32, i32, i32) {
    %c0_i32 = arith.constant 0 : i32
    %c0_i32_0 = arith.constant 0 : i32
    %c0_i32_1 = arith.constant 0 : i32
    return %arg0, %c0_i32, %c0_i32_0 : i32, i32, i32
  }
  func.func @transform_2(%arg0: i32, %arg1: i32) -> (i32, i32, i32) {
    %c0_i32 = arith.constant 0 : i32
    %c0_i32_0 = arith.constant 0 : i32
    return %arg0, %arg1, %c0_i32 : i32, i32, i32
  }
  func.func @transform_3(%arg0: i32, %arg1: i32) -> (i32, i32, i32) {
    %c0_i32 = arith.constant 0 : i32
    %c0_i32_0 = arith.constant 0 : i32
    return %arg0, %arg1, %c0_i32 : i32, i32, i32
  }
  func.func @transform_4(%arg0: i32, %arg1: i32) -> (i32, i32) {
    %c0_i32 = arith.constant 0 : i32
    %c0_i32_0 = arith.constant 0 : i32
    %c0_i32_1 = arith.constant 0 : i32
    return %c0_i32, %c0_i32_0 : i32, i32
  }
  func.func @transform_5(%arg0: i32, %arg1: i32) -> (i32, i32) {
    %c0_i32 = arith.constant 0 : i32
    %c0_i32_0 = arith.constant 0 : i32
    %c0_i32_1 = arith.constant 0 : i32
    return %c0_i32, %c0_i32_0 : i32, i32
  }
  func.func @transform_6(%arg0: i32, %arg1: i32) -> (i32, i32) {
    %c0_i32 = arith.constant 0 : i32
    %c0_i32_0 = arith.constant 0 : i32
    %c0_i32_1 = arith.constant 0 : i32
    return %c0_i32, %c0_i32_0 : i32, i32
  }
  func.func @transform_7(%arg0: i32, %arg1: i32) -> (i32, i32) {
    %c0_i32 = arith.constant 0 : i32
    %c0_i32_0 = arith.constant 0 : i32
    %c0_i32_1 = arith.constant 0 : i32
    return %c0_i32, %c0_i32_0 : i32, i32
  }
  func.func @transform_8(%arg0: i32, %arg1: i32) -> (i32, i32) {
    %c0_i32 = arith.constant 0 : i32
    %c0_i32_0 = arith.constant 0 : i32
    %c0_i32_1 = arith.constant 0 : i32
    return %c0_i32, %c0_i32_0 : i32, i32
  }
  func.func @transform_9(%arg0: i32, %arg1: i32) -> (i32, i32) {
    %c0_i32 = arith.constant 0 : i32
    %c0_i32_0 = arith.constant 0 : i32
    %c0_i32_1 = arith.constant 0 : i32
    return %c0_i32, %c0_i32_0 : i32, i32
  }
  func.func @transform_10(%arg0: i32, %arg1: i32) -> (i32, i32) {
    %c0_i32 = arith.constant 0 : i32
    %c0_i32_0 = arith.constant 0 : i32
    %c0_i32_1 = arith.constant 0 : i32
    return %c0_i32, %c0_i32_0 : i32, i32
  }
  func.func @transform_11(%arg0: i32, %arg1: i32) -> (i32, i32) {
    %c0_i32 = arith.constant 0 : i32
    %c0_i32_0 = arith.constant 0 : i32
    %c0_i32_1 = arith.constant 0 : i32
    return %c0_i32, %c0_i32_0 : i32, i32
  }
  func.func @transform_12(%arg0: i32, %arg1: i32) -> (i32, i32) {
    %c0_i32 = arith.constant 0 : i32
    %c0_i32_0 = arith.constant 0 : i32
    %c0_i32_1 = arith.constant 0 : i32
    return %c0_i32, %c0_i32_0 : i32, i32
  }
  func.func @transform_13(%arg0: i32, %arg1: i32) -> (i32, i32) {
    %c0_i32 = arith.constant 0 : i32
    %c0_i32_0 = arith.constant 0 : i32
    %c0_i32_1 = arith.constant 0 : i32
    return %c0_i32, %c0_i32_0 : i32, i32
  }
  func.func @transform_14(%arg0: i32, %arg1: i32) -> (i32, i32) {
    %c0_i32 = arith.constant 0 : i32
    %c0_i32_0 = arith.constant 0 : i32
    %c0_i32_1 = arith.constant 0 : i32
    return %c0_i32, %c0_i32_0 : i32, i32
  }
  func.func @transform_15(%arg0: i32, %arg1: i32) -> (i32, i32) {
    %c0_i32 = arith.constant 0 : i32
    %c0_i32_0 = arith.constant 0 : i32
    %c0_i32_1 = arith.constant 0 : i32
    return %c0_i32, %c0_i32_0 : i32, i32
  }
  func.func @transform_16(%arg0: i32, %arg1: i32) -> (i32, i32) {
    %c0_i32 = arith.constant 0 : i32
    %c0_i32_0 = arith.constant 0 : i32
    %c0_i32_1 = arith.constant 0 : i32
    return %c0_i32, %c0_i32_0 : i32, i32
  }
  func.func @transform_17(%arg0: i32, %arg1: i32) -> (i32, i32) {
    %c0_i32 = arith.constant 0 : i32
    %c0_i32_0 = arith.constant 0 : i32
    %c0_i32_1 = arith.constant 0 : i32
    return %c0_i32, %c0_i32_0 : i32, i32
  }
  func.func @transform_18(%arg0: i32, %arg1: i32) -> (i32, i32) {
    %c0_i32 = arith.constant 0 : i32
    %c0_i32_0 = arith.constant 0 : i32
    %c0_i32_1 = arith.constant 0 : i32
    return %c0_i32, %c0_i32_0 : i32, i32
  }
  func.func @transform_19(%arg0: i32, %arg1: i32) -> (i32, i32) {
    %c0_i32 = arith.constant 0 : i32
    %c0_i32_0 = arith.constant 0 : i32
    %c0_i32_1 = arith.constant 0 : i32
    return %c0_i32, %c0_i32_0 : i32, i32
  }
  func.func @transform_20(%arg0: i32, %arg1: i32) -> (i32, i32, i32) {
    %c0_i32 = arith.constant 0 : i32
    %c0_i32_0 = arith.constant 0 : i32
    return %arg0, %arg1, %c0_i32 : i32, i32, i32
  }
  func.func @transform_21(%arg0: i32, %arg1: i32) -> (i32, i32, i32) {
    %c0_i32 = arith.constant 0 : i32
    %c0_i32_0 = arith.constant 0 : i32
    return %arg0, %arg1, %c0_i32 : i32, i32, i32
  }
}

</mosaic_0001>

<llo_original>
// kernel: egnn_forward.1
$region0: #{egnn_forward.1}
  #allocation0 [shape = 'u32[]', space=smem, size = 0x4, offset = 0x4, fixed_abs, tag = 'smem constant byte address 0x4 - core index']
  #allocation1 [shape = 'u32[144,128]{1,0:T(1,128)}', space=vmem, size = 0x12000, scoped, tag = 'internal scratch']
  #allocation2 [shape = 'f32[1,1]{1,0:T(1,128)S(1)}', space=vmem, size = 0x200, scoped, tag = 'scoped memory for egnn_forward.1']
  #allocation3 [shape = 'f32[1,1]{1,0:T(1,128)S(1)}', space=vmem, size = 0x200, scoped, tag = 'scoped memory for egnn_forward.1']
  %s0 = inlined_call_operand.vmem [shape: f32[2,8,32], index: 0, kind: input, shape index: {}, may-alias: {0,2}]
  %s1 = inlined_call_operand.vmem [shape: f32[2,8,3], index: 1, kind: input, shape index: {}, may-alias: {1,3}]
  %s2 = inlined_call_operand.vmem [shape: f32[2,8,32], index: 2, kind: input, shape index: {}, may-alias: {0,2}]
  %s3 = inlined_call_operand.vmem [shape: f32[2,8,3], index: 3, kind: input, shape index: {}, may-alias: {1,3}]
  %s4 = inlined_call_operand.vmem [shape: f32[32,256], index: 4, kind: input, shape index: {}]
  %s5 = inlined_call_operand.vmem [shape: f32[32,256], index: 5, kind: input, shape index: {}]
  %s6 = inlined_call_operand.vmem [shape: f32[1,256], index: 6, kind: input, shape index: {}]
  %s7 = inlined_call_operand.vmem [shape: f32[1,256], index: 7, kind: input, shape index: {}]
  %s8 = inlined_call_operand.vmem [shape: f32[256,32], index: 8, kind: input, shape index: {}]
  %s9 = inlined_call_operand.vmem [shape: f32[1,32], index: 9, kind: input, shape index: {}]
  %s10 = inlined_call_operand.vmem [shape: f32[32,128], index: 10, kind: input, shape index: {}]
  %s11 = inlined_call_operand.vmem [shape: f32[1,128], index: 11, kind: input, shape index: {}]
  %s12 = inlined_call_operand.vmem [shape: f32[1,128], index: 12, kind: input, shape index: {}]
  %s13 = inlined_call_operand.<no memory space> [shape: f32[1,1], index: 13, kind: input, shape index: {}]
  %s14 = inlined_call_operand.vmem [shape: f32[32,64], index: 14, kind: input, shape index: {}]
  %s15 = inlined_call_operand.vmem [shape: f32[32,64], index: 15, kind: input, shape index: {}]
  %s16 = inlined_call_operand.vmem [shape: f32[1,64], index: 16, kind: input, shape index: {}]
  %s17 = inlined_call_operand.vmem [shape: f32[64,32], index: 17, kind: input, shape index: {}]
  %s18 = inlined_call_operand.vmem [shape: f32[1,32], index: 18, kind: input, shape index: {}]
  %s19 = inlined_call_operand.<no memory space> [shape: f32[1,1], index: 19, kind: input, shape index: {}]
  %s20 = inlined_call_operand.hbm [shape: f32[2,8,32], index: 20, kind: output, shape index: {0}]
  %s21 = inlined_call_operand.vmem [shape: f32[2,8,3], index: 21, kind: output, shape index: {1}]
  %22 = xla_tuple %s20, %s21
  %s23 = sld [smem:[#allocation0]]
  $region121: #{egnn_forward.1} parent=0
    _
  %s25 = ssub.s32 1, %s23
  %s26 = scalar_select 0, %s25, %s23
  %v27 = vstv %s13
  %28 = vst [vmem:[#allocation2] sm:$0x1] %v27
  %v29 = vstv %s19
  %30 = vst [vmem:[#allocation3] sm:$0x1] %v29
  $region1: #{egnn_forward.1} parent=0
    #allocation4 [shape = 'u8[8192]{0}', space=vmem, size = 0x2000, scoped, tag = 'output window, operand 0']
    #allocation5 [shape = 's32[2]{0}', space=sflag, size = 0x8, scoped, tag = 'scoped memory for egnn_forward.1']
    %31 = vsyncpa [#allocation5], 0
    %s32 = scalar_lea.sflag [#allocation5], 1
    %33 = vsyncpa %s32, 0
    loop: start=0, step=1, limit=4
    $region2: #{egnn_forward.1} parent=1 // loop_pre_header
      _
    $region3: #{egnn_forward.1} parent=1 // loop_header
      %s35 = sphi 0, %s39
      %p36 = scmp.ge.s32.totalorder %s35, 4
      %s42 = sphi 0, %s54
      %s43 = sphi 0, %s50
      %s44 = sphi 0, %s42
      %s45 = sphi 0, %s43
      %s46 = sphi 0, %s44
      %s47 = sphi 0, %s45
      %s57 = sphi 0, %s59
      %s60 = sphi 0, %s57
      %s61 = sphi 0, %s60
      %s77 = sphi 0, %s61
      %s83 = sphi 0, %s85
      %s86 = sphi 0, %s83
      %s87 = sphi 0, %s86
      %s103 = sphi 0, %s87
      %s111 = sphi 0, %s113
      %s114 = sphi 0, %s111
      %s115 = sphi 0, %s114
      %s131 = sphi 0, %s115
      %s139 = sphi 0, %s141
      %s142 = sphi 0, %s139
      %s143 = sphi 0, %s142
      %s159 = sphi 0, %s143
      %s163 = sphi 0, %s163
      %s165 = sphi 0, %s163
      %s166 = sphi 0, %s165
      %s180 = sphi 0, %s166
      %s184 = sphi 0, %s184
      %s186 = sphi 0, %s184
      %s187 = sphi 0, %s186
      %s201 = sphi 0, %s187
      %s205 = sphi 0, %s205
      %s207 = sphi 0, %s205
      %s208 = sphi 0, %s207
      %s222 = sphi 0, %s208
      %s226 = sphi 0, %s226
      %s228 = sphi 0, %s226
      %s229 = sphi 0, %s228
      %s243 = sphi 0, %s229
      %s247 = sphi 0, %s247
      %s249 = sphi 0, %s247
      %s250 = sphi 0, %s249
      %s264 = sphi 0, %s250
      %s268 = sphi 0, %s268
      %s270 = sphi 0, %s268
      %s271 = sphi 0, %s270
      %s285 = sphi 0, %s271
      %s289 = sphi 0, %s289
      %s291 = sphi 0, %s289
      %s292 = sphi 0, %s291
      %s306 = sphi 0, %s292
      %s310 = sphi 0, %s310
      %s312 = sphi 0, %s310
      %s313 = sphi 0, %s312
      %s327 = sphi 0, %s313
      %s331 = sphi 0, %s331
      %s333 = sphi 0, %s331
      %s334 = sphi 0, %s333
      %s348 = sphi 0, %s334
      %s352 = sphi 0, %s352
      %s354 = sphi 0, %s352
      %s355 = sphi 0, %s354
      %s369 = sphi 0, %s355
      %s373 = sphi 0, %s373
      %s375 = sphi 0, %s373
      %s376 = sphi 0, %s375
      %s390 = sphi 0, %s376
      %s394 = sphi 0, %s394
      %s396 = sphi 0, %s394
      %s397 = sphi 0, %s396
      %s411 = sphi 0, %s397
      %s415 = sphi 0, %s415
      %s417 = sphi 0, %s415
      %s418 = sphi 0, %s417
      %s432 = sphi 0, %s418
      %s436 = sphi 0, %s436
      %s438 = sphi 0, %s436
      %s439 = sphi 0, %s438
      %s453 = sphi 0, %s439
      %s457 = sphi 0, %s457
      %s459 = sphi 0, %s457
      %s460 = sphi 0, %s459
      %s474 = sphi 0, %s460
      %s478 = sphi 0, %s478
      %s480 = sphi 0, %s478
      %s481 = sphi 0, %s480
      %s495 = sphi 0, %s481
      %s503 = sphi 0, %s505
      %s506 = sphi 0, %s503
      %s507 = sphi 0, %s506
      %s523 = sphi 0, %s507
      %s531 = sphi 0, %s533
      %s534 = sphi 0, %s531
      %s535 = sphi 0, %s534
      %s551 = sphi 0, %s535
    $region4: #{egnn_forward.1} parent=1 // loop_header_branch
      %38 = sbr.rel (%p36) target = $region8
    $region5: #{egnn_forward.1} parent=1 // loop_body
      %s40 = ssub.s32 %s35, 1
      %s41 = ssub.s32 %s35, 2
      %s48 = sadd.s32 1, %s43
      %p49 = scmp.ge.s32.totalorder %s48, 1
      %s50 = scalar_select %p49, 0, %s48
      %s51 = sadd.s32 1, %s42
      %s52 = scalar_select %p49, %s51, %s42
      %p53 = scmp.ge.s32.totalorder %s52, 2
      %s54 = scalar_select %p53, 0, %s52
      %s55 = ssub.s32 %s42, %s54
      %p56 = scmp.eq.s32.totalorder %s55, 0
      %s58 = sadd.s32 %s57, 1
      %s59 = scalar_select %p56, %s57, %s58
      %p62 = pneg %p56
      %p63 = scmp.eq.s32.totalorder %s35, 1
      %p64 = por %p62, %p63
      %p65 = scmp.ne.s32.totalorder %s57, %s60
      %p66 = scmp.eq.s32.totalorder %s35, 0
      %p67 = por %p65, %p66
      %p68 = scmp.ne.s32.totalorder %s57, %s60
      %p69 = scmp.eq.s32.totalorder %s40, 1
      %p70 = por %p68, %p69
      %p71 = scmp.ne.s32.totalorder %s60, %s61
      %p72 = scmp.eq.s32.totalorder %s40, 0
      %p73 = por %p71, %p72
      %p74 = scmp.ne.s32.totalorder %s60, %s61
      %p75 = scmp.eq.s32.totalorder %s41, 1
      %p76 = por %p74, %p75
      %p78 = scmp.ne.s32.totalorder %s61, %s77
      %p79 = scmp.eq.s32.totalorder %s41, 0
      %p80 = por %p78, %p79
      %s81 = ssub.s32 %s42, %s54
      %p82 = scmp.eq.s32.totalorder %s81, 0
      %s84 = sadd.s32 %s83, 1
      %s85 = scalar_select %p82, %s83, %s84
      %p88 = pneg %p82
      %p89 = scmp.eq.s32.totalorder %s35, 1
      %p90 = por %p88, %p89
      %p91 = scmp.ne.s32.totalorder %s83, %s86
      %p92 = scmp.eq.s32.totalorder %s35, 0
      %p93 = por %p91, %p92
      %p94 = scmp.ne.s32.totalorder %s83, %s86
      %p95 = scmp.eq.s32.totalorder %s40, 1
      %p96 = por %p94, %p95
      %p97 = scmp.ne.s32.totalorder %s86, %s87
      %p98 = scmp.eq.s32.totalorder %s40, 0
      %p99 = por %p97, %p98
      %p100 = scmp.ne.s32.totalorder %s86, %s87
      %p101 = scmp.eq.s32.totalorder %s41, 1
      %p102 = por %p100, %p101
      %p104 = scmp.ne.s32.totalorder %s87, %s103
      %p105 = scmp.eq.s32.totalorder %s41, 0
      %p106 = por %p104, %p105
      %s107 = ssub.s32 %s42, %s54
      %s108 = ssub.s32 %s43, %s50
      %s109 = sor.u32 %s107, %s108
      %p110 = scmp.eq.s32.totalorder %s109, 0
      %s112 = sadd.s32 %s111, 1
      %s113 = scalar_select %p110, %s111, %s112
      %p116 = pneg %p110
      %p117 = scmp.eq.s32.totalorder %s35, 1
      %p118 = por %p116, %p117
      %p119 = scmp.ne.s32.totalorder %s111, %s114
      %p120 = scmp.eq.s32.totalorder %s35, 0
      %p121 = por %p119, %p120
      %p122 = scmp.ne.s32.totalorder %s111, %s114
      %p123 = scmp.eq.s32.totalorder %s40, 1
      %p124 = por %p122, %p123
      %p125 = scmp.ne.s32.totalorder %s114, %s115
      %p126 = scmp.eq.s32.totalorder %s40, 0
      %p127 = por %p125, %p126
      %p128 = scmp.ne.s32.totalorder %s114, %s115
      %p129 = scmp.eq.s32.totalorder %s41, 1
      %p130 = por %p128, %p129
      %p132 = scmp.ne.s32.totalorder %s115, %s131
      %p133 = scmp.eq.s32.totalorder %s41, 0
      %p134 = por %p132, %p133
      %s135 = ssub.s32 %s42, %s54
      %s136 = ssub.s32 %s43, %s50
      %s137 = sor.u32 %s135, %s136
      %p138 = scmp.eq.s32.totalorder %s137, 0
      %s140 = sadd.s32 %s139, 1
      %s141 = scalar_select %p138, %s139, %s140
      %p144 = pneg %p138
      %p145 = scmp.eq.s32.totalorder %s35, 1
      %p146 = por %p144, %p145
      %p147 = scmp.ne.s32.totalorder %s139, %s142
      %p148 = scmp.eq.s32.totalorder %s35, 0
      %p149 = por %p147, %p148
      %p150 = scmp.ne.s32.totalorder %s139, %s142
      %p151 = scmp.eq.s32.totalorder %s40, 1
      %p152 = por %p150, %p151
      %p153 = scmp.ne.s32.totalorder %s142, %s143
      %p154 = scmp.eq.s32.totalorder %s40, 0
      %p155 = por %p153, %p154
      %p156 = scmp.ne.s32.totalorder %s142, %s143
      %p157 = scmp.eq.s32.totalorder %s41, 1
      %p158 = por %p156, %p157
      %p160 = scmp.ne.s32.totalorder %s143, %s159
      %p161 = scmp.eq.s32.totalorder %s41, 0
      %p162 = por %p160, %p161
      %s164 = sadd.s32 %s163, 1
      %p167 = scmp.eq.s32.totalorder %s35, 1
      %p168 = scmp.ne.s32.totalorder %s163, %s165
      %p169 = scmp.eq.s32.totalorder %s35, 0
      %p170 = por %p168, %p169
      %p171 = scmp.ne.s32.totalorder %s163, %s165
      %p172 = scmp.eq.s32.totalorder %s40, 1
      %p173 = por %p171, %p172
      %p174 = scmp.ne.s32.totalorder %s165, %s166
      %p175 = scmp.eq.s32.totalorder %s40, 0
      %p176 = por %p174, %p175
      %p177 = scmp.ne.s32.totalorder %s165, %s166
      %p178 = scmp.eq.s32.totalorder %s41, 1
      %p179 = por %p177, %p178
      %p181 = scmp.ne.s32.totalorder %s166, %s180
      %p182 = scmp.eq.s32.totalorder %s41, 0
      %p183 = por %p181, %p182
      %s185 = sadd.s32 %s184, 1
      %p188 = scmp.eq.s32.totalorder %s35, 1
      %p189 = scmp.ne.s32.totalorder %s184, %s186
      %p190 = scmp.eq.s32.totalorder %s35, 0
      %p191 = por %p189, %p190
      %p192 = scmp.ne.s32.totalorder %s184, %s186
      %p193 = scmp.eq.s32.totalorder %s40, 1
      %p194 = por %p192, %p193
      %p195 = scmp.ne.s32.totalorder %s186, %s187
      %p196 = scmp.eq.s32.totalorder %s40, 0
      %p197 = por %p195, %p196
      %p198 = scmp.ne.s32.totalorder %s186, %s187
      %p199 = scmp.eq.s32.totalorder %s41, 1
      %p200 = por %p198, %p199
      %p202 = scmp.ne.s32.totalorder %s187, %s201
      %p203 = scmp.eq.s32.totalorder %s41, 0
      %p204 = por %p202, %p203
      %s206 = sadd.s32 %s205, 1
      %p209 = scmp.eq.s32.totalorder %s35, 1
      %p210 = scmp.ne.s32.totalorder %s205, %s207
      %p211 = scmp.eq.s32.totalorder %s35, 0
      %p212 = por %p210, %p211
      %p213 = scmp.ne.s32.totalorder %s205, %s207
      %p214 = scmp.eq.s32.totalorder %s40, 1
      %p215 = por %p213, %p214
      %p216 = scmp.ne.s32.totalorder %s207, %s208
      %p217 = scmp.eq.s32.totalorder %s40, 0
      %p218 = por %p216, %p217
      %p219 = scmp.ne.s32.totalorder %s207, %s208
      %p220 = scmp.eq.s32.totalorder %s41, 1
      %p221 = por %p219, %p220
      %p223 = scmp.ne.s32.totalorder %s208, %s222
      %p224 = scmp.eq.s32.totalorder %s41, 0
      %p225 = por %p223, %p224
      %s227 = sadd.s32 %s226, 1
      %p230 = scmp.eq.s32.totalorder %s35, 1
      %p231 = scmp.ne.s32.totalorder %s226, %s228
      %p232 = scmp.eq.s32.totalorder %s35, 0
      %p233 = por %p231, %p232
      %p234 = scmp.ne.s32.totalorder %s226, %s228
      %p235 = scmp.eq.s32.totalorder %s40, 1
      %p236 = por %p234, %p235
      %p237 = scmp.ne.s32.totalorder %s228, %s229
      %p238 = scmp.eq.s32.totalorder %s40, 0
      %p239 = por %p237, %p238
      %p240 = scmp.ne.s32.totalorder %s228, %s229
      %p241 = scmp.eq.s32.totalorder %s41, 1
      %p242 = por %p240, %p241
      %p244 = scmp.ne.s32.totalorder %s229, %s243
      %p245 = scmp.eq.s32.totalorder %s41, 0
      %p246 = por %p244, %p245
      %s248 = sadd.s32 %s247, 1
      %p251 = scmp.eq.s32.totalorder %s35, 1
      %p252 = scmp.ne.s32.totalorder %s247, %s249
      %p253 = scmp.eq.s32.totalorder %s35, 0
      %p254 = por %p252, %p253
      %p255 = scmp.ne.s32.totalorder %s247, %s249
      %p256 = scmp.eq.s32.totalorder %s40, 1
      %p257 = por %p255, %p256
      %p258 = scmp.ne.s32.totalorder %s249, %s250
      %p259 = scmp.eq.s32.totalorder %s40, 0
      %p260 = por %p258, %p259
      %p261 = scmp.ne.s32.totalorder %s249, %s250
      %p262 = scmp.eq.s32.totalorder %s41, 1
      %p263 = por %p261, %p262
      %p265 = scmp.ne.s32.totalorder %s250, %s264
      %p266 = scmp.eq.s32.totalorder %s41, 0
      %p267 = por %p265, %p266
      %s269 = sadd.s32 %s268, 1
      %p272 = scmp.eq.s32.totalorder %s35, 1
      %p273 = scmp.ne.s32.totalorder %s268, %s270
      %p274 = scmp.eq.s32.totalorder %s35, 0
      %p275 = por %p273, %p274
      %p276 = scmp.ne.s32.totalorder %s268, %s270
      %p277 = scmp.eq.s32.totalorder %s40, 1
      %p278 = por %p276, %p277
      %p279 = scmp.ne.s32.totalorder %s270, %s271
      %p280 = scmp.eq.s32.totalorder %s40, 0
      %p281 = por %p279, %p280
      %p282 = scmp.ne.s32.totalorder %s270, %s271
      %p283 = scmp.eq.s32.totalorder %s41, 1
      %p284 = por %p282, %p283
      %p286 = scmp.ne.s32.totalorder %s271, %s285
      %p287 = scmp.eq.s32.totalorder %s41, 0
      %p288 = por %p286, %p287
      %s290 = sadd.s32 %s289, 1
      %p293 = scmp.eq.s32.totalorder %s35, 1
      %p294 = scmp.ne.s32.totalorder %s289, %s291
      %p295 = scmp.eq.s32.totalorder %s35, 0
      %p296 = por %p294, %p295
      %p297 = scmp.ne.s32.totalorder %s289, %s291
      %p298 = scmp.eq.s32.totalorder %s40, 1
      %p299 = por %p297, %p298
      %p300 = scmp.ne.s32.totalorder %s291, %s292
      %p301 = scmp.eq.s32.totalorder %s40, 0
      %p302 = por %p300, %p301
      %p303 = scmp.ne.s32.totalorder %s291, %s292
      %p304 = scmp.eq.s32.totalorder %s41, 1
      %p305 = por %p303, %p304
      %p307 = scmp.ne.s32.totalorder %s292, %s306
      %p308 = scmp.eq.s32.totalorder %s41, 0
      %p309 = por %p307, %p308
      %s311 = sadd.s32 %s310, 1
      %p314 = scmp.eq.s32.totalorder %s35, 1
      %p315 = scmp.ne.s32.totalorder %s310, %s312
      %p316 = scmp.eq.s32.totalorder %s35, 0
      %p317 = por %p315, %p316
      %p318 = scmp.ne.s32.totalorder %s310, %s312
      %p319 = scmp.eq.s32.totalorder %s40, 1
      %p320 = por %p318, %p319
      %p321 = scmp.ne.s32.totalorder %s312, %s313
      %p322 = scmp.eq.s32.totalorder %s40, 0
      %p323 = por %p321, %p322
      %p324 = scmp.ne.s32.totalorder %s312, %s313
      %p325 = scmp.eq.s32.totalorder %s41, 1
      %p326 = por %p324, %p325
      %p328 = scmp.ne.s32.totalorder %s313, %s327
      %p329 = scmp.eq.s32.totalorder %s41, 0
      %p330 = por %p328, %p329
      %s332 = sadd.s32 %s331, 1
      %p335 = scmp.eq.s32.totalorder %s35, 1
      %p336 = scmp.ne.s32.totalorder %s331, %s333
      %p337 = scmp.eq.s32.totalorder %s35, 0
      %p338 = por %p336, %p337
      %p339 = scmp.ne.s32.totalorder %s331, %s333
      %p340 = scmp.eq.s32.totalorder %s40, 1
      %p341 = por %p339, %p340
      %p342 = scmp.ne.s32.totalorder %s333, %s334
      %p343 = scmp.eq.s32.totalorder %s40, 0
      %p344 = por %p342, %p343
      %p345 = scmp.ne.s32.totalorder %s333, %s334
      %p346 = scmp.eq.s32.totalorder %s41, 1
      %p347 = por %p345, %p346
      %p349 = scmp.ne.s32.totalorder %s334, %s348
      %p350 = scmp.eq.s32.totalorder %s41, 0
      %p351 = por %p349, %p350
      %s353 = sadd.s32 %s352, 1
      %p356 = scmp.eq.s32.totalorder %s35, 1
      %p357 = scmp.ne.s32.totalorder %s352, %s354
      %p358 = scmp.eq.s32.totalorder %s35, 0
      %p359 = por %p357, %p358
      %p360 = scmp.ne.s32.totalorder %s352, %s354
      %p361 = scmp.eq.s32.totalorder %s40, 1
      %p362 = por %p360, %p361
      %p363 = scmp.ne.s32.totalorder %s354, %s355
      %p364 = scmp.eq.s32.totalorder %s40, 0
      %p365 = por %p363, %p364
      %p366 = scmp.ne.s32.totalorder %s354, %s355
      %p367 = scmp.eq.s32.totalorder %s41, 1
      %p368 = por %p366, %p367
      %p370 = scmp.ne.s32.totalorder %s355, %s369
      %p371 = scmp.eq.s32.totalorder %s41, 0
      %p372 = por %p370, %p371
      %s374 = sadd.s32 %s373, 1
      %p377 = scmp.eq.s32.totalorder %s35, 1
      %p378 = scmp.ne.s32.totalorder %s373, %s375
      %p379 = scmp.eq.s32.totalorder %s35, 0
      %p380 = por %p378, %p379
      %p381 = scmp.ne.s32.totalorder %s373, %s375
      %p382 = scmp.eq.s32.totalorder %s40, 1
      %p383 = por %p381, %p382
      %p384 = scmp.ne.s32.totalorder %s375, %s376
      %p385 = scmp.eq.s32.totalorder %s40, 0
      %p386 = por %p384, %p385
      %p387 = scmp.ne.s32.totalorder %s375, %s376
      %p388 = scmp.eq.s32.totalorder %s41, 1
      %p389 = por %p387, %p388
      %p391 = scmp.ne.s32.totalorder %s376, %s390
      %p392 = scmp.eq.s32.totalorder %s41, 0
      %p393 = por %p391, %p392
      %s395 = sadd.s32 %s394, 1
      %p398 = scmp.eq.s32.totalorder %s35, 1
      %p399 = scmp.ne.s32.totalorder %s394, %s396
      %p400 = scmp.eq.s32.totalorder %s35, 0
      %p401 = por %p399, %p400
      %p402 = scmp.ne.s32.totalorder %s394, %s396
      %p403 = scmp.eq.s32.totalorder %s40, 1
      %p404 = por %p402, %p403
      %p405 = scmp.ne.s32.totalorder %s396, %s397
      %p406 = scmp.eq.s32.totalorder %s40, 0
      %p407 = por %p405, %p406
      %p408 = scmp.ne.s32.totalorder %s396, %s397
      %p409 = scmp.eq.s32.totalorder %s41, 1
      %p410 = por %p408, %p409
      %p412 = scmp.ne.s32.totalorder %s397, %s411
      %p413 = scmp.eq.s32.totalorder %s41, 0
      %p414 = por %p412, %p413
      %s416 = sadd.s32 %s415, 1
      %p419 = scmp.eq.s32.totalorder %s35, 1
      %p420 = scmp.ne.s32.totalorder %s415, %s417
      %p421 = scmp.eq.s32.totalorder %s35, 0
      %p422 = por %p420, %p421
      %p423 = scmp.ne.s32.totalorder %s415, %s417
      %p424 = scmp.eq.s32.totalorder %s40, 1
      %p425 = por %p423, %p424
      %p426 = scmp.ne.s32.totalorder %s417, %s418
      %p427 = scmp.eq.s32.totalorder %s40, 0
      %p428 = por %p426, %p427
      %p429 = scmp.ne.s32.totalorder %s417, %s418
      %p430 = scmp.eq.s32.totalorder %s41, 1
      %p431 = por %p429, %p430
      %p433 = scmp.ne.s32.totalorder %s418, %s432
      %p434 = scmp.eq.s32.totalorder %s41, 0
      %p435 = por %p433, %p434
      %s437 = sadd.s32 %s436, 1
      %p440 = scmp.eq.s32.totalorder %s35, 1
      %p441 = scmp.ne.s32.totalorder %s436, %s438
      %p442 = scmp.eq.s32.totalorder %s35, 0
      %p443 = por %p441, %p442
      %p444 = scmp.ne.s32.totalorder %s436, %s438
      %p445 = scmp.eq.s32.totalorder %s40, 1
      %p446 = por %p444, %p445
      %p447 = scmp.ne.s32.totalorder %s438, %s439
      %p448 = scmp.eq.s32.totalorder %s40, 0
      %p449 = por %p447, %p448
      %p450 = scmp.ne.s32.totalorder %s438, %s439
      %p451 = scmp.eq.s32.totalorder %s41, 1
      %p452 = por %p450, %p451
      %p454 = scmp.ne.s32.totalorder %s439, %s453
      %p455 = scmp.eq.s32.totalorder %s41, 0
      %p456 = por %p454, %p455
      %s458 = sadd.s32 %s457, 1
      %p461 = scmp.eq.s32.totalorder %s35, 1
      %p462 = scmp.ne.s32.totalorder %s457, %s459
      %p463 = scmp.eq.s32.totalorder %s35, 0
      %p464 = por %p462, %p463
      %p465 = scmp.ne.s32.totalorder %s457, %s459
      %p466 = scmp.eq.s32.totalorder %s40, 1
      %p467 = por %p465, %p466
      %p468 = scmp.ne.s32.totalorder %s459, %s460
      %p469 = scmp.eq.s32.totalorder %s40, 0
      %p470 = por %p468, %p469
      %p471 = scmp.ne.s32.totalorder %s459, %s460
      %p472 = scmp.eq.s32.totalorder %s41, 1
      %p473 = por %p471, %p472
      %p475 = scmp.ne.s32.totalorder %s460, %s474
      %p476 = scmp.eq.s32.totalorder %s41, 0
      %p477 = por %p475, %p476
      %s479 = sadd.s32 %s478, 1
      %p482 = scmp.eq.s32.totalorder %s35, 1
      %p483 = scmp.ne.s32.totalorder %s478, %s480
      %p484 = scmp.eq.s32.totalorder %s35, 0
      %p485 = por %p483, %p484
      %p486 = scmp.ne.s32.totalorder %s478, %s480
      %p487 = scmp.eq.s32.totalorder %s40, 1
      %p488 = por %p486, %p487
      %p489 = scmp.ne.s32.totalorder %s480, %s481
      %p490 = scmp.eq.s32.totalorder %s40, 0
      %p491 = por %p489, %p490
      %p492 = scmp.ne.s32.totalorder %s480, %s481
      %p493 = scmp.eq.s32.totalorder %s41, 1
      %p494 = por %p492, %p493
      %p496 = scmp.ne.s32.totalorder %s481, %s495
      %p497 = scmp.eq.s32.totalorder %s41, 0
      %p498 = por %p496, %p497
      %s499 = ssub.s32 %s42, %s54
      %s500 = ssub.s32 %s43, %s50
      %s501 = sor.u32 %s499, %s500
      %p502 = scmp.eq.s32.totalorder %s501, 0
      %s504 = sadd.s32 %s503, 1
      %s505 = scalar_select %p502, %s503, %s504
      %p508 = pneg %p502
      %p509 = scmp.eq.s32.totalorder %s35, 1
      %p510 = por %p508, %p509
      %p511 = scmp.ne.s32.totalorder %s503, %s506
      %p512 = scmp.eq.s32.totalorder %s35, 0
      %p513 = por %p511, %p512
      %p514 = scmp.ne.s32.totalorder %s503, %s506
      %p515 = scmp.eq.s32.totalorder %s40, 1
      %p516 = por %p514, %p515
      %p517 = scmp.ne.s32.totalorder %s506, %s507
      %p518 = scmp.eq.s32.totalorder %s40, 0
      %p519 = por %p517, %p518
      %p520 = scmp.ne.s32.totalorder %s506, %s507
      %p521 = scmp.eq.s32.totalorder %s41, 1
      %p522 = por %p520, %p521
      %p524 = scmp.ne.s32.totalorder %s507, %s523
      %p525 = scmp.eq.s32.totalorder %s41, 0
      %p526 = por %p524, %p525
      %s527 = ssub.s32 %s42, %s54
      %s528 = ssub.s32 %s43, %s50
      %s529 = sor.u32 %s527, %s528
      %p530 = scmp.eq.s32.totalorder %s529, 0
      %s532 = sadd.s32 %s531, 1
      %s533 = scalar_select %p530, %s531, %s532
      %p536 = pneg %p530
      %p537 = scmp.eq.s32.totalorder %s35, 1
      %p538 = por %p536, %p537
      %p539 = scmp.ne.s32.totalorder %s531, %s534
      %p540 = scmp.eq.s32.totalorder %s35, 0
      %p541 = por %p539, %p540
      %p542 = scmp.ne.s32.totalorder %s531, %s534
      %p543 = scmp.eq.s32.totalorder %s40, 1
      %p544 = por %p542, %p543
      %p545 = scmp.ne.s32.totalorder %s534, %s535
      %p546 = scmp.eq.s32.totalorder %s40, 0
      %p547 = por %p545, %p546
      %p548 = scmp.ne.s32.totalorder %s534, %s535
      %p549 = scmp.eq.s32.totalorder %s41, 1
      %p550 = por %p548, %p549
      %p552 = scmp.ne.s32.totalorder %s535, %s551
      %p553 = scmp.eq.s32.totalorder %s41, 0
      %p554 = por %p552, %p553
      %p555 = scmp.le.s32.totalorder 1, %s35
      %p556 = scmp.lt.s32.totalorder %s35, 3
      %p557 = pnand %p555, %p556
      %p558 = pneg %p557
      // Predicated region
      $region9: #{egnn_forward.1} parent=5 // pred_check
        _
      $region10: #{egnn_forward.1} parent=5 // pred_check_branch
        %560 = sbr.rel (%p557) target = $region12
      $region11: #{egnn_forward.1} parent=5 // pred_region
        %s561 = ssub.s32 %s35, 1
        // Predicated region
        $region13: #{egnn_forward.1} parent=11 // pred_check
          %p562 = pneg %p176
        $region14: #{egnn_forward.1} parent=11 // pred_check_branch
          %564 = sbr.rel (%p562) target = $region16
        $region15: #{egnn_forward.1} parent=11 // pred_region
          _
        $region16: #{egnn_forward.1} parent=11 // pred_fallthru
          _
        // Predicated region
        $region17: #{egnn_forward.1} parent=11 // pred_check
          %p565 = pneg %p197
        $region18: #{egnn_forward.1} parent=11 // pred_check_branch
          %567 = sbr.rel (%p565) target = $region20
        $region19: #{egnn_forward.1} parent=11 // pred_region
          _
        $region20: #{egnn_forward.1} parent=11 // pred_fallthru
          _
        // Predicated region
        $region21: #{egnn_forward.1} parent=11 // pred_check
          %p568 = pneg %p218
        $region22: #{egnn_forward.1} parent=11 // pred_check_branch
          %570 = sbr.rel (%p568) target = $region24
        $region23: #{egnn_forward.1} parent=11 // pred_region
          _
        $region24: #{egnn_forward.1} parent=11 // pred_fallthru
          _
        // Predicated region
        $region25: #{egnn_forward.1} parent=11 // pred_check
          %p571 = pneg %p239
        $region26: #{egnn_forward.1} parent=11 // pred_check_branch
          %573 = sbr.rel (%p571) target = $region28
        $region27: #{egnn_forward.1} parent=11 // pred_region
          _
        $region28: #{egnn_forward.1} parent=11 // pred_fallthru
          _
        // Predicated region
        $region29: #{egnn_forward.1} parent=11 // pred_check
          %p574 = pneg %p260
        $region30: #{egnn_forward.1} parent=11 // pred_check_branch
          %576 = sbr.rel (%p574) target = $region32
        $region31: #{egnn_forward.1} parent=11 // pred_region
          _
        $region32: #{egnn_forward.1} parent=11 // pred_fallthru
          _
        // Predicated region
        $region33: #{egnn_forward.1} parent=11 // pred_check
          %p577 = pneg %p281
        $region34: #{egnn_forward.1} parent=11 // pred_check_branch
          %579 = sbr.rel (%p577) target = $region36
        $region35: #{egnn_forward.1} parent=11 // pred_region
          _
        $region36: #{egnn_forward.1} parent=11 // pred_fallthru
          _
        // Predicated region
        $region37: #{egnn_forward.1} parent=11 // pred_check
          %p580 = pneg %p302
        $region38: #{egnn_forward.1} parent=11 // pred_check_branch
          %582 = sbr.rel (%p580) target = $region40
        $region39: #{egnn_forward.1} parent=11 // pred_region
          _
        $region40: #{egnn_forward.1} parent=11 // pred_fallthru
          _
        // Predicated region
        $region41: #{egnn_forward.1} parent=11 // pred_check
          %p583 = pneg %p323
        $region42: #{egnn_forward.1} parent=11 // pred_check_branch
          %585 = sbr.rel (%p583) target = $region44
        $region43: #{egnn_forward.1} parent=11 // pred_region
          _
        $region44: #{egnn_forward.1} parent=11 // pred_fallthru
          _
        // Predicated region
        $region45: #{egnn_forward.1} parent=11 // pred_check
          %p586 = pneg %p344
        $region46: #{egnn_forward.1} parent=11 // pred_check_branch
          %588 = sbr.rel (%p586) target = $region48
        $region47: #{egnn_forward.1} parent=11 // pred_region
          _
        $region48: #{egnn_forward.1} parent=11 // pred_fallthru
          _
        // Predicated region
        $region49: #{egnn_forward.1} parent=11 // pred_check
          %p589 = pneg %p365
        $region50: #{egnn_forward.1} parent=11 // pred_check_branch
          %591 = sbr.rel (%p589) target = $region52
        $region51: #{egnn_forward.1} parent=11 // pred_region
          _
        $region52: #{egnn_forward.1} parent=11 // pred_fallthru
          _
        // Predicated region
        $region53: #{egnn_forward.1} parent=11 // pred_check
          %p592 = pneg %p386
        $region54: #{egnn_forward.1} parent=11 // pred_check_branch
          %594 = sbr.rel (%p592) target = $region56
        $region55: #{egnn_forward.1} parent=11 // pred_region
          _
        $region56: #{egnn_forward.1} parent=11 // pred_fallthru
          _
        // Predicated region
        $region57: #{egnn_forward.1} parent=11 // pred_check
          %p595 = pneg %p407
        $region58: #{egnn_forward.1} parent=11 // pred_check_branch
          %597 = sbr.rel (%p595) target = $region60
        $region59: #{egnn_forward.1} parent=11 // pred_region
          _
        $region60: #{egnn_forward.1} parent=11 // pred_fallthru
          _
        // Predicated region
        $region61: #{egnn_forward.1} parent=11 // pred_check
          %p598 = pneg %p428
        $region62: #{egnn_forward.1} parent=11 // pred_check_branch
          %600 = sbr.rel (%p598) target = $region64
        $region63: #{egnn_forward.1} parent=11 // pred_region
          _
        $region64: #{egnn_forward.1} parent=11 // pred_fallthru
          _
        // Predicated region
        $region65: #{egnn_forward.1} parent=11 // pred_check
          %p601 = pneg %p449
        $region66: #{egnn_forward.1} parent=11 // pred_check_branch
          %603 = sbr.rel (%p601) target = $region68
        $region67: #{egnn_forward.1} parent=11 // pred_region
          _
        $region68: #{egnn_forward.1} parent=11 // pred_fallthru
          _
        // Predicated region
        $region69: #{egnn_forward.1} parent=11 // pred_check
          %p604 = pneg %p470
        $region70: #{egnn_forward.1} parent=11 // pred_check_branch
          %606 = sbr.rel (%p604) target = $region72
        $region71: #{egnn_forward.1} parent=11 // pred_region
          _
        $region72: #{egnn_forward.1} parent=11 // pred_fallthru
          _
        // Predicated region
        $region73: #{egnn_forward.1} parent=11 // pred_check
          %p607 = pneg %p491
        $region74: #{egnn_forward.1} parent=11 // pred_check_branch
          %609 = sbr.rel (%p607) target = $region76
        $region75: #{egnn_forward.1} parent=11 // pred_region
          _
        $region76: #{egnn_forward.1} parent=11 // pred_fallthru
          _
      $region12: #{egnn_forward.1} parent=5 // pred_fallthru
        _
      %p610 = scmp.lt.s32.totalorder %s35, 2
      // Predicated region
      $region77: #{egnn_forward.1} parent=5 // pred_check
        %p611 = pneg %p610
      $region78: #{egnn_forward.1} parent=5 // pred_check_branch
        %613 = sbr.rel (%p611) target = $region80
      $region79: #{egnn_forward.1} parent=5 // pred_region
        // Predicated region
        $region81: #{egnn_forward.1} parent=79 // pred_check
          %p614 = pneg %p67
        $region82: #{egnn_forward.1} parent=79 // pred_check_branch
          %616 = sbr.rel (%p614) target = $region84
        $region83: #{egnn_forward.1} parent=79 // pred_region
          %p617 = scmp.lt.s32.totalorder %s42, 1
          %s618 = scalar_select %p617, %s42, 1
          %s619 = smul.addr %s618, 8
          %s620 = scalar_lea.vmem %s0, %s619
        $region84: #{egnn_forward.1} parent=79 // pred_fallthru
          _
        // Predicated region
        $region85: #{egnn_forward.1} parent=79 // pred_check
          %p621 = pneg %p93
        $region86: #{egnn_forward.1} parent=79 // pred_check_branch
          %623 = sbr.rel (%p621) target = $region88
        $region87: #{egnn_forward.1} parent=79 // pred_region
          %p624 = scmp.lt.s32.totalorder %s42, 1
          %s625 = scalar_select %p624, %s42, 1
          %s626 = smul.addr %s625, 8
          %s627 = scalar_lea.vmem %s1, %s626
        $region88: #{egnn_forward.1} parent=79 // pred_fallthru
          _
        // Predicated region
        $region89: #{egnn_forward.1} parent=79 // pred_check
          %p628 = pneg %p121
        $region90: #{egnn_forward.1} parent=79 // pred_check_branch
          %630 = sbr.rel (%p628) target = $region92
        $region91: #{egnn_forward.1} parent=79 // pred_region
          %p631 = scmp.lt.s32.totalorder %s42, 1
          %s632 = scalar_select %p631, %s42, 1
          %p633 = scmp.lt.s32.totalorder %s43, 0
          %s634 = scalar_select %p633, %s43, 0
          %s635 = sadd.s32 %s634, %s632
          %s636 = smul.addr %s635, 8
          %s637 = scalar_lea.vmem %s2, %s636
        $region92: #{egnn_forward.1} parent=79 // pred_fallthru
          _
        // Predicated region
        $region93: #{egnn_forward.1} parent=79 // pred_check
          %p638 = pneg %p149
        $region94: #{egnn_forward.1} parent=79 // pred_check_branch
          %640 = sbr.rel (%p638) target = $region96
        $region95: #{egnn_forward.1} parent=79 // pred_region
          %p641 = scmp.lt.s32.totalorder %s42, 1
          %s642 = scalar_select %p641, %s42, 1
          %p643 = scmp.lt.s32.totalorder %s43, 0
          %s644 = scalar_select %p643, %s43, 0
          %s645 = sadd.s32 %s644, %s642
          %s646 = smul.addr %s645, 8
          %s647 = scalar_lea.vmem %s3, %s646
        $region96: #{egnn_forward.1} parent=79 // pred_fallthru
          _
      $region80: #{egnn_forward.1} parent=5 // pred_fallthru
        _
      %p648 = scmp.le.s32.totalorder 1, %s35
      %p649 = scmp.lt.s32.totalorder %s35, 3
      %p650 = pnand %p648, %p649
      %p651 = pneg %p650
      // Predicated region
      $region97: #{egnn_forward.1} parent=5 // pred_check
        _
      $region98: #{egnn_forward.1} parent=5 // pred_check_branch
        %653 = sbr.rel (%p650) target = $region100
      $region99: #{egnn_forward.1} parent=5 // pred_region
        %s654 = ssub.s32 %s35, 1
        %p655 = scmp.lt.s32.totalorder %s44, 1
        %s656 = scalar_select %p655, %s44, 1
        %s657 = smul.addr %s656, 8
        %s658 = scalar_lea.vmem %s0, %s657
        %p659 = pneg %p73
        %p660 = pneg %p70
        %p661 = scmp.lt.s32.totalorder %s44, 1
        %s662 = scalar_select %p661, %s44, 1
        %s663 = smul.addr %s662, 8
        %s664 = scalar_lea.vmem %s1, %s663
        %p665 = pneg %p99
        %p666 = pneg %p96
        %p667 = scmp.lt.s32.totalorder %s44, 1
        %s668 = scalar_select %p667, %s44, 1
        %p669 = scmp.lt.s32.totalorder %s45, 0
        %s670 = scalar_select %p669, %s45, 0
        %s671 = sadd.s32 %s670, %s668
        %s672 = smul.addr %s671, 8
        %s673 = scalar_lea.vmem %s2, %s672
        %p674 = pneg %p127
        %p675 = pneg %p124
        %p676 = scmp.lt.s32.totalorder %s44, 1
        %s677 = scalar_select %p676, %s44, 1
        %p678 = scmp.lt.s32.totalorder %s45, 0
        %s679 = scalar_select %p678, %s45, 0
        %s680 = sadd.s32 %s679, %s677
        %s681 = smul.addr %s680, 8
        %s682 = scalar_lea.vmem %s3, %s681
        %p683 = pneg %p155
        %p684 = pneg %p152
        %p685 = pneg %p176
        %p686 = pneg %p173
        %p687 = pneg %p197
        %p688 = pneg %p194
        %p689 = pneg %p218
        %p690 = pneg %p215
        %p691 = pneg %p239
        %p692 = pneg %p236
        %p693 = pneg %p260
        %p694 = pneg %p257
        %p695 = pneg %p281
        %p696 = pneg %p278
        %p697 = pneg %p302
        %p698 = pneg %p299
        %p699 = pneg %p323
        %p700 = pneg %p320
        %p701 = pneg %p344
        %p702 = pneg %p341
        %p703 = pneg %p365
        %p704 = pneg %p362
        %p705 = pneg %p386
        %p706 = pneg %p383
        %p707 = pneg %p407
        %p708 = pneg %p404
        %p709 = pneg %p428
        %p710 = pneg %p425
        %p711 = pneg %p449
        %p712 = pneg %p446
        %p713 = pneg %p470
        %p714 = pneg %p467
        %p715 = pneg %p491
        %p716 = pneg %p488
        %p717 = pneg %p519
        %p718 = pneg %p516
        %s719 = sand.u32 %s506, 1
        %s720 = scalar_lea.sflag [#allocation5], %s719
        %s721 = sand.u32 %s506, 1
        %s722 = smul.addr %s721, 8
        %s723 = scalar_lea.vmem [#allocation4], %s722
        %p724 = pneg %p547
        %p725 = pneg %p544
        %p726 = scmp.lt.s32.totalorder %s44, 1
        %s727 = scalar_select %p726, %s44, 1
        %p728 = scmp.lt.s32.totalorder %s45, 0
        %s729 = scalar_select %p728, %s45, 0
        %s730 = sadd.s32 %s729, %s727
        %s731 = smul.addr %s730, 8
        %s732 = scalar_lea.vmem %s21, %s731
        %p733 = scmp.lt.s32.totalorder %s44, 1
        %s734 = scalar_select %p733, %s44, 1
        %s735 = smul.addr %s734, 8
        %s736 = scalar_lea.vmem %s0, %s735
        %p737 = scmp.lt.s32.totalorder %s44, 1
        %s738 = scalar_select %p737, %s44, 1
        %s739 = smul.addr %s738, 8
        %s740 = scalar_lea.vmem %s1, %s739
        %p741 = scmp.lt.s32.totalorder %s44, 1
        %s742 = scalar_select %p741, %s44, 1
        %p743 = scmp.lt.s32.totalorder %s45, 0
        %s744 = scalar_select %p743, %s45, 0
        %s745 = sadd.s32 %s744, %s742
        %s746 = smul.addr %s745, 8
        %s747 = scalar_lea.vmem %s2, %s746
        %p748 = scmp.lt.s32.totalorder %s44, 1
        %s749 = scalar_select %p748, %s44, 1
        %p750 = scmp.lt.s32.totalorder %s45, 0
        %s751 = scalar_select %p750, %s45, 0
        %s752 = sadd.s32 %s751, %s749
        %s753 = smul.addr %s752, 8
        %s754 = scalar_lea.vmem %s3, %s753
        %p755 = scmp.lt.s32.totalorder %s44, 1
        %s756 = scalar_select %p755, %s44, 1
        %p757 = scmp.lt.s32.totalorder %s45, 0
        %s758 = scalar_select %p757, %s45, 0
        %s759 = sadd.s32 %s758, %s756
        %s760 = smul.addr %s759, 8
        %s761 = scalar_lea.vmem %s21, %s760
        %v762 = vld [vmem:[%s736] sm:$0xff]
        %v763 = vld [vmem:[%s740] sm:$0xff]
        %v764 = vld [vmem:[%s747] sm:$0xff]
        %v765 = vld [vmem:[%s754] sm:$0xff]
        %v766 = vmul.f32 %v763, %v763
        %vm767 = vcmask 23552
        %v768 = vsel %vm767, %v766, 0.0
        %769 = vadd.xlane.f32.xlu0 %v768
        %v770 = vpop.xlane.xlu0 %769
        %v771 = vmul.f32 %v765, %v765
        %v772 = vsel %vm767, %v771, 0.0
        %773 = vadd.xlane.f32.xlu0 %v772
        %v774 = vpop.xlane.xlu0 %773
        %v775 = vsel %vm767, %v765, 1.0
        %v776 = vmul.f32 %v763, -2.0
        %v777 = vsel %vm767, %v776, %v770
        %vm778 = vcmask 31744
        %v780 = vsel %vm778, %v775, 0
        %v783 = vsel %vm778, %v777, 0
        %785 = vmatprep.subr.mxu0 0.0
        %786 = vmatpush1.xpose.msra.mxu0 0.0
        %787 = vmatprep.subr.mxu0 0.0
        %788 = vmatpush1.xpose.msra.mxu0 0.0
        %789 = vmatprep.subr.mxu0 0.0
        %790 = vmatpush1.xpose.msra.mxu0 0.0
        %791 = vmatprep.subr.mxu0 0.0
        %792 = vmatpush1.xpose.msra.mxu0 0.0
        %793 = vmatprep.subr.mxu0 0.0
        %794 = vmatpush1.xpose.msra.mxu0 0.0
        %795 = vmatprep.subr.mxu0 0.0
        %796 = vmatpush1.xpose.msra.mxu0 0.0
        %797 = vmatprep.subr.mxu0 0.0
        %798 = vmatpush1.xpose.msra.mxu0 0.0
        %799 = vmatprep.subr.mxu0 0.0
        %800 = vmatpush1.xpose.msra.mxu0 0.0
        %801 = vmatprep.subr.mxu0 0.0
        %802 = vmatpush1.xpose.msra.mxu0 0.0
        %803 = vmatprep.subr.mxu0 0.0
        %804 = vmatpush1.xpose.msra.mxu0 0.0
        %805 = vmatprep.subr.mxu0 0.0
        %806 = vmatpush1.xpose.msra.mxu0 0.0
        %807 = vmatprep.subr.mxu0 0.0
        %808 = vmatpush1.xpose.msra.mxu0 0.0
        %809 = vmatprep.subr.mxu0 0.0
        %810 = vmatpush1.xpose.msra.mxu0 0.0
        %811 = vmatprep.subr.mxu0 0.0
        %812 = vmatpush1.xpose.msra.mxu0 0.0
        %813 = vmatprep.subr.mxu0 0.0
        %814 = vmatpush1.xpose.msra.mxu0 0.0
        %815 = vmatprep.subr.mxu0 0.0
        %v816 = vand.u32 %v783, 4294901760
        %817 = vmatpush1.xpose.msra.mxu0 %v816
        %818 = vmatprep.subr.mxu0 0.0
        %819 = vmatpush2.xpose.msra.mxu0 0.0
        %820 = vmatprep.subr.mxu0 0.0
        %821 = vmatpush2.xpose.msra.mxu0 0.0
        %822 = vmatprep.subr.mxu0 0.0
        %823 = vmatpush2.xpose.msra.mxu0 0.0
        %824 = vmatprep.subr.mxu0 0.0
        %825 = vmatpush2.xpose.msra.mxu0 0.0
        %826 = vmatprep.subr.mxu0 0.0
        %827 = vmatpush2.xpose.msra.mxu0 0.0
        %828 = vmatprep.subr.mxu0 0.0
        %829 = vmatpush2.xpose.msra.mxu0 0.0
        %830 = vmatprep.subr.mxu0 0.0
        %831 = vmatpush2.xpose.msra.mxu0 0.0
        %832 = vmatprep.subr.mxu0 0.0
        %833 = vmatpush2.xpose.msra.mxu0 0.0
        %834 = vmatprep.subr.mxu0 0.0
        %835 = vmatpush2.xpose.msra.mxu0 0.0
        %836 = vmatprep.subr.mxu0 0.0
        %837 = vmatpush2.xpose.msra.mxu0 0.0
        %838 = vmatprep.subr.mxu0 0.0
        %839 = vmatpush2.xpose.msra.mxu0 0.0
        %840 = vmatprep.subr.mxu0 0.0
        %841 = vmatpush2.xpose.msra.mxu0 0.0
        %842 = vmatprep.subr.mxu0 0.0
        %843 = vmatpush2.xpose.msra.mxu0 0.0
        %844 = vmatprep.subr.mxu0 0.0
        %845 = vmatpush2.xpose.msra.mxu0 0.0
        %846 = vmatprep.subr.mxu0 0.0
        %847 = vmatpush2.xpose.msra.mxu0 0.0
        %848 = vmatprep.subr.mxu0 0.0
        %849 = vmatpush2.xpose.msra.mxu0 0.0
        %850 = vmatprep.mubr.f32.mxu0 0.0
        %v851 = vand.u32 %v780, 4294901760
        %v852 = vsub.f32 %v780, %v851
        %v853 = vand.u32 %v852, 4294901760
        %v854 = vsub.f32 %v852, %v853
        %v855 = vand.u32 %v854, 4294901760
        %856 = vmatmul.mubr.f32.gmra.mxu0 %v855
        %v857 = vpop.f32.mrf.mxu0
        %v858 = vadd.f32 0.0, %v857
        %v859 = vpop.f32.mrf.mxu0
        %860 = vdwg.mxu0
        %861 = vmatprep.subr.mxu0 0.0
        %862 = vmatpush1.xpose.msra.mxu0 0.0
        %863 = vmatprep.subr.mxu0 0.0
        %864 = vmatpush1.xpose.msra.mxu0 0.0
        %865 = vmatprep.subr.mxu0 0.0
        %866 = vmatpush1.xpose.msra.mxu0 0.0
        %867 = vmatprep.subr.mxu0 0.0
        %868 = vmatpush1.xpose.msra.mxu0 0.0
        %869 = vmatprep.subr.mxu0 0.0
        %870 = vmatpush1.xpose.msra.mxu0 0.0
        %871 = vmatprep.subr.mxu0 0.0
        %872 = vmatpush1.xpose.msra.mxu0 0.0
        %873 = vmatprep.subr.mxu0 0.0
        %874 = vmatpush1.xpose.msra.mxu0 0.0
        %875 = vmatprep.subr.mxu0 0.0
        %876 = vmatpush1.xpose.msra.mxu0 0.0
        %877 = vmatprep.subr.mxu0 0.0
        %878 = vmatpush1.xpose.msra.mxu0 0.0
        %879 = vmatprep.subr.mxu0 0.0
        %880 = vmatpush1.xpose.msra.mxu0 0.0
        %881 = vmatprep.subr.mxu0 0.0
        %882 = vmatpush1.xpose.msra.mxu0 0.0
        %883 = vmatprep.subr.mxu0 0.0
        %884 = vmatpush1.xpose.msra.mxu0 0.0
        %885 = vmatprep.subr.mxu0 0.0
        %886 = vmatpush1.xpose.msra.mxu0 0.0
        %887 = vmatprep.subr.mxu0 0.0
        %888 = vmatpush1.xpose.msra.mxu0 0.0
        %889 = vmatprep.subr.mxu0 0.0
        %890 = vmatpush1.xpose.msra.mxu0 0.0
        %891 = vmatprep.subr.mxu0 0.0
        %v892 = vand.u32 %v783, 4294901760
        %v893 = vsub.f32 %v783, %v892
        %v894 = vand.u32 %v893, 4294901760
        %v895 = vsub.f32 %v893, %v894
        %v896 = vand.u32 %v895, 4294901760
        %897 = vmatpush1.xpose.msra.mxu0 %v896
        %898 = vmatprep.subr.mxu0 0.0
        %899 = vmatpush2.xpose.msra.mxu0 0.0
        %900 = vmatprep.subr.mxu0 0.0
        %901 = vmatpush2.xpose.msra.mxu0 0.0
        %902 = vmatprep.subr.mxu0 0.0
        %903 = vmatpush2.xpose.msra.mxu0 0.0
        %904 = vmatprep.subr.mxu0 0.0
        %905 = vmatpush2.xpose.msra.mxu0 0.0
        %906 = vmatprep.subr.mxu0 0.0
        %907 = vmatpush2.xpose.msra.mxu0 0.0
        %908 = vmatprep.subr.mxu0 0.0
        %909 = vmatpush2.xpose.msra.mxu0 0.0
        %910 = vmatprep.subr.mxu0 0.0
        %911 = vmatpush2.xpose.msra.mxu0 0.0
        %912 = vmatprep.subr.mxu0 0.0
        %913 = vmatpush2.xpose.msra.mxu0 0.0
        %914 = vmatprep.subr.mxu0 0.0
        %915 = vmatpush2.xpose.msra.mxu0 0.0
        %916 = vmatprep.subr.mxu0 0.0
        %917 = vmatpush2.xpose.msra.mxu0 0.0
        %918 = vmatprep.subr.mxu0 0.0
        %919 = vmatpush2.xpose.msra.mxu0 0.0
        %920 = vmatprep.subr.mxu0 0.0
        %921 = vmatpush2.xpose.msra.mxu0 0.0
        %922 = vmatprep.subr.mxu0 0.0
        %923 = vmatpush2.xpose.msra.mxu0 0.0
        %924 = vmatprep.subr.mxu0 0.0
        %925 = vmatpush2.xpose.msra.mxu0 0.0
        %926 = vmatprep.subr.mxu0 0.0
        %927 = vmatpush2.xpose.msra.mxu0 0.0
        %928 = vmatprep.subr.mxu0 0.0
        %929 = vmatpush2.xpose.msra.mxu0 0.0
        %930 = vmatprep.mubr.f32.mxu0 0.0
        %v931 = vand.u32 %v780, 4294901760
        %932 = vmatmul.mubr.f32.gmra.mxu0 %v931
        %v933 = vpop.f32.mrf.mxu0
        %v934 = vadd.f32 %v858, %v933
        %v935 = vpop.f32.mrf.mxu0
        %936 = vdwg.mxu0
        %937 = vmatprep.subr.mxu0 0.0
        %938 = vmatpush1.xpose.msra.mxu0 0.0
        %939 = vmatprep.subr.mxu0 0.0
        %940 = vmatpush1.xpose.msra.mxu0 0.0
        %941 = vmatprep.subr.mxu0 0.0
        %942 = vmatpush1.xpose.msra.mxu0 0.0
        %943 = vmatprep.subr.mxu0 0.0
        %944 = vmatpush1.xpose.msra.mxu0 0.0
        %945 = vmatprep.subr.mxu0 0.0
        %946 = vmatpush1.xpose.msra.mxu0 0.0
        %947 = vmatprep.subr.mxu0 0.0
        %948 = vmatpush1.xpose.msra.mxu0 0.0
        %949 = vmatprep.subr.mxu0 0.0
        %950 = vmatpush1.xpose.msra.mxu0 0.0
        %951 = vmatprep.subr.mxu0 0.0
        %952 = vmatpush1.xpose.msra.mxu0 0.0
        %953 = vmatprep.subr.mxu0 0.0
        %954 = vmatpush1.xpose.msra.mxu0 0.0
        %955 = vmatprep.subr.mxu0 0.0
        %956 = vmatpush1.xpose.msra.mxu0 0.0
        %957 = vmatprep.subr.mxu0 0.0
        %958 = vmatpush1.xpose.msra.mxu0 0.0
        %959 = vmatprep.subr.mxu0 0.0
        %960 = vmatpush1.xpose.msra.mxu0 0.0
        %961 = vmatprep.subr.mxu0 0.0
        %962 = vmatpush1.xpose.msra.mxu0 0.0
        %963 = vmatprep.subr.mxu0 0.0
        %964 = vmatpush1.xpose.msra.mxu0 0.0
        %965 = vmatprep.subr.mxu0 0.0
        %966 = vmatpush1.xpose.msra.mxu0 0.0
        %967 = vmatprep.subr.mxu0 0.0
        %v968 = vand.u32 %v783, 4294901760
        %v969 = vsub.f32 %v783, %v968
        %970 = vmatpush1.xpose.msra.mxu0 %v969
        %971 = vmatprep.subr.mxu0 0.0
        %972 = vmatpush2.xpose.msra.mxu0 0.0
        %973 = vmatprep.subr.mxu0 0.0
        %974 = vmatpush2.xpose.msra.mxu0 0.0
        %975 = vmatprep.subr.mxu0 0.0
        %976 = vmatpush2.xpose.msra.mxu0 0.0
        %977 = vmatprep.subr.mxu0 0.0
        %978 = vmatpush2.xpose.msra.mxu0 0.0
        %979 = vmatprep.subr.mxu0 0.0
        %980 = vmatpush2.xpose.msra.mxu0 0.0
        %981 = vmatprep.subr.mxu0 0.0
        %982 = vmatpush2.xpose.msra.mxu0 0.0
        %983 = vmatprep.subr.mxu0 0.0
        %984 = vmatpush2.xpose.msra.mxu0 0.0
        %985 = vmatprep.subr.mxu0 0.0
        %986 = vmatpush2.xpose.msra.mxu0 0.0
        %987 = vmatprep.subr.mxu0 0.0
        %988 = vmatpush2.xpose.msra.mxu0 0.0
        %989 = vmatprep.subr.mxu0 0.0
        %990 = vmatpush2.xpose.msra.mxu0 0.0
        %991 = vmatprep.subr.mxu0 0.0
        %992 = vmatpush2.xpose.msra.mxu0 0.0
        %993 = vmatprep.subr.mxu0 0.0
        %994 = vmatpush2.xpose.msra.mxu0 0.0
        %995 = vmatprep.subr.mxu0 0.0
        %996 = vmatpush2.xpose.msra.mxu0 0.0
        %997 = vmatprep.subr.mxu0 0.0
        %998 = vmatpush2.xpose.msra.mxu0 0.0
        %999 = vmatprep.subr.mxu0 0.0
        %1000 = vmatpush2.xpose.msra.mxu0 0.0
        %1001 = vmatprep.subr.mxu0 0.0
        %1002 = vmatpush2.xpose.msra.mxu0 0.0
        %1003 = vmatprep.mubr.f32.mxu0 0.0
        %v1004 = vand.u32 %v780, 4294901760
        %v1005 = vsub.f32 %v780, %v1004
        %1006 = vmatmul.mubr.f32.gmra.mxu0 %v1005
        %v1007 = vpop.f32.mrf.mxu0
        %v1008 = vadd.f32 %v934, %v1007
        %v1009 = vpop.f32.mrf.mxu0
        %1010 = vdwg.mxu0
        %1011 = vmatprep.subr.mxu0 0.0
        %1012 = vmatpush1.xpose.msra.mxu0 0.0
        %1013 = vmatprep.subr.mxu0 0.0
        %1014 = vmatpush1.xpose.msra.mxu0 0.0
        %1015 = vmatprep.subr.mxu0 0.0
        %1016 = vmatpush1.xpose.msra.mxu0 0.0
        %1017 = vmatprep.subr.mxu0 0.0
        %1018 = vmatpush1.xpose.msra.mxu0 0.0
        %1019 = vmatprep.subr.mxu0 0.0
        %1020 = vmatpush1.xpose.msra.mxu0 0.0
        %1021 = vmatprep.subr.mxu0 0.0
        %1022 = vmatpush1.xpose.msra.mxu0 0.0
        %1023 = vmatprep.subr.mxu0 0.0
        %1024 = vmatpush1.xpose.msra.mxu0 0.0
        %1025 = vmatprep.subr.mxu0 0.0
        %1026 = vmatpush1.xpose.msra.mxu0 0.0
        %1027 = vmatprep.subr.mxu0 0.0
        %1028 = vmatpush1.xpose.msra.mxu0 0.0
        %1029 = vmatprep.subr.mxu0 0.0
        %1030 = vmatpush1.xpose.msra.mxu0 0.0
        %1031 = vmatprep.subr.mxu0 0.0
        %1032 = vmatpush1.xpose.msra.mxu0 0.0
        %1033 = vmatprep.subr.mxu0 0.0
        %1034 = vmatpush1.xpose.msra.mxu0 0.0
        %1035 = vmatprep.subr.mxu0 0.0
        %1036 = vmatpush1.xpose.msra.mxu0 0.0
        %1037 = vmatprep.subr.mxu0 0.0
        %1038 = vmatpush1.xpose.msra.mxu0 0.0
        %1039 = vmatprep.subr.mxu0 0.0
        %1040 = vmatpush1.xpose.msra.mxu0 0.0
        %1041 = vmatprep.subr.mxu0 0.0
        %v1042 = vand.u32 %v783, 4294901760
        %1043 = vmatpush1.xpose.msra.mxu0 %v1042
        %1044 = vmatprep.subr.mxu0 0.0
        %1045 = vmatpush2.xpose.msra.mxu0 0.0
        %1046 = vmatprep.subr.mxu0 0.0
        %1047 = vmatpush2.xpose.msra.mxu0 0.0
        %1048 = vmatprep.subr.mxu0 0.0
        %1049 = vmatpush2.xpose.msra.mxu0 0.0
        %1050 = vmatprep.subr.mxu0 0.0
        %1051 = vmatpush2.xpose.msra.mxu0 0.0
        %1052 = vmatprep.subr.mxu0 0.0
        %1053 = vmatpush2.xpose.msra.mxu0 0.0
        %1054 = vmatprep.subr.mxu0 0.0
        %1055 = vmatpush2.xpose.msra.mxu0 0.0
        %1056 = vmatprep.subr.mxu0 0.0
        %1057 = vmatpush2.xpose.msra.mxu0 0.0
        %1058 = vmatprep.subr.mxu0 0.0
        %1059 = vmatpush2.xpose.msra.mxu0 0.0
        %1060 = vmatprep.subr.mxu0 0.0
        %1061 = vmatpush2.xpose.msra.mxu0 0.0
        %1062 = vmatprep.subr.mxu0 0.0
        %1063 = vmatpush2.xpose.msra.mxu0 0.0
        %1064 = vmatprep.subr.mxu0 0.0
        %1065 = vmatpush2.xpose.msra.mxu0 0.0
        %1066 = vmatprep.subr.mxu0 0.0
        %1067 = vmatpush2.xpose.msra.mxu0 0.0
        %1068 = vmatprep.subr.mxu0 0.0
        %1069 = vmatpush2.xpose.msra.mxu0 0.0
        %1070 = vmatprep.subr.mxu0 0.0
        %1071 = vmatpush2.xpose.msra.mxu0 0.0
        %1072 = vmatprep.subr.mxu0 0.0
        %1073 = vmatpush2.xpose.msra.mxu0 0.0
        %1074 = vmatprep.subr.mxu0 0.0
        %1075 = vmatpush2.xpose.msra.mxu0 0.0
        %1076 = vmatprep.mubr.f32.mxu0 0.0
        %v1077 = vand.u32 %v780, 4294901760
        %v1078 = vsub.f32 %v780, %v1077
        %v1079 = vand.u32 %v1078, 4294901760
        %1080 = vmatmul.mubr.f32.gmra.mxu0 %v1079
        %v1081 = vpop.f32.mrf.mxu0
        %v1082 = vadd.f32 %v1008, %v1081
        %v1083 = vpop.f32.mrf.mxu0
        %1084 = vdwg.mxu0
        %1085 = vmatprep.subr.mxu0 0.0
        %1086 = vmatpush1.xpose.msra.mxu0 0.0
        %1087 = vmatprep.subr.mxu0 0.0
        %1088 = vmatpush1.xpose.msra.mxu0 0.0
        %1089 = vmatprep.subr.mxu0 0.0
        %1090 = vmatpush1.xpose.msra.mxu0 0.0
        %1091 = vmatprep.subr.mxu0 0.0
        %1092 = vmatpush1.xpose.msra.mxu0 0.0
        %1093 = vmatprep.subr.mxu0 0.0
        %1094 = vmatpush1.xpose.msra.mxu0 0.0
        %1095 = vmatprep.subr.mxu0 0.0
        %1096 = vmatpush1.xpose.msra.mxu0 0.0
        %1097 = vmatprep.subr.mxu0 0.0
        %1098 = vmatpush1.xpose.msra.mxu0 0.0
        %1099 = vmatprep.subr.mxu0 0.0
        %1100 = vmatpush1.xpose.msra.mxu0 0.0
        %1101 = vmatprep.subr.mxu0 0.0
        %1102 = vmatpush1.xpose.msra.mxu0 0.0
        %1103 = vmatprep.subr.mxu0 0.0
        %1104 = vmatpush1.xpose.msra.mxu0 0.0
        %1105 = vmatprep.subr.mxu0 0.0
        %1106 = vmatpush1.xpose.msra.mxu0 0.0
        %1107 = vmatprep.subr.mxu0 0.0
        %1108 = vmatpush1.xpose.msra.mxu0 0.0
        %1109 = vmatprep.subr.mxu0 0.0
        %1110 = vmatpush1.xpose.msra.mxu0 0.0
        %1111 = vmatprep.subr.mxu0 0.0
        %1112 = vmatpush1.xpose.msra.mxu0 0.0
        %1113 = vmatprep.subr.mxu0 0.0
        %1114 = vmatpush1.xpose.msra.mxu0 0.0
        %1115 = vmatprep.subr.mxu0 0.0
        %v1116 = vand.u32 %v783, 4294901760
        %v1117 = vsub.f32 %v783, %v1116
        %v1118 = vand.u32 %v1117, 4294901760
        %1119 = vmatpush1.xpose.msra.mxu0 %v1118
        %1120 = vmatprep.subr.mxu0 0.0
        %1121 = vmatpush2.xpose.msra.mxu0 0.0
        %1122 = vmatprep.subr.mxu0 0.0
        %1123 = vmatpush2.xpose.msra.mxu0 0.0
        %1124 = vmatprep.subr.mxu0 0.0
        %1125 = vmatpush2.xpose.msra.mxu0 0.0
        %1126 = vmatprep.subr.mxu0 0.0
        %1127 = vmatpush2.xpose.msra.mxu0 0.0
        %1128 = vmatprep.subr.mxu0 0.0
        %1129 = vmatpush2.xpose.msra.mxu0 0.0
        %1130 = vmatprep.subr.mxu0 0.0
        %1131 = vmatpush2.xpose.msra.mxu0 0.0
        %1132 = vmatprep.subr.mxu0 0.0
        %1133 = vmatpush2.xpose.msra.mxu0 0.0
        %1134 = vmatprep.subr.mxu0 0.0
        %1135 = vmatpush2.xpose.msra.mxu0 0.0
        %1136 = vmatprep.subr.mxu0 0.0
        %1137 = vmatpush2.xpose.msra.mxu0 0.0
        %1138 = vmatprep.subr.mxu0 0.0
        %1139 = vmatpush2.xpose.msra.mxu0 0.0
        %1140 = vmatprep.subr.mxu0 0.0
        %1141 = vmatpush2.xpose.msra.mxu0 0.0
        %1142 = vmatprep.subr.mxu0 0.0
        %1143 = vmatpush2.xpose.msra.mxu0 0.0
        %1144 = vmatprep.subr.mxu0 0.0
        %1145 = vmatpush2.xpose.msra.mxu0 0.0
        %1146 = vmatprep.subr.mxu0 0.0
        %1147 = vmatpush2.xpose.msra.mxu0 0.0
        %1148 = vmatprep.subr.mxu0 0.0
        %1149 = vmatpush2.xpose.msra.mxu0 0.0
        %1150 = vmatprep.subr.mxu0 0.0
        %1151 = vmatpush2.xpose.msra.mxu0 0.0
        %1152 = vmatprep.mubr.f32.mxu0 0.0
        %v1153 = vand.u32 %v780, 4294901760
        %1154 = vmatmul.mubr.f32.gmra.mxu0 %v1153
        %v1155 = vpop.f32.mrf.mxu0
        %v1156 = vadd.f32 %v1082, %v1155
        %v1157 = vpop.f32.mrf.mxu0
        %1158 = vdwg.mxu0
        %1159 = vmatprep.subr.mxu0 0.0
        %1160 = vmatpush1.xpose.msra.mxu0 0.0
        %1161 = vmatprep.subr.mxu0 0.0
        %1162 = vmatpush1.xpose.msra.mxu0 0.0
        %1163 = vmatprep.subr.mxu0 0.0
        %1164 = vmatpush1.xpose.msra.mxu0 0.0
        %1165 = vmatprep.subr.mxu0 0.0
        %1166 = vmatpush1.xpose.msra.mxu0 0.0
        %1167 = vmatprep.subr.mxu0 0.0
        %1168 = vmatpush1.xpose.msra.mxu0 0.0
        %1169 = vmatprep.subr.mxu0 0.0
        %1170 = vmatpush1.xpose.msra.mxu0 0.0
        %1171 = vmatprep.subr.mxu0 0.0
        %1172 = vmatpush1.xpose.msra.mxu0 0.0
        %1173 = vmatprep.subr.mxu0 0.0
        %1174 = vmatpush1.xpose.msra.mxu0 0.0
        %1175 = vmatprep.subr.mxu0 0.0
        %1176 = vmatpush1.xpose.msra.mxu0 0.0
        %1177 = vmatprep.subr.mxu0 0.0
        %1178 = vmatpush1.xpose.msra.mxu0 0.0
        %1179 = vmatprep.subr.mxu0 0.0
        %1180 = vmatpush1.xpose.msra.mxu0 0.0
        %1181 = vmatprep.subr.mxu0 0.0
        %1182 = vmatpush1.xpose.msra.mxu0 0.0
        %1183 = vmatprep.subr.mxu0 0.0
        %1184 = vmatpush1.xpose.msra.mxu0 0.0
        %1185 = vmatprep.subr.mxu0 0.0
        %1186 = vmatpush1.xpose.msra.mxu0 0.0
        %1187 = vmatprep.subr.mxu0 0.0
        %1188 = vmatpush1.xpose.msra.mxu0 0.0
        %1189 = vmatprep.subr.mxu0 0.0
        %v1190 = vand.u32 %v783, 4294901760
        %1191 = vmatpush1.xpose.msra.mxu0 %v1190
        %1192 = vmatprep.subr.mxu0 0.0
        %1193 = vmatpush2.xpose.msra.mxu0 0.0
        %1194 = vmatprep.subr.mxu0 0.0
        %1195 = vmatpush2.xpose.msra.mxu0 0.0
        %1196 = vmatprep.subr.mxu0 0.0
        %1197 = vmatpush2.xpose.msra.mxu0 0.0
        %1198 = vmatprep.subr.mxu0 0.0
        %1199 = vmatpush2.xpose.msra.mxu0 0.0
        %1200 = vmatprep.subr.mxu0 0.0
        %1201 = vmatpush2.xpose.msra.mxu0 0.0
        %1202 = vmatprep.subr.mxu0 0.0
        %1203 = vmatpush2.xpose.msra.mxu0 0.0
        %1204 = vmatprep.subr.mxu0 0.0
        %1205 = vmatpush2.xpose.msra.mxu0 0.0
        %1206 = vmatprep.subr.mxu0 0.0
        %1207 = vmatpush2.xpose.msra.mxu0 0.0
        %1208 = vmatprep.subr.mxu0 0.0
        %1209 = vmatpush2.xpose.msra.mxu0 0.0
        %1210 = vmatprep.subr.mxu0 0.0
        %1211 = vmatpush2.xpose.msra.mxu0 0.0
        %1212 = vmatprep.subr.mxu0 0.0
        %1213 = vmatpush2.xpose.msra.mxu0 0.0
        %1214 = vmatprep.subr.mxu0 0.0
        %1215 = vmatpush2.xpose.msra.mxu0 0.0
        %1216 = vmatprep.subr.mxu0 0.0
        %1217 = vmatpush2.xpose.msra.mxu0 0.0
        %1218 = vmatprep.subr.mxu0 0.0
        %1219 = vmatpush2.xpose.msra.mxu0 0.0
        %1220 = vmatprep.subr.mxu0 0.0
        %1221 = vmatpush2.xpose.msra.mxu0 0.0
        %1222 = vmatprep.subr.mxu0 0.0
        %1223 = vmatpush2.xpose.msra.mxu0 0.0
        %1224 = vmatprep.mubr.f32.mxu0 0.0
        %v1225 = vand.u32 %v780, 4294901760
        %1226 = vmatmul.mubr.f32.gmra.mxu0 %v1225
        %v1227 = vpop.f32.mrf.mxu0
        %v1228 = vadd.f32 %v1156, %v1227
        %v1229 = vpop.f32.mrf.mxu0
        %1230 = vdwg.mxu0
        %v1231 = vadd.f32 %v774, %v1228
        %v1232 = vmax.f32 %v1231, 0.0
        %v1233 = vld [vmem:[%s4] sm:$0xff]
        %v1234 = vld [vmem:[%s4 + $0x8] sm:$0xff]
        %v1235 = vld [vmem:[%s4 + $0x10] sm:$0xff]
        %v1236 = vld [vmem:[%s4 + $0x18] sm:$0xff]
        %v1237 = vld [vmem:[%s4 + $0x20] sm:$0xff]
        %v1238 = vld [vmem:[%s4 + $0x28] sm:$0xff]
        %v1239 = vld [vmem:[%s4 + $0x30] sm:$0xff]
        %v1240 = vld [vmem:[%s4 + $0x38] sm:$0xff]
        %v1241 = vld [vmem:[%s7] sm:$0x3]
        %v1243 = vlaneseq
        %v1244 = vshrl.u32 %v1243, 7
        %v1245 = vsub.s32 0, %v1244
        %v1246 = vrot.slane %v1241, %v1245
        %v1247 = vlaneseq
        %v1248 = vshrl.u32 %v1247, 7
        %v1249 = vsub.s32 1, %v1248
        %v1250 = vrot.slane %v1241, %v1249
        %vm1253 = vcmask 261120
        %v1255 = vsel %vm1253, %v764, 0
        %1257 = vmatprep.subr.mxu0 0.0
        %1258 = vmatpush1.msra.mxu0 0.0
        %1259 = vmatprep.subr.mxu0 0.0
        %1260 = vmatpush1.msra.mxu0 0.0
        %1261 = vmatprep.subr.mxu0 0.0
        %1262 = vmatpush1.msra.mxu0 0.0
        %1263 = vmatprep.subr.mxu0 0.0
        %1264 = vmatpush1.msra.mxu0 0.0
        %1265 = vmatprep.subr.mxu0 0.0
        %1266 = vmatpush1.msra.mxu0 0.0
        %1267 = vmatprep.subr.mxu0 0.0
        %1268 = vmatpush1.msra.mxu0 0.0
        %1269 = vmatprep.subr.mxu0 0.0
        %1270 = vmatpush1.msra.mxu0 0.0
        %1271 = vmatprep.subr.mxu0 0.0
        %1272 = vmatpush1.msra.mxu0 0.0
        %1273 = vmatprep.subr.mxu0 0.0
        %1274 = vmatpush1.msra.mxu0 0.0
        %1275 = vmatprep.subr.mxu0 0.0
        %1276 = vmatpush1.msra.mxu0 0.0
        %1277 = vmatprep.subr.mxu0 0.0
        %1278 = vmatpush1.msra.mxu0 0.0
        %1279 = vmatprep.subr.mxu0 0.0
        %1280 = vmatpush1.msra.mxu0 0.0
        %v1281 = vand.u32 %v1240, 4294901760
        %1282 = vmatprep.subr.mxu0 %v1281
        %v1283 = vand.u32 %v1239, 4294901760
        %1284 = vmatpush1.msra.mxu0 %v1283
        %v1285 = vand.u32 %v1238, 4294901760
        %1286 = vmatprep.subr.mxu0 %v1285
        %v1287 = vand.u32 %v1237, 4294901760
        %1288 = vmatpush1.msra.mxu0 %v1287
        %v1289 = vand.u32 %v1236, 4294901760
        %1290 = vmatprep.subr.mxu0 %v1289
        %v1291 = vand.u32 %v1235, 4294901760
        %1292 = vmatpush1.msra.mxu0 %v1291
        %v1293 = vand.u32 %v1234, 4294901760
        %1294 = vmatprep.subr.mxu0 %v1293
        %v1295 = vand.u32 %v1233, 4294901760
        %1296 = vmatpush1.msra.mxu0 %v1295
        %1297 = vmatprep.subr.mxu0 0.0
        %1298 = vmatpush2.msra.mxu0 0.0
        %1299 = vmatprep.subr.mxu0 0.0
        %1300 = vmatpush2.msra.mxu0 0.0
        %1301 = vmatprep.subr.mxu0 0.0
        %1302 = vmatpush2.msra.mxu0 0.0
        %1303 = vmatprep.subr.mxu0 0.0
        %1304 = vmatpush2.msra.mxu0 0.0
        %1305 = vmatprep.subr.mxu0 0.0
        %1306 = vmatpush2.msra.mxu0 0.0
        %1307 = vmatprep.subr.mxu0 0.0
        %1308 = vmatpush2.msra.mxu0 0.0
        %1309 = vmatprep.subr.mxu0 0.0
        %1310 = vmatpush2.msra.mxu0 0.0
        %1311 = vmatprep.subr.mxu0 0.0
        %1312 = vmatpush2.msra.mxu0 0.0
        %1313 = vmatprep.subr.mxu0 0.0
        %1314 = vmatpush2.msra.mxu0 0.0
        %1315 = vmatprep.subr.mxu0 0.0
        %1316 = vmatpush2.msra.mxu0 0.0
        %1317 = vmatprep.subr.mxu0 0.0
        %1318 = vmatpush2.msra.mxu0 0.0
        %1319 = vmatprep.subr.mxu0 0.0
        %1320 = vmatpush2.msra.mxu0 0.0
        %1321 = vmatprep.subr.mxu0 0.0
        %1322 = vmatpush2.msra.mxu0 0.0
        %1323 = vmatprep.subr.mxu0 0.0
        %1324 = vmatpush2.msra.mxu0 0.0
        %1325 = vmatprep.subr.mxu0 0.0
        %1326 = vmatpush2.msra.mxu0 0.0
        %1327 = vmatprep.subr.mxu0 0.0
        %1328 = vmatpush2.msra.mxu0 0.0
        %1329 = vmatprep.mubr.f32.mxu0 0.0
        %v1330 = vand.u32 %v1255, 4294901760
        %v1331 = vsub.f32 %v1255, %v1330
        %v1332 = vand.u32 %v1331, 4294901760
        %v1333 = vsub.f32 %v1331, %v1332
        %v1334 = vand.u32 %v1333, 4294901760
        %1335 = vmatmul.mubr.f32.gmra.mxu0 %v1334
        %v1336 = vpop.f32.mrf.mxu0
        %v1337 = vadd.f32 %v1246, %v1336
        %v1338 = vpop.f32.mrf.mxu0
        %v1339 = vadd.f32 %v1250, %v1338
        %1340 = vdwg.mxu0
        %1341 = vmatprep.subr.mxu0 0.0
        %1342 = vmatpush1.msra.mxu0 0.0
        %1343 = vmatprep.subr.mxu0 0.0
        %1344 = vmatpush1.msra.mxu0 0.0
        %1345 = vmatprep.subr.mxu0 0.0
        %1346 = vmatpush1.msra.mxu0 0.0
        %1347 = vmatprep.subr.mxu0 0.0
        %1348 = vmatpush1.msra.mxu0 0.0
        %1349 = vmatprep.subr.mxu0 0.0
        %1350 = vmatpush1.msra.mxu0 0.0
        %1351 = vmatprep.subr.mxu0 0.0
        %1352 = vmatpush1.msra.mxu0 0.0
        %1353 = vmatprep.subr.mxu0 0.0
        %1354 = vmatpush1.msra.mxu0 0.0
        %1355 = vmatprep.subr.mxu0 0.0
        %1356 = vmatpush1.msra.mxu0 0.0
        %1357 = vmatprep.subr.mxu0 0.0
        %1358 = vmatpush1.msra.mxu0 0.0
        %1359 = vmatprep.subr.mxu0 0.0
        %1360 = vmatpush1.msra.mxu0 0.0
        %1361 = vmatprep.subr.mxu0 0.0
        %1362 = vmatpush1.msra.mxu0 0.0
        %1363 = vmatprep.subr.mxu0 0.0
        %1364 = vmatpush1.msra.mxu0 0.0
        %v1365 = vand.u32 %v1240, 4294901760
        %v1366 = vsub.f32 %v1240, %v1365
        %v1367 = vand.u32 %v1366, 4294901760
        %v1368 = vsub.f32 %v1366, %v1367
        %v1369 = vand.u32 %v1368, 4294901760
        %1370 = vmatprep.subr.mxu0 %v1369
        %v1371 = vand.u32 %v1239, 4294901760
        %v1372 = vsub.f32 %v1239, %v1371
        %v1373 = vand.u32 %v1372, 4294901760
        %v1374 = vsub.f32 %v1372, %v1373
        %v1375 = vand.u32 %v1374, 4294901760
        %1376 = vmatpush1.msra.mxu0 %v1375
        %v1377 = vand.u32 %v1238, 4294901760
        %v1378 = vsub.f32 %v1238, %v1377
        %v1379 = vand.u32 %v1378, 4294901760
        %v1380 = vsub.f32 %v1378, %v1379
        %v1381 = vand.u32 %v1380, 4294901760
        %1382 = vmatprep.subr.mxu0 %v1381
        %v1383 = vand.u32 %v1237, 4294901760
        %v1384 = vsub.f32 %v1237, %v1383
        %v1385 = vand.u32 %v1384, 4294901760
        %v1386 = vsub.f32 %v1384, %v1385
        %v1387 = vand.u32 %v1386, 4294901760
        %1388 = vmatpush1.msra.mxu0 %v1387
        %v1389 = vand.u32 %v1236, 4294901760
        %v1390 = vsub.f32 %v1236, %v1389
        %v1391 = vand.u32 %v1390, 4294901760
        %v1392 = vsub.f32 %v1390, %v1391
        %v1393 = vand.u32 %v1392, 4294901760
        %1394 = vmatprep.subr.mxu0 %v1393
        %v1395 = vand.u32 %v1235, 4294901760
        %v1396 = vsub.f32 %v1235, %v1395
        %v1397 = vand.u32 %v1396, 4294901760
        %v1398 = vsub.f32 %v1396, %v1397
        %v1399 = vand.u32 %v1398, 4294901760
        %1400 = vmatpush1.msra.mxu0 %v1399
        %v1401 = vand.u32 %v1234, 4294901760
        %v1402 = vsub.f32 %v1234, %v1401
        %v1403 = vand.u32 %v1402, 4294901760
        %v1404 = vsub.f32 %v1402, %v1403
        %v1405 = vand.u32 %v1404, 4294901760
        %1406 = vmatprep.subr.mxu0 %v1405
        %v1407 = vand.u32 %v1233, 4294901760
        %v1408 = vsub.f32 %v1233, %v1407
        %v1409 = vand.u32 %v1408, 4294901760
        %v1410 = vsub.f32 %v1408, %v1409
        %v1411 = vand.u32 %v1410, 4294901760
        %1412 = vmatpush1.msra.mxu0 %v1411
        %1413 = vmatprep.subr.mxu0 0.0
        %1414 = vmatpush2.msra.mxu0 0.0
        %1415 = vmatprep.subr.mxu0 0.0
        %1416 = vmatpush2.msra.mxu0 0.0
        %1417 = vmatprep.subr.mxu0 0.0
        %1418 = vmatpush2.msra.mxu0 0.0
        %1419 = vmatprep.subr.mxu0 0.0
        %1420 = vmatpush2.msra.mxu0 0.0
        %1421 = vmatprep.subr.mxu0 0.0
        %1422 = vmatpush2.msra.mxu0 0.0
        %1423 = vmatprep.subr.mxu0 0.0
        %1424 = vmatpush2.msra.mxu0 0.0
        %1425 = vmatprep.subr.mxu0 0.0
        %1426 = vmatpush2.msra.mxu0 0.0
        %1427 = vmatprep.subr.mxu0 0.0
        %1428 = vmatpush2.msra.mxu0 0.0
        %1429 = vmatprep.subr.mxu0 0.0
        %1430 = vmatpush2.msra.mxu0 0.0
        %1431 = vmatprep.subr.mxu0 0.0
        %1432 = vmatpush2.msra.mxu0 0.0
        %1433 = vmatprep.subr.mxu0 0.0
        %1434 = vmatpush2.msra.mxu0 0.0
        %1435 = vmatprep.subr.mxu0 0.0
        %1436 = vmatpush2.msra.mxu0 0.0
        %1437 = vmatprep.subr.mxu0 0.0
        %1438 = vmatpush2.msra.mxu0 0.0
        %1439 = vmatprep.subr.mxu0 0.0
        %1440 = vmatpush2.msra.mxu0 0.0
        %1441 = vmatprep.subr.mxu0 0.0
        %1442 = vmatpush2.msra.mxu0 0.0
        %1443 = vmatprep.subr.mxu0 0.0
        %1444 = vmatpush2.msra.mxu0 0.0
        %1445 = vmatprep.mubr.f32.mxu0 0.0
        %v1446 = vand.u32 %v1255, 4294901760
        %1447 = vmatmul.mubr.f32.gmra.mxu0 %v1446
        %v1448 = vpop.f32.mrf.mxu0
        %v1449 = vadd.f32 %v1337, %v1448
        %v1450 = vpop.f32.mrf.mxu0
        %v1451 = vadd.f32 %v1339, %v1450
        %1452 = vdwg.mxu0
        %1453 = vmatprep.subr.mxu0 0.0
        %1454 = vmatpush1.msra.mxu0 0.0
        %1455 = vmatprep.subr.mxu0 0.0
        %1456 = vmatpush1.msra.mxu0 0.0
        %1457 = vmatprep.subr.mxu0 0.0
        %1458 = vmatpush1.msra.mxu0 0.0
        %1459 = vmatprep.subr.mxu0 0.0
        %1460 = vmatpush1.msra.mxu0 0.0
        %1461 = vmatprep.subr.mxu0 0.0
        %1462 = vmatpush1.msra.mxu0 0.0
        %1463 = vmatprep.subr.mxu0 0.0
        %1464 = vmatpush1.msra.mxu0 0.0
        %1465 = vmatprep.subr.mxu0 0.0
        %1466 = vmatpush1.msra.mxu0 0.0
        %1467 = vmatprep.subr.mxu0 0.0
        %1468 = vmatpush1.msra.mxu0 0.0
        %1469 = vmatprep.subr.mxu0 0.0
        %1470 = vmatpush1.msra.mxu0 0.0
        %1471 = vmatprep.subr.mxu0 0.0
        %1472 = vmatpush1.msra.mxu0 0.0
        %1473 = vmatprep.subr.mxu0 0.0
        %1474 = vmatpush1.msra.mxu0 0.0
        %1475 = vmatprep.subr.mxu0 0.0
        %1476 = vmatpush1.msra.mxu0 0.0
        %v1477 = vand.u32 %v1240, 4294901760
        %v1478 = vsub.f32 %v1240, %v1477
        %1479 = vmatprep.subr.mxu0 %v1478
        %v1480 = vand.u32 %v1239, 4294901760
        %v1481 = vsub.f32 %v1239, %v1480
        %1482 = vmatpush1.msra.mxu0 %v1481
        %v1483 = vand.u32 %v1238, 4294901760
        %v1484 = vsub.f32 %v1238, %v1483
        %1485 = vmatprep.subr.mxu0 %v1484
        %v1486 = vand.u32 %v1237, 4294901760
        %v1487 = vsub.f32 %v1237, %v1486
        %1488 = vmatpush1.msra.mxu0 %v1487
        %v1489 = vand.u32 %v1236, 4294901760
        %v1490 = vsub.f32 %v1236, %v1489
        %1491 = vmatprep.subr.mxu0 %v1490
        %v1492 = vand.u32 %v1235, 4294901760
        %v1493 = vsub.f32 %v1235, %v1492
        %1494 = vmatpush1.msra.mxu0 %v1493
        %v1495 = vand.u32 %v1234, 4294901760
        %v1496 = vsub.f32 %v1234, %v1495
        %1497 = vmatprep.subr.mxu0 %v1496
        %v1498 = vand.u32 %v1233, 4294901760
        %v1499 = vsub.f32 %v1233, %v1498
        %1500 = vmatpush1.msra.mxu0 %v1499
        %1501 = vmatprep.subr.mxu0 0.0
        %1502 = vmatpush2.msra.mxu0 0.0
        %1503 = vmatprep.subr.mxu0 0.0
        %1504 = vmatpush2.msra.mxu0 0.0
        %1505 = vmatprep.subr.mxu0 0.0
        %1506 = vmatpush2.msra.mxu0 0.0
        %1507 = vmatprep.subr.mxu0 0.0
        %1508 = vmatpush2.msra.mxu0 0.0
        %1509 = vmatprep.subr.mxu0 0.0
        %1510 = vmatpush2.msra.mxu0 0.0
        %1511 = vmatprep.subr.mxu0 0.0
        %1512 = vmatpush2.msra.mxu0 0.0
        %1513 = vmatprep.subr.mxu0 0.0
        %1514 = vmatpush2.msra.mxu0 0.0
        %1515 = vmatprep.subr.mxu0 0.0
        %1516 = vmatpush2.msra.mxu0 0.0
        %1517 = vmatprep.subr.mxu0 0.0
        %1518 = vmatpush2.msra.mxu0 0.0
        %1519 = vmatprep.subr.mxu0 0.0
        %1520 = vmatpush2.msra.mxu0 0.0
        %1521 = vmatprep.subr.mxu0 0.0
        %1522 = vmatpush2.msra.mxu0 0.0
        %1523 = vmatprep.subr.mxu0 0.0
        %1524 = vmatpush2.msra.mxu0 0.0
        %1525 = vmatprep.subr.mxu0 0.0
        %1526 = vmatpush2.msra.mxu0 0.0
        %1527 = vmatprep.subr.mxu0 0.0
        %1528 = vmatpush2.msra.mxu0 0.0
        %1529 = vmatprep.subr.mxu0 0.0
        %1530 = vmatpush2.msra.mxu0 0.0
        %1531 = vmatprep.subr.mxu0 0.0
        %1532 = vmatpush2.msra.mxu0 0.0
        %1533 = vmatprep.mubr.f32.mxu0 0.0
        %v1534 = vand.u32 %v1255, 4294901760
        %v1535 = vsub.f32 %v1255, %v1534
        %1536 = vmatmul.mubr.f32.gmra.mxu0 %v1535
        %v1537 = vpop.f32.mrf.mxu0
        %v1538 = vadd.f32 %v1449, %v1537
        %v1539 = vpop.f32.mrf.mxu0
        %v1540 = vadd.f32 %v1451, %v1539
        %1541 = vdwg.mxu0
        %1542 = vmatprep.subr.mxu0 0.0
        %1543 = vmatpush1.msra.mxu0 0.0
        %1544 = vmatprep.subr.mxu0 0.0
        %1545 = vmatpush1.msra.mxu0 0.0
        %1546 = vmatprep.subr.mxu0 0.0
        %1547 = vmatpush1.msra.mxu0 0.0
        %1548 = vmatprep.subr.mxu0 0.0
        %1549 = vmatpush1.msra.mxu0 0.0
        %1550 = vmatprep.subr.mxu0 0.0
        %1551 = vmatpush1.msra.mxu0 0.0
        %1552 = vmatprep.subr.mxu0 0.0
        %1553 = vmatpush1.msra.mxu0 0.0
        %1554 = vmatprep.subr.mxu0 0.0
        %1555 = vmatpush1.msra.mxu0 0.0
        %1556 = vmatprep.subr.mxu0 0.0
        %1557 = vmatpush1.msra.mxu0 0.0
        %1558 = vmatprep.subr.mxu0 0.0
        %1559 = vmatpush1.msra.mxu0 0.0
        %1560 = vmatprep.subr.mxu0 0.0
        %1561 = vmatpush1.msra.mxu0 0.0
        %1562 = vmatprep.subr.mxu0 0.0
        %1563 = vmatpush1.msra.mxu0 0.0
        %1564 = vmatprep.subr.mxu0 0.0
        %1565 = vmatpush1.msra.mxu0 0.0
        %v1566 = vand.u32 %v1240, 4294901760
        %1567 = vmatprep.subr.mxu0 %v1566
        %v1568 = vand.u32 %v1239, 4294901760
        %1569 = vmatpush1.msra.mxu0 %v1568
        %v1570 = vand.u32 %v1238, 4294901760
        %1571 = vmatprep.subr.mxu0 %v1570
        %v1572 = vand.u32 %v1237, 4294901760
        %1573 = vmatpush1.msra.mxu0 %v1572
        %v1574 = vand.u32 %v1236, 4294901760
        %1575 = vmatprep.subr.mxu0 %v1574
        %v1576 = vand.u32 %v1235, 4294901760
        %1577 = vmatpush1.msra.mxu0 %v1576
        %v1578 = vand.u32 %v1234, 4294901760
        %1579 = vmatprep.subr.mxu0 %v1578
        %v1580 = vand.u32 %v1233, 4294901760
        %1581 = vmatpush1.msra.mxu0 %v1580
        %1582 = vmatprep.subr.mxu0 0.0
        %1583 = vmatpush2.msra.mxu0 0.0
        %1584 = vmatprep.subr.mxu0 0.0
        %1585 = vmatpush2.msra.mxu0 0.0
        %1586 = vmatprep.subr.mxu0 0.0
        %1587 = vmatpush2.msra.mxu0 0.0
        %1588 = vmatprep.subr.mxu0 0.0
        %1589 = vmatpush2.msra.mxu0 0.0
        %1590 = vmatprep.subr.mxu0 0.0
        %1591 = vmatpush2.msra.mxu0 0.0
        %1592 = vmatprep.subr.mxu0 0.0
        %1593 = vmatpush2.msra.mxu0 0.0
        %1594 = vmatprep.subr.mxu0 0.0
        %1595 = vmatpush2.msra.mxu0 0.0
        %1596 = vmatprep.subr.mxu0 0.0
        %1597 = vmatpush2.msra.mxu0 0.0
        %1598 = vmatprep.subr.mxu0 0.0
        %1599 = vmatpush2.msra.mxu0 0.0
        %1600 = vmatprep.subr.mxu0 0.0
        %1601 = vmatpush2.msra.mxu0 0.0
        %1602 = vmatprep.subr.mxu0 0.0
        %1603 = vmatpush2.msra.mxu0 0.0
        %1604 = vmatprep.subr.mxu0 0.0
        %1605 = vmatpush2.msra.mxu0 0.0
        %1606 = vmatprep.subr.mxu0 0.0
        %1607 = vmatpush2.msra.mxu0 0.0
        %1608 = vmatprep.subr.mxu0 0.0
        %1609 = vmatpush2.msra.mxu0 0.0
        %1610 = vmatprep.subr.mxu0 0.0
        %1611 = vmatpush2.msra.mxu0 0.0
        %1612 = vmatprep.subr.mxu0 0.0
        %1613 = vmatpush2.msra.mxu0 0.0
        %1614 = vmatprep.mubr.f32.mxu0 0.0
        %v1615 = vand.u32 %v1255, 4294901760
        %v1616 = vsub.f32 %v1255, %v1615
        %v1617 = vand.u32 %v1616, 4294901760
        %1618 = vmatmul.mubr.f32.gmra.mxu0 %v1617
        %v1619 = vpop.f32.mrf.mxu0
        %v1620 = vadd.f32 %v1538, %v1619
        %v1621 = vpop.f32.mrf.mxu0
        %v1622 = vadd.f32 %v1540, %v1621
        %1623 = vdwg.mxu0
        %1624 = vmatprep.subr.mxu0 0.0
        %1625 = vmatpush1.msra.mxu0 0.0
        %1626 = vmatprep.subr.mxu0 0.0
        %1627 = vmatpush1.msra.mxu0 0.0
        %1628 = vmatprep.subr.mxu0 0.0
        %1629 = vmatpush1.msra.mxu0 0.0
        %1630 = vmatprep.subr.mxu0 0.0
        %1631 = vmatpush1.msra.mxu0 0.0
        %1632 = vmatprep.subr.mxu0 0.0
        %1633 = vmatpush1.msra.mxu0 0.0
        %1634 = vmatprep.subr.mxu0 0.0
        %1635 = vmatpush1.msra.mxu0 0.0
        %1636 = vmatprep.subr.mxu0 0.0
        %1637 = vmatpush1.msra.mxu0 0.0
        %1638 = vmatprep.subr.mxu0 0.0
        %1639 = vmatpush1.msra.mxu0 0.0
        %1640 = vmatprep.subr.mxu0 0.0
        %1641 = vmatpush1.msra.mxu0 0.0
        %1642 = vmatprep.subr.mxu0 0.0
        %1643 = vmatpush1.msra.mxu0 0.0
        %1644 = vmatprep.subr.mxu0 0.0
        %1645 = vmatpush1.msra.mxu0 0.0
        %1646 = vmatprep.subr.mxu0 0.0
        %1647 = vmatpush1.msra.mxu0 0.0
        %v1648 = vand.u32 %v1240, 4294901760
        %v1649 = vsub.f32 %v1240, %v1648
        %v1650 = vand.u32 %v1649, 4294901760
        %1651 = vmatprep.subr.mxu0 %v1650
        %v1652 = vand.u32 %v1239, 4294901760
        %v1653 = vsub.f32 %v1239, %v1652
        %v1654 = vand.u32 %v1653, 4294901760
        %1655 = vmatpush1.msra.mxu0 %v1654
        %v1656 = vand.u32 %v1238, 4294901760
        %v1657 = vsub.f32 %v1238, %v1656
        %v1658 = vand.u32 %v1657, 4294901760
        %1659 = vmatprep.subr.mxu0 %v1658
        %v1660 = vand.u32 %v1237, 4294901760
        %v1661 = vsub.f32 %v1237, %v1660
        %v1662 = vand.u32 %v1661, 4294901760
        %1663 = vmatpush1.msra.mxu0 %v1662
        %v1664 = vand.u32 %v1236, 4294901760
        %v1665 = vsub.f32 %v1236, %v1664
        %v1666 = vand.u32 %v1665, 4294901760
        %1667 = vmatprep.subr.mxu0 %v1666
        %v1668 = vand.u32 %v1235, 4294901760
        %v1669 = vsub.f32 %v1235, %v1668
        %v1670 = vand.u32 %v1669, 4294901760
        %1671 = vmatpush1.msra.mxu0 %v1670
        %v1672 = vand.u32 %v1234, 4294901760
        %v1673 = vsub.f32 %v1234, %v1672
        %v1674 = vand.u32 %v1673, 4294901760
        %1675 = vmatprep.subr.mxu0 %v1674
        %v1676 = vand.u32 %v1233, 4294901760
        %v1677 = vsub.f32 %v1233, %v1676
        %v1678 = vand.u32 %v1677, 4294901760
        %1679 = vmatpush1.msra.mxu0 %v1678
        %1680 = vmatprep.subr.mxu0 0.0
        %1681 = vmatpush2.msra.mxu0 0.0
        %1682 = vmatprep.subr.mxu0 0.0
        %1683 = vmatpush2.msra.mxu0 0.0
        %1684 = vmatprep.subr.mxu0 0.0
        %1685 = vmatpush2.msra.mxu0 0.0
        %1686 = vmatprep.subr.mxu0 0.0
        %1687 = vmatpush2.msra.mxu0 0.0
        %1688 = vmatprep.subr.mxu0 0.0
        %1689 = vmatpush2.msra.mxu0 0.0
        %1690 = vmatprep.subr.mxu0 0.0
        %1691 = vmatpush2.msra.mxu0 0.0
        %1692 = vmatprep.subr.mxu0 0.0
        %1693 = vmatpush2.msra.mxu0 0.0
        %1694 = vmatprep.subr.mxu0 0.0
        %1695 = vmatpush2.msra.mxu0 0.0
        %1696 = vmatprep.subr.mxu0 0.0
        %1697 = vmatpush2.msra.mxu0 0.0
        %1698 = vmatprep.subr.mxu0 0.0
        %1699 = vmatpush2.msra.mxu0 0.0
        %1700 = vmatprep.subr.mxu0 0.0
        %1701 = vmatpush2.msra.mxu0 0.0
        %1702 = vmatprep.subr.mxu0 0.0
        %1703 = vmatpush2.msra.mxu0 0.0
        %1704 = vmatprep.subr.mxu0 0.0
        %1705 = vmatpush2.msra.mxu0 0.0
        %1706 = vmatprep.subr.mxu0 0.0
        %1707 = vmatpush2.msra.mxu0 0.0
        %1708 = vmatprep.subr.mxu0 0.0
        %1709 = vmatpush2.msra.mxu0 0.0
        %1710 = vmatprep.subr.mxu0 0.0
        %1711 = vmatpush2.msra.mxu0 0.0
        %1712 = vmatprep.mubr.f32.mxu0 0.0
        %v1713 = vand.u32 %v1255, 4294901760
        %1714 = vmatmul.mubr.f32.gmra.mxu0 %v1713
        %v1715 = vpop.f32.mrf.mxu0
        %v1716 = vadd.f32 %v1620, %v1715
        %v1717 = vpop.f32.mrf.mxu0
        %v1718 = vadd.f32 %v1622, %v1717
        %1719 = vdwg.mxu0
        %1720 = vmatprep.subr.mxu0 0.0
        %1721 = vmatpush1.msra.mxu0 0.0
        %1722 = vmatprep.subr.mxu0 0.0
        %1723 = vmatpush1.msra.mxu0 0.0
        %1724 = vmatprep.subr.mxu0 0.0
        %1725 = vmatpush1.msra.mxu0 0.0
        %1726 = vmatprep.subr.mxu0 0.0
        %1727 = vmatpush1.msra.mxu0 0.0
        %1728 = vmatprep.subr.mxu0 0.0
        %1729 = vmatpush1.msra.mxu0 0.0
        %1730 = vmatprep.subr.mxu0 0.0
        %1731 = vmatpush1.msra.mxu0 0.0
        %1732 = vmatprep.subr.mxu0 0.0
        %1733 = vmatpush1.msra.mxu0 0.0
        %1734 = vmatprep.subr.mxu0 0.0
        %1735 = vmatpush1.msra.mxu0 0.0
        %1736 = vmatprep.subr.mxu0 0.0
        %1737 = vmatpush1.msra.mxu0 0.0
        %1738 = vmatprep.subr.mxu0 0.0
        %1739 = vmatpush1.msra.mxu0 0.0
        %1740 = vmatprep.subr.mxu0 0.0
        %1741 = vmatpush1.msra.mxu0 0.0
        %1742 = vmatprep.subr.mxu0 0.0
        %1743 = vmatpush1.msra.mxu0 0.0
        %v1744 = vand.u32 %v1240, 4294901760
        %1745 = vmatprep.subr.mxu0 %v1744
        %v1746 = vand.u32 %v1239, 4294901760
        %1747 = vmatpush1.msra.mxu0 %v1746
        %v1748 = vand.u32 %v1238, 4294901760
        %1749 = vmatprep.subr.mxu0 %v1748
        %v1750 = vand.u32 %v1237, 4294901760
        %1751 = vmatpush1.msra.mxu0 %v1750
        %v1752 = vand.u32 %v1236, 4294901760
        %1753 = vmatprep.subr.mxu0 %v1752
        %v1754 = vand.u32 %v1235, 4294901760
        %1755 = vmatpush1.msra.mxu0 %v1754
        %v1756 = vand.u32 %v1234, 4294901760
        %1757 = vmatprep.subr.mxu0 %v1756
        %v1758 = vand.u32 %v1233, 4294901760
        %1759 = vmatpush1.msra.mxu0 %v1758
        %1760 = vmatprep.subr.mxu0 0.0
        %1761 = vmatpush2.msra.mxu0 0.0
        %1762 = vmatprep.subr.mxu0 0.0
        %1763 = vmatpush2.msra.mxu0 0.0
        %1764 = vmatprep.subr.mxu0 0.0
        %1765 = vmatpush2.msra.mxu0 0.0
        %1766 = vmatprep.subr.mxu0 0.0
        %1767 = vmatpush2.msra.mxu0 0.0
        %1768 = vmatprep.subr.mxu0 0.0
        %1769 = vmatpush2.msra.mxu0 0.0
        %1770 = vmatprep.subr.mxu0 0.0
        %1771 = vmatpush2.msra.mxu0 0.0
        %1772 = vmatprep.subr.mxu0 0.0
        %1773 = vmatpush2.msra.mxu0 0.0
        %1774 = vmatprep.subr.mxu0 0.0
        %1775 = vmatpush2.msra.mxu0 0.0
        %1776 = vmatprep.subr.mxu0 0.0
        %1777 = vmatpush2.msra.mxu0 0.0
        %1778 = vmatprep.subr.mxu0 0.0
        %1779 = vmatpush2.msra.mxu0 0.0
        %1780 = vmatprep.subr.mxu0 0.0
        %1781 = vmatpush2.msra.mxu0 0.0
        %1782 = vmatprep.subr.mxu0 0.0
        %1783 = vmatpush2.msra.mxu0 0.0
        %1784 = vmatprep.subr.mxu0 0.0
        %1785 = vmatpush2.msra.mxu0 0.0
        %1786 = vmatprep.subr.mxu0 0.0
        %1787 = vmatpush2.msra.mxu0 0.0
        %1788 = vmatprep.subr.mxu0 0.0
        %1789 = vmatpush2.msra.mxu0 0.0
        %1790 = vmatprep.subr.mxu0 0.0
        %1791 = vmatpush2.msra.mxu0 0.0
        %1792 = vmatprep.mubr.f32.mxu0 0.0
        %v1793 = vand.u32 %v1255, 4294901760
        %1794 = vmatmul.mubr.f32.gmra.mxu0 %v1793
        %v1795 = vpop.f32.mrf.mxu0
        %v1796 = vadd.f32 %v1716, %v1795
        %v1797 = vpop.f32.mrf.mxu0
        %v1798 = vadd.f32 %v1718, %v1797
        %1799 = vdwg.mxu0
        %v1800 = vld [vmem:[%s5] sm:$0xff]
        %v1801 = vld [vmem:[%s5 + $0x8] sm:$0xff]
        %v1802 = vld [vmem:[%s5 + $0x10] sm:$0xff]
        %v1803 = vld [vmem:[%s5 + $0x18] sm:$0xff]
        %v1804 = vld [vmem:[%s5 + $0x20] sm:$0xff]
        %v1805 = vld [vmem:[%s5 + $0x28] sm:$0xff]
        %v1806 = vld [vmem:[%s5 + $0x30] sm:$0xff]
        %v1807 = vld [vmem:[%s5 + $0x38] sm:$0xff]
        %v1809 = vsel %vm1253, %v762, 0
        %1811 = vmatprep.subr.mxu0 0.0
        %1812 = vmatpush1.msra.mxu0 0.0
        %1813 = vmatprep.subr.mxu0 0.0
        %1814 = vmatpush1.msra.mxu0 0.0
        %1815 = vmatprep.subr.mxu0 0.0
        %1816 = vmatpush1.msra.mxu0 0.0
        %1817 = vmatprep.subr.mxu0 0.0
        %1818 = vmatpush1.msra.mxu0 0.0
        %1819 = vmatprep.subr.mxu0 0.0
        %1820 = vmatpush1.msra.mxu0 0.0
        %1821 = vmatprep.subr.mxu0 0.0
        %1822 = vmatpush1.msra.mxu0 0.0
        %1823 = vmatprep.subr.mxu0 0.0
        %1824 = vmatpush1.msra.mxu0 0.0
        %1825 = vmatprep.subr.mxu0 0.0
        %1826 = vmatpush1.msra.mxu0 0.0
        %1827 = vmatprep.subr.mxu0 0.0
        %1828 = vmatpush1.msra.mxu0 0.0
        %1829 = vmatprep.subr.mxu0 0.0
        %1830 = vmatpush1.msra.mxu0 0.0
        %1831 = vmatprep.subr.mxu0 0.0
        %1832 = vmatpush1.msra.mxu0 0.0
        %1833 = vmatprep.subr.mxu0 0.0
        %1834 = vmatpush1.msra.mxu0 0.0
        %v1835 = vand.u32 %v1807, 4294901760
        %1836 = vmatprep.subr.mxu0 %v1835
        %v1837 = vand.u32 %v1806, 4294901760
        %1838 = vmatpush1.msra.mxu0 %v1837
        %v1839 = vand.u32 %v1805, 4294901760
        %1840 = vmatprep.subr.mxu0 %v1839
        %v1841 = vand.u32 %v1804, 4294901760
        %1842 = vmatpush1.msra.mxu0 %v1841
        %v1843 = vand.u32 %v1803, 4294901760
        %1844 = vmatprep.subr.mxu0 %v1843
        %v1845 = vand.u32 %v1802, 4294901760
        %1846 = vmatpush1.msra.mxu0 %v1845
        %v1847 = vand.u32 %v1801, 4294901760
        %1848 = vmatprep.subr.mxu0 %v1847
        %v1849 = vand.u32 %v1800, 4294901760
        %1850 = vmatpush1.msra.mxu0 %v1849
        %1851 = vmatprep.subr.mxu0 0.0
        %1852 = vmatpush2.msra.mxu0 0.0
        %1853 = vmatprep.subr.mxu0 0.0
        %1854 = vmatpush2.msra.mxu0 0.0
        %1855 = vmatprep.subr.mxu0 0.0
        %1856 = vmatpush2.msra.mxu0 0.0
        %1857 = vmatprep.subr.mxu0 0.0
        %1858 = vmatpush2.msra.mxu0 0.0
        %1859 = vmatprep.subr.mxu0 0.0
        %1860 = vmatpush2.msra.mxu0 0.0
        %1861 = vmatprep.subr.mxu0 0.0
        %1862 = vmatpush2.msra.mxu0 0.0
        %1863 = vmatprep.subr.mxu0 0.0
        %1864 = vmatpush2.msra.mxu0 0.0
        %1865 = vmatprep.subr.mxu0 0.0
        %1866 = vmatpush2.msra.mxu0 0.0
        %1867 = vmatprep.subr.mxu0 0.0
        %1868 = vmatpush2.msra.mxu0 0.0
        %1869 = vmatprep.subr.mxu0 0.0
        %1870 = vmatpush2.msra.mxu0 0.0
        %1871 = vmatprep.subr.mxu0 0.0
        %1872 = vmatpush2.msra.mxu0 0.0
        %1873 = vmatprep.subr.mxu0 0.0
        %1874 = vmatpush2.msra.mxu0 0.0
        %1875 = vmatprep.subr.mxu0 0.0
        %1876 = vmatpush2.msra.mxu0 0.0
        %1877 = vmatprep.subr.mxu0 0.0
        %1878 = vmatpush2.msra.mxu0 0.0
        %1879 = vmatprep.subr.mxu0 0.0
        %1880 = vmatpush2.msra.mxu0 0.0
        %1881 = vmatprep.subr.mxu0 0.0
        %1882 = vmatpush2.msra.mxu0 0.0
        %1883 = vmatprep.mubr.f32.mxu0 0.0
        %v1884 = vand.u32 %v1809, 4294901760
        %v1885 = vsub.f32 %v1809, %v1884
        %v1886 = vand.u32 %v1885, 4294901760
        %v1887 = vsub.f32 %v1885, %v1886
        %v1888 = vand.u32 %v1887, 4294901760
        %1889 = vmatmul.mubr.f32.gmra.mxu0 %v1888
        %v1890 = vpop.f32.mrf.mxu0
        %v1891 = vadd.f32 0.0, %v1890
        %v1892 = vpop.f32.mrf.mxu0
        %v1893 = vadd.f32 0.0, %v1892
        %1894 = vdwg.mxu0
        %1895 = vmatprep.subr.mxu0 0.0
        %1896 = vmatpush1.msra.mxu0 0.0
        %1897 = vmatprep.subr.mxu0 0.0
        %1898 = vmatpush1.msra.mxu0 0.0
        %1899 = vmatprep.subr.mxu0 0.0
        %1900 = vmatpush1.msra.mxu0 0.0
        %1901 = vmatprep.subr.mxu0 0.0
        %1902 = vmatpush1.msra.mxu0 0.0
        %1903 = vmatprep.subr.mxu0 0.0
        %1904 = vmatpush1.msra.mxu0 0.0
        %1905 = vmatprep.subr.mxu0 0.0
        %1906 = vmatpush1.msra.mxu0 0.0
        %1907 = vmatprep.subr.mxu0 0.0
        %1908 = vmatpush1.msra.mxu0 0.0
        %1909 = vmatprep.subr.mxu0 0.0
        %1910 = vmatpush1.msra.mxu0 0.0
        %1911 = vmatprep.subr.mxu0 0.0
        %1912 = vmatpush1.msra.mxu0 0.0
        %1913 = vmatprep.subr.mxu0 0.0
        %1914 = vmatpush1.msra.mxu0 0.0
        %1915 = vmatprep.subr.mxu0 0.0
        %1916 = vmatpush1.msra.mxu0 0.0
        %1917 = vmatprep.subr.mxu0 0.0
        %1918 = vmatpush1.msra.mxu0 0.0
        %v1919 = vand.u32 %v1807, 4294901760
        %v1920 = vsub.f32 %v1807, %v1919
        %v1921 = vand.u32 %v1920, 4294901760
        %v1922 = vsub.f32 %v1920, %v1921
        %v1923 = vand.u32 %v1922, 4294901760
        %1924 = vmatprep.subr.mxu0 %v1923
        %v1925 = vand.u32 %v1806, 4294901760
        %v1926 = vsub.f32 %v1806, %v1925
        %v1927 = vand.u32 %v1926, 4294901760
        %v1928 = vsub.f32 %v1926, %v1927
        %v1929 = vand.u32 %v1928, 4294901760
        %1930 = vmatpush1.msra.mxu0 %v1929
        %v1931 = vand.u32 %v1805, 4294901760
        %v1932 = vsub.f32 %v1805, %v1931
        %v1933 = vand.u32 %v1932, 4294901760
        %v1934 = vsub.f32 %v1932, %v1933
        %v1935 = vand.u32 %v1934, 4294901760
        %1936 = vmatprep.subr.mxu0 %v1935
        %v1937 = vand.u32 %v1804, 4294901760
        %v1938 = vsub.f32 %v1804, %v1937
        %v1939 = vand.u32 %v1938, 4294901760
        %v1940 = vsub.f32 %v1938, %v1939
        %v1941 = vand.u32 %v1940, 4294901760
        %1942 = vmatpush1.msra.mxu0 %v1941
        %v1943 = vand.u32 %v1803, 4294901760
        %v1944 = vsub.f32 %v1803, %v1943
        %v1945 = vand.u32 %v1944, 4294901760
        %v1946 = vsub.f32 %v1944, %v1945
        %v1947 = vand.u32 %v1946, 4294901760
        %1948 = vmatprep.subr.mxu0 %v1947
        %v1949 = vand.u32 %v1802, 4294901760
        %v1950 = vsub.f32 %v1802, %v1949
        %v1951 = vand.u32 %v1950, 4294901760
        %v1952 = vsub.f32 %v1950, %v1951
        %v1953 = vand.u32 %v1952, 4294901760
        %1954 = vmatpush1.msra.mxu0 %v1953
        %v1955 = vand.u32 %v1801, 4294901760
        %v1956 = vsub.f32 %v1801, %v1955
        %v1957 = vand.u32 %v1956, 4294901760
        %v1958 = vsub.f32 %v1956, %v1957
        %v1959 = vand.u32 %v1958, 4294901760
        %1960 = vmatprep.subr.mxu0 %v1959
        %v1961 = vand.u32 %v1800, 4294901760
        %v1962 = vsub.f32 %v1800, %v1961
        %v1963 = vand.u32 %v1962, 4294901760
        %v1964 = vsub.f32 %v1962, %v1963
        %v1965 = vand.u32 %v1964, 4294901760
        %1966 = vmatpush1.msra.mxu0 %v1965
        %1967 = vmatprep.subr.mxu0 0.0
        %1968 = vmatpush2.msra.mxu0 0.0
        %1969 = vmatprep.subr.mxu0 0.0
        %1970 = vmatpush2.msra.mxu0 0.0
        %1971 = vmatprep.subr.mxu0 0.0
        %1972 = vmatpush2.msra.mxu0 0.0
        %1973 = vmatprep.subr.mxu0 0.0
        %1974 = vmatpush2.msra.mxu0 0.0
        %1975 = vmatprep.subr.mxu0 0.0
        %1976 = vmatpush2.msra.mxu0 0.0
        %1977 = vmatprep.subr.mxu0 0.0
        %1978 = vmatpush2.msra.mxu0 0.0
        %1979 = vmatprep.subr.mxu0 0.0
        %1980 = vmatpush2.msra.mxu0 0.0
        %1981 = vmatprep.subr.mxu0 0.0
        %1982 = vmatpush2.msra.mxu0 0.0
        %1983 = vmatprep.subr.mxu0 0.0
        %1984 = vmatpush2.msra.mxu0 0.0
        %1985 = vmatprep.subr.mxu0 0.0
        %1986 = vmatpush2.msra.mxu0 0.0
        %1987 = vmatprep.subr.mxu0 0.0
        %1988 = vmatpush2.msra.mxu0 0.0
        %1989 = vmatprep.subr.mxu0 0.0
        %1990 = vmatpush2.msra.mxu0 0.0
        %1991 = vmatprep.subr.mxu0 0.0
        %1992 = vmatpush2.msra.mxu0 0.0
        %1993 = vmatprep.subr.mxu0 0.0
        %1994 = vmatpush2.msra.mxu0 0.0
        %1995 = vmatprep.subr.mxu0 0.0
        %1996 = vmatpush2.msra.mxu0 0.0
        %1997 = vmatprep.subr.mxu0 0.0
        %1998 = vmatpush2.msra.mxu0 0.0
        %1999 = vmatprep.mubr.f32.mxu0 0.0
        %v2000 = vand.u32 %v1809, 4294901760
        %2001 = vmatmul.mubr.f32.gmra.mxu0 %v2000
        %v2002 = vpop.f32.mrf.mxu0
        %v2003 = vadd.f32 %v1891, %v2002
        %v2004 = vpop.f32.mrf.mxu0
        %v2005 = vadd.f32 %v1893, %v2004
        %2006 = vdwg.mxu0
        %2007 = vmatprep.subr.mxu0 0.0
        %2008 = vmatpush1.msra.mxu0 0.0
        %2009 = vmatprep.subr.mxu0 0.0
        %2010 = vmatpush1.msra.mxu0 0.0
        %2011 = vmatprep.subr.mxu0 0.0
        %2012 = vmatpush1.msra.mxu0 0.0
        %2013 = vmatprep.subr.mxu0 0.0
        %2014 = vmatpush1.msra.mxu0 0.0
        %2015 = vmatprep.subr.mxu0 0.0
        %2016 = vmatpush1.msra.mxu0 0.0
        %2017 = vmatprep.subr.mxu0 0.0
        %2018 = vmatpush1.msra.mxu0 0.0
        %2019 = vmatprep.subr.mxu0 0.0
        %2020 = vmatpush1.msra.mxu0 0.0
        %2021 = vmatprep.subr.mxu0 0.0
        %2022 = vmatpush1.msra.mxu0 0.0
        %2023 = vmatprep.subr.mxu0 0.0
        %2024 = vmatpush1.msra.mxu0 0.0
        %2025 = vmatprep.subr.mxu0 0.0
        %2026 = vmatpush1.msra.mxu0 0.0
        %2027 = vmatprep.subr.mxu0 0.0
        %2028 = vmatpush1.msra.mxu0 0.0
        %2029 = vmatprep.subr.mxu0 0.0
        %2030 = vmatpush1.msra.mxu0 0.0
        %v2031 = vand.u32 %v1807, 4294901760
        %v2032 = vsub.f32 %v1807, %v2031
        %2033 = vmatprep.subr.mxu0 %v2032
        %v2034 = vand.u32 %v1806, 4294901760
        %v2035 = vsub.f32 %v1806, %v2034
        %2036 = vmatpush1.msra.mxu0 %v2035
        %v2037 = vand.u32 %v1805, 4294901760
        %v2038 = vsub.f32 %v1805, %v2037
        %2039 = vmatprep.subr.mxu0 %v2038
        %v2040 = vand.u32 %v1804, 4294901760
        %v2041 = vsub.f32 %v1804, %v2040
        %2042 = vmatpush1.msra.mxu0 %v2041
        %v2043 = vand.u32 %v1803, 4294901760
        %v2044 = vsub.f32 %v1803, %v2043
        %2045 = vmatprep.subr.mxu0 %v2044
        %v2046 = vand.u32 %v1802, 4294901760
        %v2047 = vsub.f32 %v1802, %v2046
        %2048 = vmatpush1.msra.mxu0 %v2047
        %v2049 = vand.u32 %v1801, 4294901760
        %v2050 = vsub.f32 %v1801, %v2049
        %2051 = vmatprep.subr.mxu0 %v2050
        %v2052 = vand.u32 %v1800, 4294901760
        %v2053 = vsub.f32 %v1800, %v2052
        %2054 = vmatpush1.msra.mxu0 %v2053
        %2055 = vmatprep.subr.mxu0 0.0
        %2056 = vmatpush2.msra.mxu0 0.0
        %2057 = vmatprep.subr.mxu0 0.0
        %2058 = vmatpush2.msra.mxu0 0.0
        %2059 = vmatprep.subr.mxu0 0.0
        %2060 = vmatpush2.msra.mxu0 0.0
        %2061 = vmatprep.subr.mxu0 0.0
        %2062 = vmatpush2.msra.mxu0 0.0
        %2063 = vmatprep.subr.mxu0 0.0
        %2064 = vmatpush2.msra.mxu0 0.0
        %2065 = vmatprep.subr.mxu0 0.0
        %2066 = vmatpush2.msra.mxu0 0.0
        %2067 = vmatprep.subr.mxu0 0.0
        %2068 = vmatpush2.msra.mxu0 0.0
        %2069 = vmatprep.subr.mxu0 0.0
        %2070 = vmatpush2.msra.mxu0 0.0
        %2071 = vmatprep.subr.mxu0 0.0
        %2072 = vmatpush2.msra.mxu0 0.0
        %2073 = vmatprep.subr.mxu0 0.0
        %2074 = vmatpush2.msra.mxu0 0.0
        %2075 = vmatprep.subr.mxu0 0.0
        %2076 = vmatpush2.msra.mxu0 0.0
        %2077 = vmatprep.subr.mxu0 0.0
        %2078 = vmatpush2.msra.mxu0 0.0
        %2079 = vmatprep.subr.mxu0 0.0
        %2080 = vmatpush2.msra.mxu0 0.0
        %2081 = vmatprep.subr.mxu0 0.0
        %2082 = vmatpush2.msra.mxu0 0.0
        %2083 = vmatprep.subr.mxu0 0.0
        %2084 = vmatpush2.msra.mxu0 0.0
        %2085 = vmatprep.subr.mxu0 0.0
        %2086 = vmatpush2.msra.mxu0 0.0
        %2087 = vmatprep.mubr.f32.mxu0 0.0
        %v2088 = vand.u32 %v1809, 4294901760
        %v2089 = vsub.f32 %v1809, %v2088
        %2090 = vmatmul.mubr.f32.gmra.mxu0 %v2089
        %v2091 = vpop.f32.mrf.mxu0
        %v2092 = vadd.f32 %v2003, %v2091
        %v2093 = vpop.f32.mrf.mxu0
        %v2094 = vadd.f32 %v2005, %v2093
        %2095 = vdwg.mxu0
        %2096 = vmatprep.subr.mxu0 0.0
        %2097 = vmatpush1.msra.mxu0 0.0
        %2098 = vmatprep.subr.mxu0 0.0
        %2099 = vmatpush1.msra.mxu0 0.0
        %2100 = vmatprep.subr.mxu0 0.0
        %2101 = vmatpush1.msra.mxu0 0.0
        %2102 = vmatprep.subr.mxu0 0.0
        %2103 = vmatpush1.msra.mxu0 0.0
        %2104 = vmatprep.subr.mxu0 0.0
        %2105 = vmatpush1.msra.mxu0 0.0
        %2106 = vmatprep.subr.mxu0 0.0
        %2107 = vmatpush1.msra.mxu0 0.0
        %2108 = vmatprep.subr.mxu0 0.0
        %2109 = vmatpush1.msra.mxu0 0.0
        %2110 = vmatprep.subr.mxu0 0.0
        %2111 = vmatpush1.msra.mxu0 0.0
        %2112 = vmatprep.subr.mxu0 0.0
        %2113 = vmatpush1.msra.mxu0 0.0
        %2114 = vmatprep.subr.mxu0 0.0
        %2115 = vmatpush1.msra.mxu0 0.0
        %2116 = vmatprep.subr.mxu0 0.0
        %2117 = vmatpush1.msra.mxu0 0.0
        %2118 = vmatprep.subr.mxu0 0.0
        %2119 = vmatpush1.msra.mxu0 0.0
        %v2120 = vand.u32 %v1807, 4294901760
        %2121 = vmatprep.subr.mxu0 %v2120
        %v2122 = vand.u32 %v1806, 4294901760
        %2123 = vmatpush1.msra.mxu0 %v2122
        %v2124 = vand.u32 %v1805, 4294901760
        %2125 = vmatprep.subr.mxu0 %v2124
        %v2126 = vand.u32 %v1804, 4294901760
        %2127 = vmatpush1.msra.mxu0 %v2126
        %v2128 = vand.u32 %v1803, 4294901760
        %2129 = vmatprep.subr.mxu0 %v2128
        %v2130 = vand.u32 %v1802, 4294901760
        %2131 = vmatpush1.msra.mxu0 %v2130
        %v2132 = vand.u32 %v1801, 4294901760
        %2133 = vmatprep.subr.mxu0 %v2132
        %v2134 = vand.u32 %v1800, 4294901760
        %2135 = vmatpush1.msra.mxu0 %v2134
        %2136 = vmatprep.subr.mxu0 0.0
        %2137 = vmatpush2.msra.mxu0 0.0
        %2138 = vmatprep.subr.mxu0 0.0
        %2139 = vmatpush2.msra.mxu0 0.0
        %2140 = vmatprep.subr.mxu0 0.0
        %2141 = vmatpush2.msra.mxu0 0.0
        %2142 = vmatprep.subr.mxu0 0.0
        %2143 = vmatpush2.msra.mxu0 0.0
        %2144 = vmatprep.subr.mxu0 0.0
        %2145 = vmatpush2.msra.mxu0 0.0
        %2146 = vmatprep.subr.mxu0 0.0
        %2147 = vmatpush2.msra.mxu0 0.0
        %2148 = vmatprep.subr.mxu0 0.0
        %2149 = vmatpush2.msra.mxu0 0.0
        %2150 = vmatprep.subr.mxu0 0.0
        %2151 = vmatpush2.msra.mxu0 0.0
        %2152 = vmatprep.subr.mxu0 0.0
        %2153 = vmatpush2.msra.mxu0 0.0
        %2154 = vmatprep.subr.mxu0 0.0
        %2155 = vmatpush2.msra.mxu0 0.0
        %2156 = vmatprep.subr.mxu0 0.0
        %2157 = vmatpush2.msra.mxu0 0.0
        %2158 = vmatprep.subr.mxu0 0.0
        %2159 = vmatpush2.msra.mxu0 0.0
        %2160 = vmatprep.subr.mxu0 0.0
        %2161 = vmatpush2.msra.mxu0 0.0
        %2162 = vmatprep.subr.mxu0 0.0
        %2163 = vmatpush2.msra.mxu0 0.0
        %2164 = vmatprep.subr.mxu0 0.0
        %2165 = vmatpush2.msra.mxu0 0.0
        %2166 = vmatprep.subr.mxu0 0.0
        %2167 = vmatpush2.msra.mxu0 0.0
        %2168 = vmatprep.mubr.f32.mxu0 0.0
        %v2169 = vand.u32 %v1809, 4294901760
        %v2170 = vsub.f32 %v1809, %v2169
        %v2171 = vand.u32 %v2170, 4294901760
        %2172 = vmatmul.mubr.f32.gmra.mxu0 %v2171
        %v2173 = vpop.f32.mrf.mxu0
        %v2174 = vadd.f32 %v2092, %v2173
        %v2175 = vpop.f32.mrf.mxu0
        %v2176 = vadd.f32 %v2094, %v2175
        %2177 = vdwg.mxu0
        %2178 = vmatprep.subr.mxu0 0.0
        %2179 = vmatpush1.msra.mxu0 0.0
        %2180 = vmatprep.subr.mxu0 0.0
        %2181 = vmatpush1.msra.mxu0 0.0
        %2182 = vmatprep.subr.mxu0 0.0
        %2183 = vmatpush1.msra.mxu0 0.0
        %2184 = vmatprep.subr.mxu0 0.0
        %2185 = vmatpush1.msra.mxu0 0.0
        %2186 = vmatprep.subr.mxu0 0.0
        %2187 = vmatpush1.msra.mxu0 0.0
        %2188 = vmatprep.subr.mxu0 0.0
        %2189 = vmatpush1.msra.mxu0 0.0
        %2190 = vmatprep.subr.mxu0 0.0
        %2191 = vmatpush1.msra.mxu0 0.0
        %2192 = vmatprep.subr.mxu0 0.0
        %2193 = vmatpush1.msra.mxu0 0.0
        %2194 = vmatprep.subr.mxu0 0.0
        %2195 = vmatpush1.msra.mxu0 0.0
        %2196 = vmatprep.subr.mxu0 0.0
        %2197 = vmatpush1.msra.mxu0 0.0
        %2198 = vmatprep.subr.mxu0 0.0
        %2199 = vmatpush1.msra.mxu0 0.0
        %2200 = vmatprep.subr.mxu0 0.0
        %2201 = vmatpush1.msra.mxu0 0.0
        %v2202 = vand.u32 %v1807, 4294901760
        %v2203 = vsub.f32 %v1807, %v2202
        %v2204 = vand.u32 %v2203, 4294901760
        %2205 = vmatprep.subr.mxu0 %v2204
        %v2206 = vand.u32 %v1806, 4294901760
        %v2207 = vsub.f32 %v1806, %v2206
        %v2208 = vand.u32 %v2207, 4294901760
        %2209 = vmatpush1.msra.mxu0 %v2208
        %v2210 = vand.u32 %v1805, 4294901760
        %v2211 = vsub.f32 %v1805, %v2210
        %v2212 = vand.u32 %v2211, 4294901760
        %2213 = vmatprep.subr.mxu0 %v2212
        %v2214 = vand.u32 %v1804, 4294901760
        %v2215 = vsub.f32 %v1804, %v2214
        %v2216 = vand.u32 %v2215, 4294901760
        %2217 = vmatpush1.msra.mxu0 %v2216
        %v2218 = vand.u32 %v1803, 4294901760
        %v2219 = vsub.f32 %v1803, %v2218
        %v2220 = vand.u32 %v2219, 4294901760
        %2221 = vmatprep.subr.mxu0 %v2220
        %v2222 = vand.u32 %v1802, 4294901760
        %v2223 = vsub.f32 %v1802, %v2222
        %v2224 = vand.u32 %v2223, 4294901760
        %2225 = vmatpush1.msra.mxu0 %v2224
        %v2226 = vand.u32 %v1801, 4294901760
        %v2227 = vsub.f32 %v1801, %v2226
        %v2228 = vand.u32 %v2227, 4294901760
        %2229 = vmatprep.subr.mxu0 %v2228
        %v2230 = vand.u32 %v1800, 4294901760
        %v2231 = vsub.f32 %v1800, %v2230
        %v2232 = vand.u32 %v2231, 4294901760
        %2233 = vmatpush1.msra.mxu0 %v2232
        %2234 = vmatprep.subr.mxu0 0.0
        %2235 = vmatpush2.msra.mxu0 0.0
        %2236 = vmatprep.subr.mxu0 0.0
        %2237 = vmatpush2.msra.mxu0 0.0
        %2238 = vmatprep.subr.mxu0 0.0
        %2239 = vmatpush2.msra.mxu0 0.0
        %2240 = vmatprep.subr.mxu0 0.0
        %2241 = vmatpush2.msra.mxu0 0.0
        %2242 = vmatprep.subr.mxu0 0.0
        %2243 = vmatpush2.msra.mxu0 0.0
        %2244 = vmatprep.subr.mxu0 0.0
        %2245 = vmatpush2.msra.mxu0 0.0
        %2246 = vmatprep.subr.mxu0 0.0
        %2247 = vmatpush2.msra.mxu0 0.0
        %2248 = vmatprep.subr.mxu0 0.0
        %2249 = vmatpush2.msra.mxu0 0.0
        %2250 = vmatprep.subr.mxu0 0.0
        %2251 = vmatpush2.msra.mxu0 0.0
        %2252 = vmatprep.subr.mxu0 0.0
        %2253 = vmatpush2.msra.mxu0 0.0
        %2254 = vmatprep.subr.mxu0 0.0
        %2255 = vmatpush2.msra.mxu0 0.0
        %2256 = vmatprep.subr.mxu0 0.0
        %2257 = vmatpush2.msra.mxu0 0.0
        %2258 = vmatprep.subr.mxu0 0.0
        %2259 = vmatpush2.msra.mxu0 0.0
        %2260 = vmatprep.subr.mxu0 0.0
        %2261 = vmatpush2.msra.mxu0 0.0
        %2262 = vmatprep.subr.mxu0 0.0
        %2263 = vmatpush2.msra.mxu0 0.0
        %2264 = vmatprep.subr.mxu0 0.0
        %2265 = vmatpush2.msra.mxu0 0.0
        %2266 = vmatprep.mubr.f32.mxu0 0.0
        %v2267 = vand.u32 %v1809, 4294901760
        %2268 = vmatmul.mubr.f32.gmra.mxu0 %v2267
        %v2269 = vpop.f32.mrf.mxu0
        %v2270 = vadd.f32 %v2174, %v2269
        %v2271 = vpop.f32.mrf.mxu0
        %v2272 = vadd.f32 %v2176, %v2271
        %2273 = vdwg.mxu0
        %2274 = vmatprep.subr.mxu0 0.0
        %2275 = vmatpush1.msra.mxu0 0.0
        %2276 = vmatprep.subr.mxu0 0.0
        %2277 = vmatpush1.msra.mxu0 0.0
        %2278 = vmatprep.subr.mxu0 0.0
        %2279 = vmatpush1.msra.mxu0 0.0
        %2280 = vmatprep.subr.mxu0 0.0
        %2281 = vmatpush1.msra.mxu0 0.0
        %2282 = vmatprep.subr.mxu0 0.0
        %2283 = vmatpush1.msra.mxu0 0.0
        %2284 = vmatprep.subr.mxu0 0.0
        %2285 = vmatpush1.msra.mxu0 0.0
        %2286 = vmatprep.subr.mxu0 0.0
        %2287 = vmatpush1.msra.mxu0 0.0
        %2288 = vmatprep.subr.mxu0 0.0
        %2289 = vmatpush1.msra.mxu0 0.0
        %2290 = vmatprep.subr.mxu0 0.0
        %2291 = vmatpush1.msra.mxu0 0.0
        %2292 = vmatprep.subr.mxu0 0.0
        %2293 = vmatpush1.msra.mxu0 0.0
        %2294 = vmatprep.subr.mxu0 0.0
        %2295 = vmatpush1.msra.mxu0 0.0
        %2296 = vmatprep.subr.mxu0 0.0
        %2297 = vmatpush1.msra.mxu0 0.0
        %v2298 = vand.u32 %v1807, 4294901760
        %2299 = vmatprep.subr.mxu0 %v2298
        %v2300 = vand.u32 %v1806, 4294901760
        %2301 = vmatpush1.msra.mxu0 %v2300
        %v2302 = vand.u32 %v1805, 4294901760
        %2303 = vmatprep.subr.mxu0 %v2302
        %v2304 = vand.u32 %v1804, 4294901760
        %2305 = vmatpush1.msra.mxu0 %v2304
        %v2306 = vand.u32 %v1803, 4294901760
        %2307 = vmatprep.subr.mxu0 %v2306
        %v2308 = vand.u32 %v1802, 4294901760
        %2309 = vmatpush1.msra.mxu0 %v2308
        %v2310 = vand.u32 %v1801, 4294901760
        %2311 = vmatprep.subr.mxu0 %v2310
        %v2312 = vand.u32 %v1800, 4294901760
        %2313 = vmatpush1.msra.mxu0 %v2312
        %2314 = vmatprep.subr.mxu0 0.0
        %2315 = vmatpush2.msra.mxu0 0.0
        %2316 = vmatprep.subr.mxu0 0.0
        %2317 = vmatpush2.msra.mxu0 0.0
        %2318 = vmatprep.subr.mxu0 0.0
        %2319 = vmatpush2.msra.mxu0 0.0
        %2320 = vmatprep.subr.mxu0 0.0
        %2321 = vmatpush2.msra.mxu0 0.0
        %2322 = vmatprep.subr.mxu0 0.0
        %2323 = vmatpush2.msra.mxu0 0.0
        %2324 = vmatprep.subr.mxu0 0.0
        %2325 = vmatpush2.msra.mxu0 0.0
        %2326 = vmatprep.subr.mxu0 0.0
        %2327 = vmatpush2.msra.mxu0 0.0
        %2328 = vmatprep.subr.mxu0 0.0
        %2329 = vmatpush2.msra.mxu0 0.0
        %2330 = vmatprep.subr.mxu0 0.0
        %2331 = vmatpush2.msra.mxu0 0.0
        %2332 = vmatprep.subr.mxu0 0.0
        %2333 = vmatpush2.msra.mxu0 0.0
        %2334 = vmatprep.subr.mxu0 0.0
        %2335 = vmatpush2.msra.mxu0 0.0
        %2336 = vmatprep.subr.mxu0 0.0
        %2337 = vmatpush2.msra.mxu0 0.0
        %2338 = vmatprep.subr.mxu0 0.0
        %2339 = vmatpush2.msra.mxu0 0.0
        %2340 = vmatprep.subr.mxu0 0.0
        %2341 = vmatpush2.msra.mxu0 0.0
        %2342 = vmatprep.subr.mxu0 0.0
        %2343 = vmatpush2.msra.mxu0 0.0
        %2344 = vmatprep.subr.mxu0 0.0
        %2345 = vmatpush2.msra.mxu0 0.0
        %2346 = vmatprep.mubr.f32.mxu0 0.0
        %v2347 = vand.u32 %v1809, 4294901760
        %2348 = vmatmul.mubr.f32.gmra.mxu0 %v2347
        %v2349 = vpop.f32.mrf.mxu0
        %v2350 = vadd.f32 %v2270, %v2349
        %v2351 = vpop.f32.mrf.mxu0
        %v2352 = vadd.f32 %v2272, %v2351
        %2353 = vdwg.mxu0
        %v2356 = vcombine.low %v1796, %v1798
        %v2357 = vcombine.high %v1796, %v1798
        %v2359 = vunpack.c.l.s4 1966171168
        %v2360 = vunpack.c.0.s8 %v2359
        %v2361 = vlaneseq
        %v2362 = vshrl.u32 %v2361, 7
        %v2363 = vsub.s32 %v2360, %v2362
        %v2364 = vrot.slane %v2356, %v2363
        %v2366 = vunpack.c.l.s4 1966171168
        %v2367 = vunpack.c.0.s8 %v2366
        %v2368 = vlaneseq
        %v2369 = vshrl.u32 %v2368, 7
        %v2370 = vsub.s32 %v2367, %v2369
        %v2371 = vrot.slane %v2357, %v2370
        %v2372 = vcombine.high %v2364, %v2364
        %v2373 = vcombine.high %v2371, %v2371
        %v2375 = vunpack.c.l.s4 1966171168
        %v2376 = vunpack.c.0.s8 %v2375
        %v2377 = vlaneseq
        %v2378 = vshrl.u32 %v2377, 7
        %v2379 = vsub.s32 %v2376, %v2378
        %v2380 = vrot.slane %v2364, %v2379
        %v2382 = vunpack.c.l.s4 1966171168
        %v2383 = vunpack.c.0.s8 %v2382
        %v2384 = vlaneseq
        %v2385 = vshrl.u32 %v2384, 7
        %v2386 = vsub.s32 %v2383, %v2385
        %v2387 = vrot.slane %v2371, %v2386
        %v2389 = vunpack.c.l.s4 1966171168
        %v2390 = vunpack.c.0.s8 %v2389
        %v2391 = vlaneseq
        %v2392 = vshrl.u32 %v2391, 7
        %v2393 = vsub.s32 %v2390, %v2392
        %v2394 = vrot.slane %v2372, %v2393
        %v2396 = vunpack.c.l.s4 1966171168
        %v2397 = vunpack.c.0.s8 %v2396
        %v2398 = vlaneseq
        %v2399 = vshrl.u32 %v2398, 7
        %v2400 = vsub.s32 %v2397, %v2399
        %v2401 = vrot.slane %v2373, %v2400
        %v2402 = vcombine.high %v2380, %v2380
        %v2403 = vcombine.high %v2387, %v2387
        %v2404 = vcombine.high %v2394, %v2394
        %v2405 = vcombine.high %v2401, %v2401
        %v2406 = vlaneseq
        %v2407 = vshrl.u32 %v2406, 7
        %v2408 = vsub.s32 0, %v2407
        %v2409 = vrot.slane %v2380, %v2408
        %v2410 = vlaneseq
        %v2411 = vshrl.u32 %v2410, 7
        %v2412 = vsub.s32 1, %v2411
        %v2413 = vrot.slane %v2380, %v2412
        %v2414 = vlaneseq
        %v2415 = vshrl.u32 %v2414, 7
        %v2416 = vsub.s32 0, %v2415
        %v2417 = vrot.slane %v2394, %v2416
        %v2418 = vlaneseq
        %v2419 = vshrl.u32 %v2418, 7
        %v2420 = vsub.s32 1, %v2419
        %v2421 = vrot.slane %v2394, %v2420
        %v2422 = vlaneseq
        %v2423 = vshrl.u32 %v2422, 7
        %v2424 = vsub.s32 0, %v2423
        %v2425 = vrot.slane %v2402, %v2424
        %v2426 = vlaneseq
        %v2427 = vshrl.u32 %v2426, 7
        %v2428 = vsub.s32 1, %v2427
        %v2429 = vrot.slane %v2402, %v2428
        %v2430 = vlaneseq
        %v2431 = vshrl.u32 %v2430, 7
        %v2432 = vsub.s32 0, %v2431
        %v2433 = vrot.slane %v2404, %v2432
        %v2434 = vlaneseq
        %v2435 = vshrl.u32 %v2434, 7
        %v2436 = vsub.s32 1, %v2435
        %v2437 = vrot.slane %v2404, %v2436
        %v2438 = vlaneseq
        %v2439 = vshrl.u32 %v2438, 7
        %v2440 = vsub.s32 0, %v2439
        %v2441 = vrot.slane %v2387, %v2440
        %v2442 = vlaneseq
        %v2443 = vshrl.u32 %v2442, 7
        %v2444 = vsub.s32 1, %v2443
        %v2445 = vrot.slane %v2387, %v2444
        %v2446 = vlaneseq
        %v2447 = vshrl.u32 %v2446, 7
        %v2448 = vsub.s32 0, %v2447
        %v2449 = vrot.slane %v2401, %v2448
        %v2450 = vlaneseq
        %v2451 = vshrl.u32 %v2450, 7
        %v2452 = vsub.s32 1, %v2451
        %v2453 = vrot.slane %v2401, %v2452
        %v2454 = vlaneseq
        %v2455 = vshrl.u32 %v2454, 7
        %v2456 = vsub.s32 0, %v2455
        %v2457 = vrot.slane %v2403, %v2456
        %v2458 = vlaneseq
        %v2459 = vshrl.u32 %v2458, 7
        %v2460 = vsub.s32 1, %v2459
        %v2461 = vrot.slane %v2403, %v2460
        %v2462 = vlaneseq
        %v2463 = vshrl.u32 %v2462, 7
        %v2464 = vsub.s32 0, %v2463
        %v2465 = vrot.slane %v2405, %v2464
        %v2466 = vlaneseq
        %v2467 = vshrl.u32 %v2466, 7
        %v2468 = vsub.s32 1, %v2467
        %v2469 = vrot.slane %v2405, %v2468
        %v2486 = vadd.f32 %v2409, %v2350
        %v2487 = vadd.f32 %v2413, %v2352
        %v2488 = vadd.f32 %v2417, %v2350
        %v2489 = vadd.f32 %v2421, %v2352
        %v2490 = vadd.f32 %v2425, %v2350
        %v2491 = vadd.f32 %v2429, %v2352
        %v2492 = vadd.f32 %v2433, %v2350
        %v2493 = vadd.f32 %v2437, %v2352
        %v2494 = vadd.f32 %v2441, %v2350
        %v2495 = vadd.f32 %v2445, %v2352
        %v2496 = vadd.f32 %v2449, %v2350
        %v2497 = vadd.f32 %v2453, %v2352
        %v2498 = vadd.f32 %v2457, %v2350
        %v2499 = vadd.f32 %v2461, %v2352
        %v2500 = vadd.f32 %v2465, %v2350
        %v2501 = vadd.f32 %v2469, %v2352
        %v2502 = vlaneseq
        %v2503 = vshrl.u32 %v2502, 7
        %v2504 = vsub.s32 0, %v2503
        %v2505 = vrot.slane %v1232, %v2504
        %2507 = vbcast.lane.b32.xlu0 %v2505, 256
        %v2508 = vpop.permute.xlu0 %2507
        %v2509 = vlaneseq
        %v2510 = vshrl.u32 %v2509, 7
        %v2511 = vsub.s32 1, %v2510
        %v2512 = vrot.slane %v1232, %v2511
        %2514 = vbcast.lane.b32.xlu0 %v2512, 256
        %v2515 = vpop.permute.xlu0 %2514
        %v2516 = vlaneseq
        %v2517 = vshrl.u32 %v2516, 7
        %v2518 = vsub.s32 2, %v2517
        %v2519 = vrot.slane %v1232, %v2518
        %2521 = vbcast.lane.b32.xlu0 %v2519, 256
        %v2522 = vpop.permute.xlu0 %2521
        %v2523 = vlaneseq
        %v2524 = vshrl.u32 %v2523, 7
        %v2525 = vsub.s32 3, %v2524
        %v2526 = vrot.slane %v1232, %v2525
        %2528 = vbcast.lane.b32.xlu0 %v2526, 256
        %v2529 = vpop.permute.xlu0 %2528
        %v2530 = vlaneseq
        %v2531 = vshrl.u32 %v2530, 7
        %v2532 = vsub.s32 4, %v2531
        %v2533 = vrot.slane %v1232, %v2532
        %2535 = vbcast.lane.b32.xlu0 %v2533, 256
        %v2536 = vpop.permute.xlu0 %2535
        %v2537 = vlaneseq
        %v2538 = vshrl.u32 %v2537, 7
        %v2539 = vsub.s32 5, %v2538
        %v2540 = vrot.slane %v1232, %v2539
        %2542 = vbcast.lane.b32.xlu0 %v2540, 256
        %v2543 = vpop.permute.xlu0 %2542
        %v2544 = vlaneseq
        %v2545 = vshrl.u32 %v2544, 7
        %v2546 = vsub.s32 6, %v2545
        %v2547 = vrot.slane %v1232, %v2546
        %2549 = vbcast.lane.b32.xlu0 %v2547, 256
        %v2550 = vpop.permute.xlu0 %2549
        %v2551 = vlaneseq
        %v2552 = vshrl.u32 %v2551, 7
        %v2553 = vsub.s32 7, %v2552
        %v2554 = vrot.slane %v1232, %v2553
        %2556 = vbcast.lane.b32.xlu0 %v2554, 256
        %v2557 = vpop.permute.xlu0 %2556
        %v2558 = vld [vmem:[%s6] sm:$0x3]
        %v2560 = vlaneseq
        %v2561 = vshrl.u32 %v2560, 7
        %v2562 = vsub.s32 0, %v2561
        %v2563 = vrot.slane %v2558, %v2562
        %v2564 = vlaneseq
        %v2565 = vshrl.u32 %v2564, 7
        %v2566 = vsub.s32 1, %v2565
        %v2567 = vrot.slane %v2558, %v2566
        %v2570 = vmul.f32 %v2508, %v2563
        %v2571 = vmul.f32 %v2508, %v2567
        %v2572 = vmul.f32 %v2515, %v2563
        %v2573 = vmul.f32 %v2515, %v2567
        %v2574 = vmul.f32 %v2522, %v2563
        %v2575 = vmul.f32 %v2522, %v2567
        %v2576 = vmul.f32 %v2529, %v2563
        %v2577 = vmul.f32 %v2529, %v2567
        %v2578 = vmul.f32 %v2536, %v2563
        %v2579 = vmul.f32 %v2536, %v2567
        %v2580 = vmul.f32 %v2543, %v2563
        %v2581 = vmul.f32 %v2543, %v2567
        %v2582 = vmul.f32 %v2550, %v2563
        %v2583 = vmul.f32 %v2550, %v2567
        %v2584 = vmul.f32 %v2557, %v2563
        %v2585 = vmul.f32 %v2557, %v2567
        %v2586 = vadd.f32 %v2486, %v2570
        %v2587 = vadd.f32 %v2487, %v2571
        %v2588 = vadd.f32 %v2488, %v2572
        %v2589 = vadd.f32 %v2489, %v2573
        %v2590 = vadd.f32 %v2490, %v2574
        %v2591 = vadd.f32 %v2491, %v2575
        %v2592 = vadd.f32 %v2492, %v2576
        %v2593 = vadd.f32 %v2493, %v2577
        %v2594 = vadd.f32 %v2494, %v2578
        %v2595 = vadd.f32 %v2495, %v2579
        %v2596 = vadd.f32 %v2496, %v2580
        %v2597 = vadd.f32 %v2497, %v2581
        %v2598 = vadd.f32 %v2498, %v2582
        %v2599 = vadd.f32 %v2499, %v2583
        %v2600 = vadd.f32 %v2500, %v2584
        %v2601 = vadd.f32 %v2501, %v2585
        %v2602 = vmul.f32 %v2586, 0.5
        %v2603 = vmul.f32 %v2587, 0.5
        %v2604 = vmul.f32 %v2588, 0.5
        %v2605 = vmul.f32 %v2589, 0.5
        %v2606 = vmul.f32 %v2590, 0.5
        %v2607 = vmul.f32 %v2591, 0.5
        %v2608 = vmul.f32 %v2592, 0.5
        %v2609 = vmul.f32 %v2593, 0.5
        %v2610 = vmul.f32 %v2594, 0.5
        %v2611 = vmul.f32 %v2595, 0.5
        %v2612 = vmul.f32 %v2596, 0.5
        %v2613 = vmul.f32 %v2597, 0.5
        %v2614 = vmul.f32 %v2598, 0.5
        %v2615 = vmul.f32 %v2599, 0.5
        %v2616 = vmul.f32 %v2600, 0.5
        %v2617 = vmul.f32 %v2601, 0.5
        %v2618 = vtanh.pop %v2602
        %v2619 = vtanh.pop %v2603
        %v2620 = vtanh.pop %v2604
        %v2621 = vtanh.pop %v2605
        %v2622 = vtanh.pop %v2606
        %v2623 = vtanh.pop %v2607
        %v2624 = vtanh.pop %v2608
        %v2625 = vtanh.pop %v2609
        %v2626 = vtanh.pop %v2610
        %v2627 = vtanh.pop %v2611
        %v2628 = vtanh.pop %v2612
        %v2629 = vtanh.pop %v2613
        %v2630 = vtanh.pop %v2614
        %v2631 = vtanh.pop %v2615
        %v2632 = vtanh.pop %v2616
        %v2633 = vtanh.pop %v2617
        %v2634 = vadd.f32 %v2618, 1.0
        %v2635 = vadd.f32 %v2619, 1.0
        %v2636 = vadd.f32 %v2620, 1.0
        %v2637 = vadd.f32 %v2621, 1.0
        %v2638 = vadd.f32 %v2622, 1.0
        %v2639 = vadd.f32 %v2623, 1.0
        %v2640 = vadd.f32 %v2624, 1.0
        %v2641 = vadd.f32 %v2625, 1.0
        %v2642 = vadd.f32 %v2626, 1.0
        %v2643 = vadd.f32 %v2627, 1.0
        %v2644 = vadd.f32 %v2628, 1.0
        %v2645 = vadd.f32 %v2629, 1.0
        %v2646 = vadd.f32 %v2630, 1.0
        %v2647 = vadd.f32 %v2631, 1.0
        %v2648 = vadd.f32 %v2632, 1.0
        %v2649 = vadd.f32 %v2633, 1.0
        %v2650 = vmul.f32 %v2602, %v2634
        %v2651 = vmul.f32 %v2603, %v2635
        %v2652 = vmul.f32 %v2604, %v2636
        %v2653 = vmul.f32 %v2605, %v2637
        %v2654 = vmul.f32 %v2606, %v2638
        %v2655 = vmul.f32 %v2607, %v2639
        %v2656 = vmul.f32 %v2608, %v2640
        %v2657 = vmul.f32 %v2609, %v2641
        %v2658 = vmul.f32 %v2610, %v2642
        %v2659 = vmul.f32 %v2611, %v2643
        %v2660 = vmul.f32 %v2612, %v2644
        %v2661 = vmul.f32 %v2613, %v2645
        %v2662 = vmul.f32 %v2614, %v2646
        %v2663 = vmul.f32 %v2615, %v2647
        %v2664 = vmul.f32 %v2616, %v2648
        %v2665 = vmul.f32 %v2617, %v2649
        %v2666 = vld [vmem:[%s8] sm:$0xff]
        %v2667 = vld [vmem:[%s8 + $0x8] sm:$0xff]
        %v2668 = vld [vmem:[%s8 + $0x10] sm:$0xff]
        %v2669 = vld [vmem:[%s8 + $0x18] sm:$0xff]
        %v2670 = vld [vmem:[%s8 + $0x20] sm:$0xff]
        %v2671 = vld [vmem:[%s8 + $0x28] sm:$0xff]
        %v2672 = vld [vmem:[%s8 + $0x30] sm:$0xff]
        %v2673 = vld [vmem:[%s8 + $0x38] sm:$0xff]
        %v2674 = vld [vmem:[%s8 + $0x40] sm:$0xff]
        %v2675 = vld [vmem:[%s8 + $0x48] sm:$0xff]
        %v2676 = vld [vmem:[%s8 + $0x50] sm:$0xff]
        %v2677 = vld [vmem:[%s8 + $0x58] sm:$0xff]
        %v2678 = vld [vmem:[%s8 + $0x60] sm:$0xff]
        %v2679 = vld [vmem:[%s8 + $0x68] sm:$0xff]
        %v2680 = vld [vmem:[%s8 + $0x70] sm:$0xff]
        %v2681 = vld [vmem:[%s8 + $0x78] sm:$0xff]
        %v2682 = vld [vmem:[%s8 + $0x80] sm:$0xff]
        %v2683 = vld [vmem:[%s8 + $0x88] sm:$0xff]
        %v2684 = vld [vmem:[%s8 + $0x90] sm:$0xff]
        %v2685 = vld [vmem:[%s8 + $0x98] sm:$0xff]
        %v2686 = vld [vmem:[%s8 + $0xa0] sm:$0xff]
        %v2687 = vld [vmem:[%s8 + $0xa8] sm:$0xff]
        %v2688 = vld [vmem:[%s8 + $0xb0] sm:$0xff]
        %v2689 = vld [vmem:[%s8 + $0xb8] sm:$0xff]
        %v2690 = vld [vmem:[%s8 + $0xc0] sm:$0xff]
        %v2691 = vld [vmem:[%s8 + $0xc8] sm:$0xff]
        %v2692 = vld [vmem:[%s8 + $0xd0] sm:$0xff]
        %v2693 = vld [vmem:[%s8 + $0xd8] sm:$0xff]
        %v2694 = vld [vmem:[%s8 + $0xe0] sm:$0xff]
        %v2695 = vld [vmem:[%s8 + $0xe8] sm:$0xff]
        %v2696 = vld [vmem:[%s8 + $0xf0] sm:$0xff]
        %v2697 = vld [vmem:[%s8 + $0xf8] sm:$0xff]
        %v2698 = vld [vmem:[%s9] sm:$0x1]
        %v2700 = vlaneseq
        %v2701 = vshrl.u32 %v2700, 7
        %v2702 = vsub.s32 0, %v2701
        %v2703 = vrot.slane %v2698, %v2702
        %2705 = vmatprep.subr.mxu0 0.0
        %2706 = vmatpush1.msra.mxu0 %v2681
        %2707 = vmatprep.subr.mxu0 0.0
        %2708 = vmatpush1.msra.mxu0 %v2680
        %2709 = vmatprep.subr.mxu0 0.0
        %2710 = vmatpush1.msra.mxu0 %v2679
        %2711 = vmatprep.subr.mxu0 0.0
        %2712 = vmatpush1.msra.mxu0 %v2678
        %2713 = vmatprep.subr.mxu0 0.0
        %2714 = vmatpush1.msra.mxu0 %v2677
        %2715 = vmatprep.subr.mxu0 0.0
        %2716 = vmatpush1.msra.mxu0 %v2676
        %2717 = vmatprep.subr.mxu0 0.0
        %2718 = vmatpush1.msra.mxu0 %v2675
        %2719 = vmatprep.subr.mxu0 0.0
        %2720 = vmatpush1.msra.mxu0 %v2674
        %2721 = vmatprep.subr.mxu0 0.0
        %2722 = vmatpush1.msra.mxu0 %v2673
        %2723 = vmatprep.subr.mxu0 0.0
        %2724 = vmatpush1.msra.mxu0 %v2672
        %2725 = vmatprep.subr.mxu0 0.0
        %2726 = vmatpush1.msra.mxu0 %v2671
        %2727 = vmatprep.subr.mxu0 0.0
        %2728 = vmatpush1.msra.mxu0 %v2670
        %2729 = vmatprep.subr.mxu0 0.0
        %2730 = vmatpush1.msra.mxu0 %v2669
        %2731 = vmatprep.subr.mxu0 0.0
        %2732 = vmatpush1.msra.mxu0 %v2668
        %2733 = vmatprep.subr.mxu0 0.0
        %2734 = vmatpush1.msra.mxu0 %v2667
        %2735 = vmatprep.subr.mxu0 0.0
        %2736 = vmatpush1.msra.mxu0 %v2666
        %2737 = vmatprep.subr.mxu0 0.0
        %2738 = vmatpush2.msra.mxu0 %v2697
        %2739 = vmatprep.subr.mxu0 0.0
        %2740 = vmatpush2.msra.mxu0 %v2696
        %2741 = vmatprep.subr.mxu0 0.0
        %2742 = vmatpush2.msra.mxu0 %v2695
        %2743 = vmatprep.subr.mxu0 0.0
        %2744 = vmatpush2.msra.mxu0 %v2694
        %2745 = vmatprep.subr.mxu0 0.0
        %2746 = vmatpush2.msra.mxu0 %v2693
        %2747 = vmatprep.subr.mxu0 0.0
        %2748 = vmatpush2.msra.mxu0 %v2692
        %2749 = vmatprep.subr.mxu0 0.0
        %2750 = vmatpush2.msra.mxu0 %v2691
        %2751 = vmatprep.subr.mxu0 0.0
        %2752 = vmatpush2.msra.mxu0 %v2690
        %2753 = vmatprep.subr.mxu0 0.0
        %2754 = vmatpush2.msra.mxu0 %v2689
        %2755 = vmatprep.subr.mxu0 0.0
        %2756 = vmatpush2.msra.mxu0 %v2688
        %2757 = vmatprep.subr.mxu0 0.0
        %2758 = vmatpush2.msra.mxu0 %v2687
        %2759 = vmatprep.subr.mxu0 0.0
        %2760 = vmatpush2.msra.mxu0 %v2686
        %2761 = vmatprep.subr.mxu0 0.0
        %2762 = vmatpush2.msra.mxu0 %v2685
        %2763 = vmatprep.subr.mxu0 0.0
        %2764 = vmatpush2.msra.mxu0 %v2684
        %2765 = vmatprep.subr.mxu0 0.0
        %2766 = vmatpush2.msra.mxu0 %v2683
        %2767 = vmatprep.subr.mxu0 0.0
        %2768 = vmatpush2.msra.mxu0 %v2682
        %2769 = vmatprep.mubr.f32.mxu0 %v2651
        %2770 = vmatmul.mubr.f32.gmra.mxu0 %v2650
        %v2771 = vpop.f32.mrf.mxu0
        %v2772 = vadd.f32 %v2703, %v2771
        %v2773 = vpop.f32.mrf.mxu0
        %2774 = vmatprep.mubr.f32.mxu0 %v2653
        %2775 = vmatmul.mubr.f32.gmra.mxu0 %v2652
        %v2776 = vpop.f32.mrf.mxu0
        %v2777 = vadd.f32 %v2703, %v2776
        %v2778 = vpop.f32.mrf.mxu0
        %2779 = vmatprep.mubr.f32.mxu0 %v2655
        %2780 = vmatmul.mubr.f32.gmra.mxu0 %v2654
        %v2781 = vpop.f32.mrf.mxu0
        %v2782 = vadd.f32 %v2703, %v2781
        %v2783 = vpop.f32.mrf.mxu0
        %2784 = vmatprep.mubr.f32.mxu0 %v2657
        %2785 = vmatmul.mubr.f32.gmra.mxu0 %v2656
        %v2786 = vpop.f32.mrf.mxu0
        %v2787 = vadd.f32 %v2703, %v2786
        %v2788 = vpop.f32.mrf.mxu0
        %2789 = vmatprep.mubr.f32.mxu0 %v2659
        %2790 = vmatmul.mubr.f32.gmra.mxu0 %v2658
        %v2791 = vpop.f32.mrf.mxu0
        %v2792 = vadd.f32 %v2703, %v2791
        %v2793 = vpop.f32.mrf.mxu0
        %2794 = vmatprep.mubr.f32.mxu0 %v2661
        %2795 = vmatmul.mubr.f32.gmra.mxu0 %v2660
        %v2796 = vpop.f32.mrf.mxu0
        %v2797 = vadd.f32 %v2703, %v2796
        %v2798 = vpop.f32.mrf.mxu0
        %2799 = vmatprep.mubr.f32.mxu0 %v2663
        %2800 = vmatmul.mubr.f32.gmra.mxu0 %v2662
        %v2801 = vpop.f32.mrf.mxu0
        %v2802 = vadd.f32 %v2703, %v2801
        %v2803 = vpop.f32.mrf.mxu0
        %2804 = vmatprep.mubr.f32.mxu0 %v2665
        %2805 = vmatmul.mubr.f32.gmra.mxu0 %v2664
        %v2806 = vpop.f32.mrf.mxu0
        %v2807 = vadd.f32 %v2703, %v2806
        %v2808 = vpop.f32.mrf.mxu0
        %2809 = vdwg.mxu0
        %v2810 = vmul.f32 %v2772, 0.5
        %v2811 = vmul.f32 %v2777, 0.5
        %v2812 = vmul.f32 %v2782, 0.5
        %v2813 = vmul.f32 %v2787, 0.5
        %v2814 = vmul.f32 %v2792, 0.5
        %v2815 = vmul.f32 %v2797, 0.5
        %v2816 = vmul.f32 %v2802, 0.5
        %v2817 = vmul.f32 %v2807, 0.5
        %v2818 = vtanh.pop %v2810
        %v2819 = vtanh.pop %v2811
        %v2820 = vtanh.pop %v2812
        %v2821 = vtanh.pop %v2813
        %v2822 = vtanh.pop %v2814
        %v2823 = vtanh.pop %v2815
        %v2824 = vtanh.pop %v2816
        %v2825 = vtanh.pop %v2817
        %v2826 = vadd.f32 %v2818, 1.0
        %v2827 = vadd.f32 %v2819, 1.0
        %v2828 = vadd.f32 %v2820, 1.0
        %v2829 = vadd.f32 %v2821, 1.0
        %v2830 = vadd.f32 %v2822, 1.0
        %v2831 = vadd.f32 %v2823, 1.0
        %v2832 = vadd.f32 %v2824, 1.0
        %v2833 = vadd.f32 %v2825, 1.0
        %v2834 = vmul.f32 %v2810, %v2826
        %v2835 = vmul.f32 %v2811, %v2827
        %v2836 = vmul.f32 %v2812, %v2828
        %v2837 = vmul.f32 %v2813, %v2829
        %v2838 = vmul.f32 %v2814, %v2830
        %v2839 = vmul.f32 %v2815, %v2831
        %v2840 = vmul.f32 %v2816, %v2832
        %v2841 = vmul.f32 %v2817, %v2833
        %v2842 = vld [vmem:[%s10] sm:$0xff]
        %v2843 = vld [vmem:[%s10 + $0x8] sm:$0xff]
        %v2844 = vld [vmem:[%s10 + $0x10] sm:$0xff]
        %v2845 = vld [vmem:[%s10 + $0x18] sm:$0xff]
        %v2846 = vld [vmem:[%s11] sm:$0x1]
        %v2848 = vlaneseq
        %v2849 = vshrl.u32 %v2848, 7
        %v2850 = vsub.s32 0, %v2849
        %v2851 = vrot.slane %v2846, %v2850
        %v2854 = vsel %vm1253, %v2834, 0
        %v2857 = vsel %vm1253, %v2835, 0
        %v2860 = vsel %vm1253, %v2836, 0
        %v2863 = vsel %vm1253, %v2837, 0
        %v2866 = vsel %vm1253, %v2838, 0
        %v2869 = vsel %vm1253, %v2839, 0
        %v2872 = vsel %vm1253, %v2840, 0
        %v2875 = vsel %vm1253, %v2841, 0
        %2877 = vmatprep.subr.mxu0 0.0
        %2878 = vmatpush1.msra.mxu0 0.0
        %2879 = vmatprep.subr.mxu0 0.0
        %2880 = vmatpush1.msra.mxu0 0.0
        %2881 = vmatprep.subr.mxu0 0.0
        %2882 = vmatpush1.msra.mxu0 0.0
        %2883 = vmatprep.subr.mxu0 0.0
        %2884 = vmatpush1.msra.mxu0 0.0
        %2885 = vmatprep.subr.mxu0 0.0
        %2886 = vmatpush1.msra.mxu0 0.0
        %2887 = vmatprep.subr.mxu0 0.0
        %2888 = vmatpush1.msra.mxu0 0.0
        %2889 = vmatprep.subr.mxu0 0.0
        %2890 = vmatpush1.msra.mxu0 0.0
        %2891 = vmatprep.subr.mxu0 0.0
        %2892 = vmatpush1.msra.mxu0 0.0
        %2893 = vmatprep.subr.mxu0 0.0
        %2894 = vmatpush1.msra.mxu0 0.0
        %2895 = vmatprep.subr.mxu0 0.0
        %2896 = vmatpush1.msra.mxu0 0.0
        %2897 = vmatprep.subr.mxu0 0.0
        %2898 = vmatpush1.msra.mxu0 0.0
        %2899 = vmatprep.subr.mxu0 0.0
        %2900 = vmatpush1.msra.mxu0 0.0
        %2901 = vmatprep.subr.mxu0 0.0
        %2902 = vmatpush1.msra.mxu0 %v2845
        %2903 = vmatprep.subr.mxu0 0.0
        %2904 = vmatpush1.msra.mxu0 %v2844
        %2905 = vmatprep.subr.mxu0 0.0
        %2906 = vmatpush1.msra.mxu0 %v2843
        %2907 = vmatprep.subr.mxu0 0.0
        %2908 = vmatpush1.msra.mxu0 %v2842
        %2909 = vmatprep.subr.mxu0 0.0
        %2910 = vmatpush2.msra.mxu0 0.0
        %2911 = vmatprep.subr.mxu0 0.0
        %2912 = vmatpush2.msra.mxu0 0.0
        %2913 = vmatprep.subr.mxu0 0.0
        %2914 = vmatpush2.msra.mxu0 0.0
        %2915 = vmatprep.subr.mxu0 0.0
        %2916 = vmatpush2.msra.mxu0 0.0
        %2917 = vmatprep.subr.mxu0 0.0
        %2918 = vmatpush2.msra.mxu0 0.0
        %2919 = vmatprep.subr.mxu0 0.0
        %2920 = vmatpush2.msra.mxu0 0.0
        %2921 = vmatprep.subr.mxu0 0.0
        %2922 = vmatpush2.msra.mxu0 0.0
        %2923 = vmatprep.subr.mxu0 0.0
        %2924 = vmatpush2.msra.mxu0 0.0
        %2925 = vmatprep.subr.mxu0 0.0
        %2926 = vmatpush2.msra.mxu0 0.0
        %2927 = vmatprep.subr.mxu0 0.0
        %2928 = vmatpush2.msra.mxu0 0.0
        %2929 = vmatprep.subr.mxu0 0.0
        %2930 = vmatpush2.msra.mxu0 0.0
        %2931 = vmatprep.subr.mxu0 0.0
        %2932 = vmatpush2.msra.mxu0 0.0
        %2933 = vmatprep.subr.mxu0 0.0
        %2934 = vmatpush2.msra.mxu0 0.0
        %2935 = vmatprep.subr.mxu0 0.0
        %2936 = vmatpush2.msra.mxu0 0.0
        %2937 = vmatprep.subr.mxu0 0.0
        %2938 = vmatpush2.msra.mxu0 0.0
        %2939 = vmatprep.subr.mxu0 0.0
        %2940 = vmatpush2.msra.mxu0 0.0
        %2941 = vmatprep.mubr.f32.mxu0 0.0
        %2942 = vmatmul.mubr.f32.gmra.mxu0 %v2854
        %v2943 = vpop.f32.mrf.mxu0
        %v2944 = vadd.f32 %v2851, %v2943
        %v2945 = vpop.f32.mrf.mxu0
        %2946 = vmatprep.mubr.f32.mxu0 0.0
        %2947 = vmatmul.mubr.f32.gmra.mxu0 %v2857
        %v2948 = vpop.f32.mrf.mxu0
        %v2949 = vadd.f32 %v2851, %v2948
        %v2950 = vpop.f32.mrf.mxu0
        %2951 = vmatprep.mubr.f32.mxu0 0.0
        %2952 = vmatmul.mubr.f32.gmra.mxu0 %v2860
        %v2953 = vpop.f32.mrf.mxu0
        %v2954 = vadd.f32 %v2851, %v2953
        %v2955 = vpop.f32.mrf.mxu0
        %2956 = vmatprep.mubr.f32.mxu0 0.0
        %2957 = vmatmul.mubr.f32.gmra.mxu0 %v2863
        %v2958 = vpop.f32.mrf.mxu0
        %v2959 = vadd.f32 %v2851, %v2958
        %v2960 = vpop.f32.mrf.mxu0
        %2961 = vmatprep.mubr.f32.mxu0 0.0
        %2962 = vmatmul.mubr.f32.gmra.mxu0 %v2866
        %v2963 = vpop.f32.mrf.mxu0
        %v2964 = vadd.f32 %v2851, %v2963
        %v2965 = vpop.f32.mrf.mxu0
        %2966 = vmatprep.mubr.f32.mxu0 0.0
        %2967 = vmatmul.mubr.f32.gmra.mxu0 %v2869
        %v2968 = vpop.f32.mrf.mxu0
        %v2969 = vadd.f32 %v2851, %v2968
        %v2970 = vpop.f32.mrf.mxu0
        %2971 = vmatprep.mubr.f32.mxu0 0.0
        %2972 = vmatmul.mubr.f32.gmra.mxu0 %v2872
        %v2973 = vpop.f32.mrf.mxu0
        %v2974 = vadd.f32 %v2851, %v2973
        %v2975 = vpop.f32.mrf.mxu0
        %2976 = vmatprep.mubr.f32.mxu0 0.0
        %2977 = vmatmul.mubr.f32.gmra.mxu0 %v2875
        %v2978 = vpop.f32.mrf.mxu0
        %v2979 = vadd.f32 %v2851, %v2978
        %v2980 = vpop.f32.mrf.mxu0
        %2981 = vdwg.mxu0
        %v2982 = vmul.f32 %v2944, 0.5
        %v2983 = vmul.f32 %v2949, 0.5
        %v2984 = vmul.f32 %v2954, 0.5
        %v2985 = vmul.f32 %v2959, 0.5
        %v2986 = vmul.f32 %v2964, 0.5
        %v2987 = vmul.f32 %v2969, 0.5
        %v2988 = vmul.f32 %v2974, 0.5
        %v2989 = vmul.f32 %v2979, 0.5
        %v2990 = vtanh.pop %v2982
        %v2991 = vtanh.pop %v2983
        %v2992 = vtanh.pop %v2984
        %v2993 = vtanh.pop %v2985
        %v2994 = vtanh.pop %v2986
        %v2995 = vtanh.pop %v2987
        %v2996 = vtanh.pop %v2988
        %v2997 = vtanh.pop %v2989
        %v2998 = vadd.f32 %v2990, 1.0
        %v2999 = vadd.f32 %v2991, 1.0
        %v3000 = vadd.f32 %v2992, 1.0
        %v3001 = vadd.f32 %v2993, 1.0
        %v3002 = vadd.f32 %v2994, 1.0
        %v3003 = vadd.f32 %v2995, 1.0
        %v3004 = vadd.f32 %v2996, 1.0
        %v3005 = vadd.f32 %v2997, 1.0
        %v3006 = vmul.f32 %v2982, %v2998
        %v3007 = vmul.f32 %v2983, %v2999
        %v3008 = vmul.f32 %v2984, %v3000
        %v3009 = vmul.f32 %v2985, %v3001
        %v3010 = vmul.f32 %v2986, %v3002
        %v3011 = vmul.f32 %v2987, %v3003
        %v3012 = vmul.f32 %v2988, %v3004
        %v3013 = vmul.f32 %v2989, %v3005
        %v3014 = vld [vmem:[%s12] sm:$0x1]
        %v3016 = vlaneseq
        %v3017 = vshrl.u32 %v3016, 7
        %v3018 = vsub.s32 0, %v3017
        %v3019 = vrot.slane %v3014, %v3018
        %v3021 = vmul.f32 %v3006, %v3019
        %v3022 = vmul.f32 %v3007, %v3019
        %v3023 = vmul.f32 %v3008, %v3019
        %v3024 = vmul.f32 %v3009, %v3019
        %v3025 = vmul.f32 %v3010, %v3019
        %v3026 = vmul.f32 %v3011, %v3019
        %v3027 = vmul.f32 %v3012, %v3019
        %v3028 = vmul.f32 %v3013, %v3019
        %3029 = vadd.xlane.f32.xlu0 %v3021
        %v3030 = vpop.xlane.xlu0 %3029
        %3031 = vadd.xlane.f32.xlu0 %v3022
        %v3032 = vpop.xlane.xlu0 %3031
        %3033 = vadd.xlane.f32.xlu0 %v3023
        %v3034 = vpop.xlane.xlu0 %3033
        %3035 = vadd.xlane.f32.xlu0 %v3024
        %v3036 = vpop.xlane.xlu0 %3035
        %3037 = vadd.xlane.f32.xlu0 %v3025
        %v3038 = vpop.xlane.xlu0 %3037
        %3039 = vadd.xlane.f32.xlu0 %v3026
        %v3040 = vpop.xlane.xlu0 %3039
        %3041 = vadd.xlane.f32.xlu0 %v3027
        %v3042 = vpop.xlane.xlu0 %3041
        %3043 = vadd.xlane.f32.xlu0 %v3028
        %v3044 = vpop.xlane.xlu0 %3043
        %v3045 = vld [vmem:[#allocation2] sm:$0x1]
        %v3047 = vlaneseq
        %v3048 = vshrl.u32 %v3047, 7
        %v3049 = vsub.s32 0, %v3048
        %v3050 = vrot.slane %v3045, %v3049
        %3051 = vset.pattern.permute.xlu0 0
        %3052 = vperm.xlu0 %3051, %v3050
        %v3053 = vpop.permute.xlu0 %3052
        %v3055 = vadd.f32 %v3030, %v3053
        %v3056 = vadd.f32 %v3032, %v3053
        %v3057 = vadd.f32 %v3034, %v3053
        %v3058 = vadd.f32 %v3036, %v3053
        %v3059 = vadd.f32 %v3038, %v3053
        %v3060 = vadd.f32 %v3040, %v3053
        %v3061 = vadd.f32 %v3042, %v3053
        %v3062 = vadd.f32 %v3044, %v3053
        %vm3063 = vcmp.gt.f32.partialorder %v1232, 0.0
        %v3064 = vmax.f32 %v1232, 1e-16
        %v3065 = vrsqrt.pop %v3064
        %v3066 = vsel %vm3063, %v3065, 0.0
        %v3068 = vlaneseq
        %v3069 = vshrl.u32 %v3068, 7
        %v3070 = vsub.s32 0, %v3069
        %v3071 = vrot.slane %v3066, %v3070
        %3073 = vbcast.lane.b32.xlu0 %v3071, 256
        %v3074 = vpop.permute.xlu0 %3073
        %v3075 = vlaneseq
        %v3076 = vshrl.u32 %v3075, 7
        %v3077 = vsub.s32 1, %v3076
        %v3078 = vrot.slane %v3066, %v3077
        %3080 = vbcast.lane.b32.xlu0 %v3078, 256
        %v3081 = vpop.permute.xlu0 %3080
        %v3082 = vlaneseq
        %v3083 = vshrl.u32 %v3082, 7
        %v3084 = vsub.s32 2, %v3083
        %v3085 = vrot.slane %v3066, %v3084
        %3087 = vbcast.lane.b32.xlu0 %v3085, 256
        %v3088 = vpop.permute.xlu0 %3087
        %v3089 = vlaneseq
        %v3090 = vshrl.u32 %v3089, 7
        %v3091 = vsub.s32 3, %v3090
        %v3092 = vrot.slane %v3066, %v3091
        %3094 = vbcast.lane.b32.xlu0 %v3092, 256
        %v3095 = vpop.permute.xlu0 %3094
        %v3096 = vlaneseq
        %v3097 = vshrl.u32 %v3096, 7
        %v3098 = vsub.s32 4, %v3097
        %v3099 = vrot.slane %v3066, %v3098
        %3101 = vbcast.lane.b32.xlu0 %v3099, 256
        %v3102 = vpop.permute.xlu0 %3101
        %v3103 = vlaneseq
        %v3104 = vshrl.u32 %v3103, 7
        %v3105 = vsub.s32 5, %v3104
        %v3106 = vrot.slane %v3066, %v3105
        %3108 = vbcast.lane.b32.xlu0 %v3106, 256
        %v3109 = vpop.permute.xlu0 %3108
        %v3110 = vlaneseq
        %v3111 = vshrl.u32 %v3110, 7
        %v3112 = vsub.s32 6, %v3111
        %v3113 = vrot.slane %v3066, %v3112
        %3115 = vbcast.lane.b32.xlu0 %v3113, 256
        %v3116 = vpop.permute.xlu0 %3115
        %v3117 = vlaneseq
        %v3118 = vshrl.u32 %v3117, 7
        %v3119 = vsub.s32 7, %v3118
        %v3120 = vrot.slane %v3066, %v3119
        %3122 = vbcast.lane.b32.xlu0 %v3120, 256
        %v3123 = vpop.permute.xlu0 %3122
        %v3132 = vmul.f32 %v3055, %v3074
        %v3133 = vmul.f32 %v3056, %v3081
        %v3134 = vmul.f32 %v3057, %v3088
        %v3135 = vmul.f32 %v3058, %v3095
        %v3136 = vmul.f32 %v3059, %v3102
        %v3137 = vmul.f32 %v3060, %v3109
        %v3138 = vmul.f32 %v3061, %v3116
        %v3139 = vmul.f32 %v3062, %v3123
        %v3140 = vld [vmem:[#allocation3] sm:$0x1]
        %v3141 = vmul.f32 %v3140, 0.02
        %v3143 = vlaneseq
        %v3144 = vshrl.u32 %v3143, 7
        %v3145 = vsub.s32 0, %v3144
        %v3146 = vrot.slane %v3141, %v3145
        %3147 = vset.pattern.permute.xlu0 0
        %3148 = vperm.xlu0 %3147, %v3146
        %v3149 = vpop.permute.xlu0 %3148
        %v3151 = vmul.f32 %v3132, %v3149
        %v3152 = vmul.f32 %v3133, %v3149
        %v3153 = vmul.f32 %v3134, %v3149
        %v3154 = vmul.f32 %v3135, %v3149
        %v3155 = vmul.f32 %v3136, %v3149
        %v3156 = vmul.f32 %v3137, %v3149
        %v3157 = vmul.f32 %v3138, %v3149
        %v3158 = vmul.f32 %v3139, %v3149
        %3167 = vset.pattern.permute.xlu0 0
        %3168 = vperm.xlu0 %3167, %v3151
        %v3169 = vpop.permute.xlu0 %3168
        %3170 = vset.pattern.permute.xlu0 0
        %3171 = vperm.xlu0 %3170, %v3152
        %v3172 = vpop.permute.xlu0 %3171
        %3173 = vset.pattern.permute.xlu0 0
        %3174 = vperm.xlu0 %3173, %v3153
        %v3175 = vpop.permute.xlu0 %3174
        %3176 = vset.pattern.permute.xlu0 0
        %3177 = vperm.xlu0 %3176, %v3154
        %v3178 = vpop.permute.xlu0 %3177
        %3179 = vset.pattern.permute.xlu0 0
        %3180 = vperm.xlu0 %3179, %v3155
        %v3181 = vpop.permute.xlu0 %3180
        %3182 = vset.pattern.permute.xlu0 0
        %3183 = vperm.xlu0 %3182, %v3156
        %v3184 = vpop.permute.xlu0 %3183
        %3185 = vset.pattern.permute.xlu0 0
        %3186 = vperm.xlu0 %3185, %v3157
        %v3187 = vpop.permute.xlu0 %3186
        %3188 = vset.pattern.permute.xlu0 0
        %3189 = vperm.xlu0 %3188, %v3158
        %v3190 = vpop.permute.xlu0 %3189
        %v3191 = vlaneseq
        %v3192 = vand.u32 %v3191, 127
        %v3193 = vlaneseq
        %v3194 = vshrl.u32 %v3193, 7
        %v3195 = vsub.s32 %v3192, %v3194
        %v3196 = vrot.slane %v3169, %v3195
        %v3197 = vlaneseq
        %v3198 = vshrl.u32 %v3197, 7
        %v3199 = vsub.s32 %v3192, %v3198
        %v3200 = vrot.slane %v3172, %v3199
        %v3201 = vlaneseq
        %v3202 = vshrl.u32 %v3201, 7
        %v3203 = vsub.s32 %v3192, %v3202
        %v3204 = vrot.slane %v3175, %v3203
        %v3205 = vlaneseq
        %v3206 = vshrl.u32 %v3205, 7
        %v3207 = vsub.s32 %v3192, %v3206
        %v3208 = vrot.slane %v3178, %v3207
        %v3209 = vlaneseq
        %v3210 = vshrl.u32 %v3209, 7
        %v3211 = vsub.s32 %v3192, %v3210
        %v3212 = vrot.slane %v3181, %v3211
        %v3213 = vlaneseq
        %v3214 = vshrl.u32 %v3213, 7
        %v3215 = vsub.s32 %v3192, %v3214
        %v3216 = vrot.slane %v3184, %v3215
        %v3217 = vlaneseq
        %v3218 = vshrl.u32 %v3217, 7
        %v3219 = vsub.s32 %v3192, %v3218
        %v3220 = vrot.slane %v3187, %v3219
        %v3221 = vlaneseq
        %v3222 = vshrl.u32 %v3221, 7
        %v3223 = vsub.s32 %v3192, %v3222
        %v3224 = vrot.slane %v3190, %v3223
        %vm3225 = vcmask 1041409
        %v3226 = vsel %vm3225, %v3200, %v3196
        %vm3227 = vcmask 1042434
        %v3228 = vsel %vm3227, %v3204, %v3226
        %vm3229 = vcmask 1043459
        %v3230 = vsel %vm3229, %v3208, %v3228
        %vm3231 = vcmask 1044484
        %v3232 = vsel %vm3231, %v3212, %v3230
        %vm3233 = vcmask 1045509
        %v3234 = vsel %vm3233, %v3216, %v3232
        %vm3235 = vcmask 1046534
        %v3236 = vsel %vm3235, %v3220, %v3234
        %vm3237 = vcmask 1047559
        %v3238 = vsel %vm3237, %v3224, %v3236
        %vm3240 = vcmask 64512
        %v3241 = vsel %vm3240, %v3238, 0.0
        %3242 = vadd.xlane.f32.xlu0 %v3241
        %v3243 = vpop.xlane.xlu0 %3242
        %v3244 = vmul.f32 %v3243, %v765
        %v3245 = vsel %vm3240, %v3238, 0
        %3247 = vmatprep.subr.mxu0 0.0
        %3248 = vmatpush1.msra.mxu0 0.0
        %3249 = vmatprep.subr.mxu0 0.0
        %3250 = vmatpush1.msra.mxu0 0.0
        %3251 = vmatprep.subr.mxu0 0.0
        %3252 = vmatpush1.msra.mxu0 0.0
        %3253 = vmatprep.subr.mxu0 0.0
        %3254 = vmatpush1.msra.mxu0 0.0
        %3255 = vmatprep.subr.mxu0 0.0
        %3256 = vmatpush1.msra.mxu0 0.0
        %3257 = vmatprep.subr.mxu0 0.0
        %3258 = vmatpush1.msra.mxu0 0.0
        %3259 = vmatprep.subr.mxu0 0.0
        %3260 = vmatpush1.msra.mxu0 0.0
        %3261 = vmatprep.subr.mxu0 0.0
        %3262 = vmatpush1.msra.mxu0 0.0
        %3263 = vmatprep.subr.mxu0 0.0
        %3264 = vmatpush1.msra.mxu0 0.0
        %3265 = vmatprep.subr.mxu0 0.0
        %3266 = vmatpush1.msra.mxu0 0.0
        %3267 = vmatprep.subr.mxu0 0.0
        %3268 = vmatpush1.msra.mxu0 0.0
        %3269 = vmatprep.subr.mxu0 0.0
        %3270 = vmatpush1.msra.mxu0 0.0
        %3271 = vmatprep.subr.mxu0 0.0
        %3272 = vmatpush1.msra.mxu0 0.0
        %3273 = vmatprep.subr.mxu0 0.0
        %3274 = vmatpush1.msra.mxu0 0.0
        %3275 = vmatprep.subr.mxu0 0.0
        %3276 = vmatpush1.msra.mxu0 0.0
        %3277 = vmatprep.subr.mxu0 0.0
        %v3278 = vand.u32 %v763, 4294901760
        %3279 = vmatpush1.msra.mxu0 %v3278
        %3280 = vmatprep.subr.mxu0 0.0
        %3281 = vmatpush2.msra.mxu0 0.0
        %3282 = vmatprep.subr.mxu0 0.0
        %3283 = vmatpush2.msra.mxu0 0.0
        %3284 = vmatprep.subr.mxu0 0.0
        %3285 = vmatpush2.msra.mxu0 0.0
        %3286 = vmatprep.subr.mxu0 0.0
        %3287 = vmatpush2.msra.mxu0 0.0
        %3288 = vmatprep.subr.mxu0 0.0
        %3289 = vmatpush2.msra.mxu0 0.0
        %3290 = vmatprep.subr.mxu0 0.0
        %3291 = vmatpush2.msra.mxu0 0.0
        %3292 = vmatprep.subr.mxu0 0.0
        %3293 = vmatpush2.msra.mxu0 0.0
        %3294 = vmatprep.subr.mxu0 0.0
        %3295 = vmatpush2.msra.mxu0 0.0
        %3296 = vmatprep.subr.mxu0 0.0
        %3297 = vmatpush2.msra.mxu0 0.0
        %3298 = vmatprep.subr.mxu0 0.0
        %3299 = vmatpush2.msra.mxu0 0.0
        %3300 = vmatprep.subr.mxu0 0.0
        %3301 = vmatpush2.msra.mxu0 0.0
        %3302 = vmatprep.subr.mxu0 0.0
        %3303 = vmatpush2.msra.mxu0 0.0
        %3304 = vmatprep.subr.mxu0 0.0
        %3305 = vmatpush2.msra.mxu0 0.0
        %3306 = vmatprep.subr.mxu0 0.0
        %3307 = vmatpush2.msra.mxu0 0.0
        %3308 = vmatprep.subr.mxu0 0.0
        %3309 = vmatpush2.msra.mxu0 0.0
        %3310 = vmatprep.subr.mxu0 0.0
        %3311 = vmatpush2.msra.mxu0 0.0
        %3312 = vmatprep.mubr.f32.mxu0 0.0
        %v3313 = vand.u32 %v3245, 4294901760
        %v3314 = vsub.f32 %v3245, %v3313
        %v3315 = vand.u32 %v3314, 4294901760
        %v3316 = vsub.f32 %v3314, %v3315
        %v3317 = vand.u32 %v3316, 4294901760
        %3318 = vmatmul.mubr.f32.gmra.mxu0 %v3317
        %v3319 = vpop.f32.mrf.mxu0
        %v3320 = vadd.f32 0.0, %v3319
        %v3321 = vpop.f32.mrf.mxu0
        %3322 = vdwg.mxu0
        %3323 = vmatprep.subr.mxu0 0.0
        %3324 = vmatpush1.msra.mxu0 0.0
        %3325 = vmatprep.subr.mxu0 0.0
        %3326 = vmatpush1.msra.mxu0 0.0
        %3327 = vmatprep.subr.mxu0 0.0
        %3328 = vmatpush1.msra.mxu0 0.0
        %3329 = vmatprep.subr.mxu0 0.0
        %3330 = vmatpush1.msra.mxu0 0.0
        %3331 = vmatprep.subr.mxu0 0.0
        %3332 = vmatpush1.msra.mxu0 0.0
        %3333 = vmatprep.subr.mxu0 0.0
        %3334 = vmatpush1.msra.mxu0 0.0
        %3335 = vmatprep.subr.mxu0 0.0
        %3336 = vmatpush1.msra.mxu0 0.0
        %3337 = vmatprep.subr.mxu0 0.0
        %3338 = vmatpush1.msra.mxu0 0.0
        %3339 = vmatprep.subr.mxu0 0.0
        %3340 = vmatpush1.msra.mxu0 0.0
        %3341 = vmatprep.subr.mxu0 0.0
        %3342 = vmatpush1.msra.mxu0 0.0
        %3343 = vmatprep.subr.mxu0 0.0
        %3344 = vmatpush1.msra.mxu0 0.0
        %3345 = vmatprep.subr.mxu0 0.0
        %3346 = vmatpush1.msra.mxu0 0.0
        %3347 = vmatprep.subr.mxu0 0.0
        %3348 = vmatpush1.msra.mxu0 0.0
        %3349 = vmatprep.subr.mxu0 0.0
        %3350 = vmatpush1.msra.mxu0 0.0
        %3351 = vmatprep.subr.mxu0 0.0
        %3352 = vmatpush1.msra.mxu0 0.0
        %3353 = vmatprep.subr.mxu0 0.0
        %v3354 = vand.u32 %v763, 4294901760
        %v3355 = vsub.f32 %v763, %v3354
        %v3356 = vand.u32 %v3355, 4294901760
        %v3357 = vsub.f32 %v3355, %v3356
        %v3358 = vand.u32 %v3357, 4294901760
        %3359 = vmatpush1.msra.mxu0 %v3358
        %3360 = vmatprep.subr.mxu0 0.0
        %3361 = vmatpush2.msra.mxu0 0.0
        %3362 = vmatprep.subr.mxu0 0.0
        %3363 = vmatpush2.msra.mxu0 0.0
        %3364 = vmatprep.subr.mxu0 0.0
        %3365 = vmatpush2.msra.mxu0 0.0
        %3366 = vmatprep.subr.mxu0 0.0
        %3367 = vmatpush2.msra.mxu0 0.0
        %3368 = vmatprep.subr.mxu0 0.0
        %3369 = vmatpush2.msra.mxu0 0.0
        %3370 = vmatprep.subr.mxu0 0.0
        %3371 = vmatpush2.msra.mxu0 0.0
        %3372 = vmatprep.subr.mxu0 0.0
        %3373 = vmatpush2.msra.mxu0 0.0
        %3374 = vmatprep.subr.mxu0 0.0
        %3375 = vmatpush2.msra.mxu0 0.0
        %3376 = vmatprep.subr.mxu0 0.0
        %3377 = vmatpush2.msra.mxu0 0.0
        %3378 = vmatprep.subr.mxu0 0.0
        %3379 = vmatpush2.msra.mxu0 0.0
        %3380 = vmatprep.subr.mxu0 0.0
        %3381 = vmatpush2.msra.mxu0 0.0
        %3382 = vmatprep.subr.mxu0 0.0
        %3383 = vmatpush2.msra.mxu0 0.0
        %3384 = vmatprep.subr.mxu0 0.0
        %3385 = vmatpush2.msra.mxu0 0.0
        %3386 = vmatprep.subr.mxu0 0.0
        %3387 = vmatpush2.msra.mxu0 0.0
        %3388 = vmatprep.subr.mxu0 0.0
        %3389 = vmatpush2.msra.mxu0 0.0
        %3390 = vmatprep.subr.mxu0 0.0
        %3391 = vmatpush2.msra.mxu0 0.0
        %3392 = vmatprep.mubr.f32.mxu0 0.0
        %v3393 = vand.u32 %v3245, 4294901760
        %3394 = vmatmul.mubr.f32.gmra.mxu0 %v3393
        %v3395 = vpop.f32.mrf.mxu0
        %v3396 = vadd.f32 %v3320, %v3395
        %v3397 = vpop.f32.mrf.mxu0
        %3398 = vdwg.mxu0
        %3399 = vmatprep.subr.mxu0 0.0
        %3400 = vmatpush1.msra.mxu0 0.0
        %3401 = vmatprep.subr.mxu0 0.0
        %3402 = vmatpush1.msra.mxu0 0.0
        %3403 = vmatprep.subr.mxu0 0.0
        %3404 = vmatpush1.msra.mxu0 0.0
        %3405 = vmatprep.subr.mxu0 0.0
        %3406 = vmatpush1.msra.mxu0 0.0
        %3407 = vmatprep.subr.mxu0 0.0
        %3408 = vmatpush1.msra.mxu0 0.0
        %3409 = vmatprep.subr.mxu0 0.0
        %3410 = vmatpush1.msra.mxu0 0.0
        %3411 = vmatprep.subr.mxu0 0.0
        %3412 = vmatpush1.msra.mxu0 0.0
        %3413 = vmatprep.subr.mxu0 0.0
        %3414 = vmatpush1.msra.mxu0 0.0
        %3415 = vmatprep.subr.mxu0 0.0
        %3416 = vmatpush1.msra.mxu0 0.0
        %3417 = vmatprep.subr.mxu0 0.0
        %3418 = vmatpush1.msra.mxu0 0.0
        %3419 = vmatprep.subr.mxu0 0.0
        %3420 = vmatpush1.msra.mxu0 0.0
        %3421 = vmatprep.subr.mxu0 0.0
        %3422 = vmatpush1.msra.mxu0 0.0
        %3423 = vmatprep.subr.mxu0 0.0
        %3424 = vmatpush1.msra.mxu0 0.0
        %3425 = vmatprep.subr.mxu0 0.0
        %3426 = vmatpush1.msra.mxu0 0.0
        %3427 = vmatprep.subr.mxu0 0.0
        %3428 = vmatpush1.msra.mxu0 0.0
        %3429 = vmatprep.subr.mxu0 0.0
        %v3430 = vand.u32 %v763, 4294901760
        %v3431 = vsub.f32 %v763, %v3430
        %3432 = vmatpush1.msra.mxu0 %v3431
        %3433 = vmatprep.subr.mxu0 0.0
        %3434 = vmatpush2.msra.mxu0 0.0
        %3435 = vmatprep.subr.mxu0 0.0
        %3436 = vmatpush2.msra.mxu0 0.0
        %3437 = vmatprep.subr.mxu0 0.0
        %3438 = vmatpush2.msra.mxu0 0.0
        %3439 = vmatprep.subr.mxu0 0.0
        %3440 = vmatpush2.msra.mxu0 0.0
        %3441 = vmatprep.subr.mxu0 0.0
        %3442 = vmatpush2.msra.mxu0 0.0
        %3443 = vmatprep.subr.mxu0 0.0
        %3444 = vmatpush2.msra.mxu0 0.0
        %3445 = vmatprep.subr.mxu0 0.0
        %3446 = vmatpush2.msra.mxu0 0.0
        %3447 = vmatprep.subr.mxu0 0.0
        %3448 = vmatpush2.msra.mxu0 0.0
        %3449 = vmatprep.subr.mxu0 0.0
        %3450 = vmatpush2.msra.mxu0 0.0
        %3451 = vmatprep.subr.mxu0 0.0
        %3452 = vmatpush2.msra.mxu0 0.0
        %3453 = vmatprep.subr.mxu0 0.0
        %3454 = vmatpush2.msra.mxu0 0.0
        %3455 = vmatprep.subr.mxu0 0.0
        %3456 = vmatpush2.msra.mxu0 0.0
        %3457 = vmatprep.subr.mxu0 0.0
        %3458 = vmatpush2.msra.mxu0 0.0
        %3459 = vmatprep.subr.mxu0 0.0
        %3460 = vmatpush2.msra.mxu0 0.0
        %3461 = vmatprep.subr.mxu0 0.0
        %3462 = vmatpush2.msra.mxu0 0.0
        %3463 = vmatprep.subr.mxu0 0.0
        %3464 = vmatpush2.msra.mxu0 0.0
        %3465 = vmatprep.mubr.f32.mxu0 0.0
        %v3466 = vand.u32 %v3245, 4294901760
        %v3467 = vsub.f32 %v3245, %v3466
        %3468 = vmatmul.mubr.f32.gmra.mxu0 %v3467
        %v3469 = vpop.f32.mrf.mxu0
        %v3470 = vadd.f32 %v3396, %v3469
        %v3471 = vpop.f32.mrf.mxu0
        %3472 = vdwg.mxu0
        %3473 = vmatprep.subr.mxu0 0.0
        %3474 = vmatpush1.msra.mxu0 0.0
        %3475 = vmatprep.subr.mxu0 0.0
        %3476 = vmatpush1.msra.mxu0 0.0
        %3477 = vmatprep.subr.mxu0 0.0
        %3478 = vmatpush1.msra.mxu0 0.0
        %3479 = vmatprep.subr.mxu0 0.0
        %3480 = vmatpush1.msra.mxu0 0.0
        %3481 = vmatprep.subr.mxu0 0.0
        %3482 = vmatpush1.msra.mxu0 0.0
        %3483 = vmatprep.subr.mxu0 0.0
        %3484 = vmatpush1.msra.mxu0 0.0
        %3485 = vmatprep.subr.mxu0 0.0
        %3486 = vmatpush1.msra.mxu0 0.0
        %3487 = vmatprep.subr.mxu0 0.0
        %3488 = vmatpush1.msra.mxu0 0.0
        %3489 = vmatprep.subr.mxu0 0.0
        %3490 = vmatpush1.msra.mxu0 0.0
        %3491 = vmatprep.subr.mxu0 0.0
        %3492 = vmatpush1.msra.mxu0 0.0
        %3493 = vmatprep.subr.mxu0 0.0
        %3494 = vmatpush1.msra.mxu0 0.0
        %3495 = vmatprep.subr.mxu0 0.0
        %3496 = vmatpush1.msra.mxu0 0.0
        %3497 = vmatprep.subr.mxu0 0.0
        %3498 = vmatpush1.msra.mxu0 0.0
        %3499 = vmatprep.subr.mxu0 0.0
        %3500 = vmatpush1.msra.mxu0 0.0
        %3501 = vmatprep.subr.mxu0 0.0
        %3502 = vmatpush1.msra.mxu0 0.0
        %3503 = vmatprep.subr.mxu0 0.0
        %v3504 = vand.u32 %v763, 4294901760
        %3505 = vmatpush1.msra.mxu0 %v3504
        %3506 = vmatprep.subr.mxu0 0.0
        %3507 = vmatpush2.msra.mxu0 0.0
        %3508 = vmatprep.subr.mxu0 0.0
        %3509 = vmatpush2.msra.mxu0 0.0
        %3510 = vmatprep.subr.mxu0 0.0
        %3511 = vmatpush2.msra.mxu0 0.0
        %3512 = vmatprep.subr.mxu0 0.0
        %3513 = vmatpush2.msra.mxu0 0.0
        %3514 = vmatprep.subr.mxu0 0.0
        %3515 = vmatpush2.msra.mxu0 0.0
        %3516 = vmatprep.subr.mxu0 0.0
        %3517 = vmatpush2.msra.mxu0 0.0
        %3518 = vmatprep.subr.mxu0 0.0
        %3519 = vmatpush2.msra.mxu0 0.0
        %3520 = vmatprep.subr.mxu0 0.0
        %3521 = vmatpush2.msra.mxu0 0.0
        %3522 = vmatprep.subr.mxu0 0.0
        %3523 = vmatpush2.msra.mxu0 0.0
        %3524 = vmatprep.subr.mxu0 0.0
        %3525 = vmatpush2.msra.mxu0 0.0
        %3526 = vmatprep.subr.mxu0 0.0
        %3527 = vmatpush2.msra.mxu0 0.0
        %3528 = vmatprep.subr.mxu0 0.0
        %3529 = vmatpush2.msra.mxu0 0.0
        %3530 = vmatprep.subr.mxu0 0.0
        %3531 = vmatpush2.msra.mxu0 0.0
        %3532 = vmatprep.subr.mxu0 0.0
        %3533 = vmatpush2.msra.mxu0 0.0
        %3534 = vmatprep.subr.mxu0 0.0
        %3535 = vmatpush2.msra.mxu0 0.0
        %3536 = vmatprep.subr.mxu0 0.0
        %3537 = vmatpush2.msra.mxu0 0.0
        %3538 = vmatprep.mubr.f32.mxu0 0.0
        %v3539 = vand.u32 %v3245, 4294901760
        %v3540 = vsub.f32 %v3245, %v3539
        %v3541 = vand.u32 %v3540, 4294901760
        %3542 = vmatmul.mubr.f32.gmra.mxu0 %v3541
        %v3543 = vpop.f32.mrf.mxu0
        %v3544 = vadd.f32 %v3470, %v3543
        %v3545 = vpop.f32.mrf.mxu0
        %3546 = vdwg.mxu0
        %3547 = vmatprep.subr.mxu0 0.0
        %3548 = vmatpush1.msra.mxu0 0.0
        %3549 = vmatprep.subr.mxu0 0.0
        %3550 = vmatpush1.msra.mxu0 0.0
        %3551 = vmatprep.subr.mxu0 0.0
        %3552 = vmatpush1.msra.mxu0 0.0
        %3553 = vmatprep.subr.mxu0 0.0
        %3554 = vmatpush1.msra.mxu0 0.0
        %3555 = vmatprep.subr.mxu0 0.0
        %3556 = vmatpush1.msra.mxu0 0.0
        %3557 = vmatprep.subr.mxu0 0.0
        %3558 = vmatpush1.msra.mxu0 0.0
        %3559 = vmatprep.subr.mxu0 0.0
        %3560 = vmatpush1.msra.mxu0 0.0
        %3561 = vmatprep.subr.mxu0 0.0
        %3562 = vmatpush1.msra.mxu0 0.0
        %3563 = vmatprep.subr.mxu0 0.0
        %3564 = vmatpush1.msra.mxu0 0.0
        %3565 = vmatprep.subr.mxu0 0.0
        %3566 = vmatpush1.msra.mxu0 0.0
        %3567 = vmatprep.subr.mxu0 0.0
        %3568 = vmatpush1.msra.mxu0 0.0
        %3569 = vmatprep.subr.mxu0 0.0
        %3570 = vmatpush1.msra.mxu0 0.0
        %3571 = vmatprep.subr.mxu0 0.0
        %3572 = vmatpush1.msra.mxu0 0.0
        %3573 = vmatprep.subr.mxu0 0.0
        %3574 = vmatpush1.msra.mxu0 0.0
        %3575 = vmatprep.subr.mxu0 0.0
        %3576 = vmatpush1.msra.mxu0 0.0
        %3577 = vmatprep.subr.mxu0 0.0
        %v3578 = vand.u32 %v763, 4294901760
        %v3579 = vsub.f32 %v763, %v3578
        %v3580 = vand.u32 %v3579, 4294901760
        %3581 = vmatpush1.msra.mxu0 %v3580
        %3582 = vmatprep.subr.mxu0 0.0
        %3583 = vmatpush2.msra.mxu0 0.0
        %3584 = vmatprep.subr.mxu0 0.0
        %3585 = vmatpush2.msra.mxu0 0.0
        %3586 = vmatprep.subr.mxu0 0.0
        %3587 = vmatpush2.msra.mxu0 0.0
        %3588 = vmatprep.subr.mxu0 0.0
        %3589 = vmatpush2.msra.mxu0 0.0
        %3590 = vmatprep.subr.mxu0 0.0
        %3591 = vmatpush2.msra.mxu0 0.0
        %3592 = vmatprep.subr.mxu0 0.0
        %3593 = vmatpush2.msra.mxu0 0.0
        %3594 = vmatprep.subr.mxu0 0.0
        %3595 = vmatpush2.msra.mxu0 0.0
        %3596 = vmatprep.subr.mxu0 0.0
        %3597 = vmatpush2.msra.mxu0 0.0
        %3598 = vmatprep.subr.mxu0 0.0
        %3599 = vmatpush2.msra.mxu0 0.0
        %3600 = vmatprep.subr.mxu0 0.0
        %3601 = vmatpush2.msra.mxu0 0.0
        %3602 = vmatprep.subr.mxu0 0.0
        %3603 = vmatpush2.msra.mxu0 0.0
        %3604 = vmatprep.subr.mxu0 0.0
        %3605 = vmatpush2.msra.mxu0 0.0
        %3606 = vmatprep.subr.mxu0 0.0
        %3607 = vmatpush2.msra.mxu0 0.0
        %3608 = vmatprep.subr.mxu0 0.0
        %3609 = vmatpush2.msra.mxu0 0.0
        %3610 = vmatprep.subr.mxu0 0.0
        %3611 = vmatpush2.msra.mxu0 0.0
        %3612 = vmatprep.subr.mxu0 0.0
        %3613 = vmatpush2.msra.mxu0 0.0
        %3614 = vmatprep.mubr.f32.mxu0 0.0
        %v3615 = vand.u32 %v3245, 4294901760
        %3616 = vmatmul.mubr.f32.gmra.mxu0 %v3615
        %v3617 = vpop.f32.mrf.mxu0
        %v3618 = vadd.f32 %v3544, %v3617
        %v3619 = vpop.f32.mrf.mxu0
        %3620 = vdwg.mxu0
        %3621 = vmatprep.subr.mxu0 0.0
        %3622 = vmatpush1.msra.mxu0 0.0
        %3623 = vmatprep.subr.mxu0 0.0
        %3624 = vmatpush1.msra.mxu0 0.0
        %3625 = vmatprep.subr.mxu0 0.0
        %3626 = vmatpush1.msra.mxu0 0.0
        %3627 = vmatprep.subr.mxu0 0.0
        %3628 = vmatpush1.msra.mxu0 0.0
        %3629 = vmatprep.subr.mxu0 0.0
        %3630 = vmatpush1.msra.mxu0 0.0
        %3631 = vmatprep.subr.mxu0 0.0
        %3632 = vmatpush1.msra.mxu0 0.0
        %3633 = vmatprep.subr.mxu0 0.0
        %3634 = vmatpush1.msra.mxu0 0.0
        %3635 = vmatprep.subr.mxu0 0.0
        %3636 = vmatpush1.msra.mxu0 0.0
        %3637 = vmatprep.subr.mxu0 0.0
        %3638 = vmatpush1.msra.mxu0 0.0
        %3639 = vmatprep.subr.mxu0 0.0
        %3640 = vmatpush1.msra.mxu0 0.0
        %3641 = vmatprep.subr.mxu0 0.0
        %3642 = vmatpush1.msra.mxu0 0.0
        %3643 = vmatprep.subr.mxu0 0.0
        %3644 = vmatpush1.msra.mxu0 0.0
        %3645 = vmatprep.subr.mxu0 0.0
        %3646 = vmatpush1.msra.mxu0 0.0
        %3647 = vmatprep.subr.mxu0 0.0
        %3648 = vmatpush1.msra.mxu0 0.0
        %3649 = vmatprep.subr.mxu0 0.0
        %3650 = vmatpush1.msra.mxu0 0.0
        %3651 = vmatprep.subr.mxu0 0.0
        %v3652 = vand.u32 %v763, 4294901760
        %3653 = vmatpush1.msra.mxu0 %v3652
        %3654 = vmatprep.subr.mxu0 0.0
        %3655 = vmatpush2.msra.mxu0 0.0
        %3656 = vmatprep.subr.mxu0 0.0
        %3657 = vmatpush2.msra.mxu0 0.0
        %3658 = vmatprep.subr.mxu0 0.0
        %3659 = vmatpush2.msra.mxu0 0.0
        %3660 = vmatprep.subr.mxu0 0.0
        %3661 = vmatpush2.msra.mxu0 0.0
        %3662 = vmatprep.subr.mxu0 0.0
        %3663 = vmatpush2.msra.mxu0 0.0
        %3664 = vmatprep.subr.mxu0 0.0
        %3665 = vmatpush2.msra.mxu0 0.0
        %3666 = vmatprep.subr.mxu0 0.0
        %3667 = vmatpush2.msra.mxu0 0.0
        %3668 = vmatprep.subr.mxu0 0.0
        %3669 = vmatpush2.msra.mxu0 0.0
        %3670 = vmatprep.subr.mxu0 0.0
        %3671 = vmatpush2.msra.mxu0 0.0
        %3672 = vmatprep.subr.mxu0 0.0
        %3673 = vmatpush2.msra.mxu0 0.0
        %3674 = vmatprep.subr.mxu0 0.0
        %3675 = vmatpush2.msra.mxu0 0.0
        %3676 = vmatprep.subr.mxu0 0.0
        %3677 = vmatpush2.msra.mxu0 0.0
        %3678 = vmatprep.subr.mxu0 0.0
        %3679 = vmatpush2.msra.mxu0 0.0
        %3680 = vmatprep.subr.mxu0 0.0
        %3681 = vmatpush2.msra.mxu0 0.0
        %3682 = vmatprep.subr.mxu0 0.0
        %3683 = vmatpush2.msra.mxu0 0.0
        %3684 = vmatprep.subr.mxu0 0.0
        %3685 = vmatpush2.msra.mxu0 0.0
        %3686 = vmatprep.mubr.f32.mxu0 0.0
        %v3687 = vand.u32 %v3245, 4294901760
        %3688 = vmatmul.mubr.f32.gmra.mxu0 %v3687
        %v3689 = vpop.f32.mrf.mxu0
        %v3690 = vadd.f32 %v3618, %v3689
        %v3691 = vpop.f32.mrf.mxu0
        %3692 = vdwg.mxu0
        %v3693 = vsub.f32 %v3244, %v3690
        %v3694 = vadd.f32 %v765, %v3693
        %3695 = vst.msk [vmem:[%s761] sm:$0xff] %vm767, %v3694
        %v3696 = vsel %vm1253, %v2834, 0.0
        %v3697 = vrot.slane %v3696, 4
        %v3698 = vadd.f32 %v3696, %v3697
        %v3699 = vrot.slane %v3698, 2
        %v3700 = vadd.f32 %v3698, %v3699
        %v3701 = vrot.slane %v3700, 1
        %v3702 = vadd.f32 %v3700, %v3701
        %v3703 = vsel %vm1253, %v2835, 0.0
        %v3704 = vrot.slane %v3703, 4
        %v3705 = vadd.f32 %v3703, %v3704
        %v3706 = vrot.slane %v3705, 2
        %v3707 = vadd.f32 %v3705, %v3706
        %v3708 = vrot.slane %v3707, 1
        %v3709 = vadd.f32 %v3707, %v3708
        %v3710 = vsel %vm1253, %v2836, 0.0
        %v3711 = vrot.slane %v3710, 4
        %v3712 = vadd.f32 %v3710, %v3711
        %v3713 = vrot.slane %v3712, 2
        %v3714 = vadd.f32 %v3712, %v3713
        %v3715 = vrot.slane %v3714, 1
        %v3716 = vadd.f32 %v3714, %v3715
        %v3717 = vsel %vm1253, %v2837, 0.0
        %v3718 = vrot.slane %v3717, 4
        %v3719 = vadd.f32 %v3717, %v3718
        %v3720 = vrot.slane %v3719, 2
        %v3721 = vadd.f32 %v3719, %v3720
        %v3722 = vrot.slane %v3721, 1
        %v3723 = vadd.f32 %v3721, %v3722
        %v3724 = vsel %vm1253, %v2838, 0.0
        %v3725 = vrot.slane %v3724, 4
        %v3726 = vadd.f32 %v3724, %v3725
        %v3727 = vrot.slane %v3726, 2
        %v3728 = vadd.f32 %v3726, %v3727
        %v3729 = vrot.slane %v3728, 1
        %v3730 = vadd.f32 %v3728, %v3729
        %v3731 = vsel %vm1253, %v2839, 0.0
        %v3732 = vrot.slane %v3731, 4
        %v3733 = vadd.f32 %v3731, %v3732
        %v3734 = vrot.slane %v3733, 2
        %v3735 = vadd.f32 %v3733, %v3734
        %v3736 = vrot.slane %v3735, 1
        %v3737 = vadd.f32 %v3735, %v3736
        %v3738 = vsel %vm1253, %v2840, 0.0
        %v3739 = vrot.slane %v3738, 4
        %v3740 = vadd.f32 %v3738, %v3739
        %v3741 = vrot.slane %v3740, 2
        %v3742 = vadd.f32 %v3740, %v3741
        %v3743 = vrot.slane %v3742, 1
        %v3744 = vadd.f32 %v3742, %v3743
        %v3745 = vsel %vm1253, %v2841, 0.0
        %v3746 = vrot.slane %v3745, 4
        %v3747 = vadd.f32 %v3745, %v3746
        %v3748 = vrot.slane %v3747, 2
        %v3749 = vadd.f32 %v3747, %v3748
        %v3750 = vrot.slane %v3749, 1
        %v3751 = vadd.f32 %v3749, %v3750
        %v3752 = vld [vmem:[%s14] sm:$0xff]
        %v3753 = vld [vmem:[%s14 + $0x8] sm:$0xff]
        %v3754 = vld [vmem:[%s14 + $0x10] sm:$0xff]
        %v3755 = vld [vmem:[%s14 + $0x18] sm:$0xff]
        %v3756 = vld [vmem:[%s15] sm:$0xff]
        %v3757 = vld [vmem:[%s15 + $0x8] sm:$0xff]
        %v3758 = vld [vmem:[%s15 + $0x10] sm:$0xff]
        %v3759 = vld [vmem:[%s15 + $0x18] sm:$0xff]
        %v3768 = vsel %vm3225, %v3709, %v3702
        %v3769 = vsel %vm3227, %v3716, %v3768
        %v3770 = vsel %vm3229, %v3723, %v3769
        %v3771 = vsel %vm3231, %v3730, %v3770
        %v3772 = vsel %vm3233, %v3737, %v3771
        %v3773 = vsel %vm3235, %v3744, %v3772
        %v3774 = vsel %vm3237, %v3751, %v3773
        %v3775 = vsel %vm1253, %v3774, 0
        %3777 = vmatprep.subr.mxu0 0.0
        %3778 = vmatpush1.msra.mxu0 0.0
        %3779 = vmatprep.subr.mxu0 0.0
        %3780 = vmatpush1.msra.mxu0 0.0
        %3781 = vmatprep.subr.mxu0 0.0
        %3782 = vmatpush1.msra.mxu0 0.0
        %3783 = vmatprep.subr.mxu0 0.0
        %3784 = vmatpush1.msra.mxu0 0.0
        %3785 = vmatprep.subr.mxu0 0.0
        %3786 = vmatpush1.msra.mxu0 0.0
        %3787 = vmatprep.subr.mxu0 0.0
        %3788 = vmatpush1.msra.mxu0 0.0
        %3789 = vmatprep.subr.mxu0 0.0
        %3790 = vmatpush1.msra.mxu0 0.0
        %3791 = vmatprep.subr.mxu0 0.0
        %3792 = vmatpush1.msra.mxu0 0.0
        %3793 = vmatprep.subr.mxu0 0.0
        %3794 = vmatpush1.msra.mxu0 0.0
        %3795 = vmatprep.subr.mxu0 0.0
        %3796 = vmatpush1.msra.mxu0 0.0
        %3797 = vmatprep.subr.mxu0 0.0
        %3798 = vmatpush1.msra.mxu0 0.0
        %3799 = vmatprep.subr.mxu0 0.0
        %3800 = vmatpush1.msra.mxu0 0.0
        %3801 = vmatprep.subr.mxu0 0.0
        %v3802 = vand.u32 %v3759, 4294901760
        %3803 = vmatpush1.msra.mxu0 %v3802
        %3804 = vmatprep.subr.mxu0 0.0
        %v3805 = vand.u32 %v3758, 4294901760
        %3806 = vmatpush1.msra.mxu0 %v3805
        %3807 = vmatprep.subr.mxu0 0.0
        %v3808 = vand.u32 %v3757, 4294901760
        %3809 = vmatpush1.msra.mxu0 %v3808
        %3810 = vmatprep.subr.mxu0 0.0
        %v3811 = vand.u32 %v3756, 4294901760
        %3812 = vmatpush1.msra.mxu0 %v3811
        %3813 = vmatprep.subr.mxu0 0.0
        %3814 = vmatpush2.msra.mxu0 0.0
        %3815 = vmatprep.subr.mxu0 0.0
        %3816 = vmatpush2.msra.mxu0 0.0
        %3817 = vmatprep.subr.mxu0 0.0
        %3818 = vmatpush2.msra.mxu0 0.0
        %3819 = vmatprep.subr.mxu0 0.0
        %3820 = vmatpush2.msra.mxu0 0.0
        %3821 = vmatprep.subr.mxu0 0.0
        %3822 = vmatpush2.msra.mxu0 0.0
        %3823 = vmatprep.subr.mxu0 0.0
        %3824 = vmatpush2.msra.mxu0 0.0
        %3825 = vmatprep.subr.mxu0 0.0
        %3826 = vmatpush2.msra.mxu0 0.0
        %3827 = vmatprep.subr.mxu0 0.0
        %3828 = vmatpush2.msra.mxu0 0.0
        %3829 = vmatprep.subr.mxu0 0.0
        %3830 = vmatpush2.msra.mxu0 0.0
        %3831 = vmatprep.subr.mxu0 0.0
        %3832 = vmatpush2.msra.mxu0 0.0
        %3833 = vmatprep.subr.mxu0 0.0
        %3834 = vmatpush2.msra.mxu0 0.0
        %3835 = vmatprep.subr.mxu0 0.0
        %3836 = vmatpush2.msra.mxu0 0.0
        %3837 = vmatprep.subr.mxu0 0.0
        %3838 = vmatpush2.msra.mxu0 0.0
        %3839 = vmatprep.subr.mxu0 0.0
        %3840 = vmatpush2.msra.mxu0 0.0
        %3841 = vmatprep.subr.mxu0 0.0
        %3842 = vmatpush2.msra.mxu0 0.0
        %3843 = vmatprep.subr.mxu0 0.0
        %3844 = vmatpush2.msra.mxu0 0.0
        %3845 = vmatprep.mubr.f32.mxu0 0.0
        %v3846 = vand.u32 %v3775, 4294901760
        %v3847 = vsub.f32 %v3775, %v3846
        %v3848 = vand.u32 %v3847, 4294901760
        %v3849 = vsub.f32 %v3847, %v3848
        %v3850 = vand.u32 %v3849, 4294901760
        %3851 = vmatmul.mubr.f32.gmra.mxu0 %v3850
        %v3852 = vpop.f32.mrf.mxu0
        %v3853 = vadd.f32 0.0, %v3852
        %v3854 = vpop.f32.mrf.mxu0
        %3855 = vdwg.mxu0
        %3856 = vmatprep.subr.mxu0 0.0
        %3857 = vmatpush1.msra.mxu0 0.0
        %3858 = vmatprep.subr.mxu0 0.0
        %3859 = vmatpush1.msra.mxu0 0.0
        %3860 = vmatprep.subr.mxu0 0.0
        %3861 = vmatpush1.msra.mxu0 0.0
        %3862 = vmatprep.subr.mxu0 0.0
        %3863 = vmatpush1.msra.mxu0 0.0
        %3864 = vmatprep.subr.mxu0 0.0
        %3865 = vmatpush1.msra.mxu0 0.0
        %3866 = vmatprep.subr.mxu0 0.0
        %3867 = vmatpush1.msra.mxu0 0.0
        %3868 = vmatprep.subr.mxu0 0.0
        %3869 = vmatpush1.msra.mxu0 0.0
        %3870 = vmatprep.subr.mxu0 0.0
        %3871 = vmatpush1.msra.mxu0 0.0
        %3872 = vmatprep.subr.mxu0 0.0
        %3873 = vmatpush1.msra.mxu0 0.0
        %3874 = vmatprep.subr.mxu0 0.0
        %3875 = vmatpush1.msra.mxu0 0.0
        %3876 = vmatprep.subr.mxu0 0.0
        %3877 = vmatpush1.msra.mxu0 0.0
        %3878 = vmatprep.subr.mxu0 0.0
        %3879 = vmatpush1.msra.mxu0 0.0
        %3880 = vmatprep.subr.mxu0 0.0
        %v3881 = vand.u32 %v3759, 4294901760
        %v3882 = vsub.f32 %v3759, %v3881
        %v3883 = vand.u32 %v3882, 4294901760
        %v3884 = vsub.f32 %v3882, %v3883
        %v3885 = vand.u32 %v3884, 4294901760
        %3886 = vmatpush1.msra.mxu0 %v3885
        %3887 = vmatprep.subr.mxu0 0.0
        %v3888 = vand.u32 %v3758, 4294901760
        %v3889 = vsub.f32 %v3758, %v3888
        %v3890 = vand.u32 %v3889, 4294901760
        %v3891 = vsub.f32 %v3889, %v3890
        %v3892 = vand.u32 %v3891, 4294901760
        %3893 = vmatpush1.msra.mxu0 %v3892
        %3894 = vmatprep.subr.mxu0 0.0
        %v3895 = vand.u32 %v3757, 4294901760
        %v3896 = vsub.f32 %v3757, %v3895
        %v3897 = vand.u32 %v3896, 4294901760
        %v3898 = vsub.f32 %v3896, %v3897
        %v3899 = vand.u32 %v3898, 4294901760
        %3900 = vmatpush1.msra.mxu0 %v3899
        %3901 = vmatprep.subr.mxu0 0.0
        %v3902 = vand.u32 %v3756, 4294901760
        %v3903 = vsub.f32 %v3756, %v3902
        %v3904 = vand.u32 %v3903, 4294901760
        %v3905 = vsub.f32 %v3903, %v3904
        %v3906 = vand.u32 %v3905, 4294901760
        %3907 = vmatpush1.msra.mxu0 %v3906
        %3908 = vmatprep.subr.mxu0 0.0
        %3909 = vmatpush2.msra.mxu0 0.0
        %3910 = vmatprep.subr.mxu0 0.0
        %3911 = vmatpush2.msra.mxu0 0.0
        %3912 = vmatprep.subr.mxu0 0.0
        %3913 = vmatpush2.msra.mxu0 0.0
        %3914 = vmatprep.subr.mxu0 0.0
        %3915 = vmatpush2.msra.mxu0 0.0
        %3916 = vmatprep.subr.mxu0 0.0
        %3917 = vmatpush2.msra.mxu0 0.0
        %3918 = vmatprep.subr.mxu0 0.0
        %3919 = vmatpush2.msra.mxu0 0.0
        %3920 = vmatprep.subr.mxu0 0.0
        %3921 = vmatpush2.msra.mxu0 0.0
        %3922 = vmatprep.subr.mxu0 0.0
        %3923 = vmatpush2.msra.mxu0 0.0
        %3924 = vmatprep.subr.mxu0 0.0
        %3925 = vmatpush2.msra.mxu0 0.0
        %3926 = vmatprep.subr.mxu0 0.0
        %3927 = vmatpush2.msra.mxu0 0.0
        %3928 = vmatprep.subr.mxu0 0.0
        %3929 = vmatpush2.msra.mxu0 0.0
        %3930 = vmatprep.subr.mxu0 0.0
        %3931 = vmatpush2.msra.mxu0 0.0
        %3932 = vmatprep.subr.mxu0 0.0
        %3933 = vmatpush2.msra.mxu0 0.0
        %3934 = vmatprep.subr.mxu0 0.0
        %3935 = vmatpush2.msra.mxu0 0.0
        %3936 = vmatprep.subr.mxu0 0.0
        %3937 = vmatpush2.msra.mxu0 0.0
        %3938 = vmatprep.subr.mxu0 0.0
        %3939 = vmatpush2.msra.mxu0 0.0
        %3940 = vmatprep.mubr.f32.mxu0 0.0
        %v3941 = vand.u32 %v3775, 4294901760
        %3942 = vmatmul.mubr.f32.gmra.mxu0 %v3941
        %v3943 = vpop.f32.mrf.mxu0
        %v3944 = vadd.f32 %v3853, %v3943
        %v3945 = vpop.f32.mrf.mxu0
        %3946 = vdwg.mxu0
        %3947 = vmatprep.subr.mxu0 0.0
        %3948 = vmatpush1.msra.mxu0 0.0
        %3949 = vmatprep.subr.mxu0 0.0
        %3950 = vmatpush1.msra.mxu0 0.0
        %3951 = vmatprep.subr.mxu0 0.0
        %3952 = vmatpush1.msra.mxu0 0.0
        %3953 = vmatprep.subr.mxu0 0.0
        %3954 = vmatpush1.msra.mxu0 0.0
        %3955 = vmatprep.subr.mxu0 0.0
        %3956 = vmatpush1.msra.mxu0 0.0
        %3957 = vmatprep.subr.mxu0 0.0
        %3958 = vmatpush1.msra.mxu0 0.0
        %3959 = vmatprep.subr.mxu0 0.0
        %3960 = vmatpush1.msra.mxu0 0.0
        %3961 = vmatprep.subr.mxu0 0.0
        %3962 = vmatpush1.msra.mxu0 0.0
        %3963 = vmatprep.subr.mxu0 0.0
        %3964 = vmatpush1.msra.mxu0 0.0
        %3965 = vmatprep.subr.mxu0 0.0
        %3966 = vmatpush1.msra.mxu0 0.0
        %3967 = vmatprep.subr.mxu0 0.0
        %3968 = vmatpush1.msra.mxu0 0.0
        %3969 = vmatprep.subr.mxu0 0.0
        %3970 = vmatpush1.msra.mxu0 0.0
        %3971 = vmatprep.subr.mxu0 0.0
        %v3972 = vand.u32 %v3759, 4294901760
        %v3973 = vsub.f32 %v3759, %v3972
        %3974 = vmatpush1.msra.mxu0 %v3973
        %3975 = vmatprep.subr.mxu0 0.0
        %v3976 = vand.u32 %v3758, 4294901760
        %v3977 = vsub.f32 %v3758, %v3976
        %3978 = vmatpush1.msra.mxu0 %v3977
        %3979 = vmatprep.subr.mxu0 0.0
        %v3980 = vand.u32 %v3757, 4294901760
        %v3981 = vsub.f32 %v3757, %v3980
        %3982 = vmatpush1.msra.mxu0 %v3981
        %3983 = vmatprep.subr.mxu0 0.0
        %v3984 = vand.u32 %v3756, 4294901760
        %v3985 = vsub.f32 %v3756, %v3984
        %3986 = vmatpush1.msra.mxu0 %v3985
        %3987 = vmatprep.subr.mxu0 0.0
        %3988 = vmatpush2.msra.mxu0 0.0
        %3989 = vmatprep.subr.mxu0 0.0
        %3990 = vmatpush2.msra.mxu0 0.0
        %3991 = vmatprep.subr.mxu0 0.0
        %3992 = vmatpush2.msra.mxu0 0.0
        %3993 = vmatprep.subr.mxu0 0.0
        %3994 = vmatpush2.msra.mxu0 0.0
        %3995 = vmatprep.subr.mxu0 0.0
        %3996 = vmatpush2.msra.mxu0 0.0
        %3997 = vmatprep.subr.mxu0 0.0
        %3998 = vmatpush2.msra.mxu0 0.0
        %3999 = vmatprep.subr.mxu0 0.0
        %4000 = vmatpush2.msra.mxu0 0.0
        %4001 = vmatprep.subr.mxu0 0.0
        %4002 = vmatpush2.msra.mxu0 0.0
        %4003 = vmatprep.subr.mxu0 0.0
        %4004 = vmatpush2.msra.mxu0 0.0
        %4005 = vmatprep.subr.mxu0 0.0
        %4006 = vmatpush2.msra.mxu0 0.0
        %4007 = vmatprep.subr.mxu0 0.0
        %4008 = vmatpush2.msra.mxu0 0.0
        %4009 = vmatprep.subr.mxu0 0.0
        %4010 = vmatpush2.msra.mxu0 0.0
        %4011 = vmatprep.subr.mxu0 0.0
        %4012 = vmatpush2.msra.mxu0 0.0
        %4013 = vmatprep.subr.mxu0 0.0
        %4014 = vmatpush2.msra.mxu0 0.0
        %4015 = vmatprep.subr.mxu0 0.0
        %4016 = vmatpush2.msra.mxu0 0.0
        %4017 = vmatprep.subr.mxu0 0.0
        %4018 = vmatpush2.msra.mxu0 0.0
        %4019 = vmatprep.mubr.f32.mxu0 0.0
        %v4020 = vand.u32 %v3775, 4294901760
        %v4021 = vsub.f32 %v3775, %v4020
        %4022 = vmatmul.mubr.f32.gmra.mxu0 %v4021
        %v4023 = vpop.f32.mrf.mxu0
        %v4024 = vadd.f32 %v3944, %v4023
        %v4025 = vpop.f32.mrf.mxu0
        %4026 = vdwg.mxu0
        %4027 = vmatprep.subr.mxu0 0.0
        %4028 = vmatpush1.msra.mxu0 0.0
        %4029 = vmatprep.subr.mxu0 0.0
        %4030 = vmatpush1.msra.mxu0 0.0
        %4031 = vmatprep.subr.mxu0 0.0
        %4032 = vmatpush1.msra.mxu0 0.0
        %4033 = vmatprep.subr.mxu0 0.0
        %4034 = vmatpush1.msra.mxu0 0.0
        %4035 = vmatprep.subr.mxu0 0.0
        %4036 = vmatpush1.msra.mxu0 0.0
        %4037 = vmatprep.subr.mxu0 0.0
        %4038 = vmatpush1.msra.mxu0 0.0
        %4039 = vmatprep.subr.mxu0 0.0
        %4040 = vmatpush1.msra.mxu0 0.0
        %4041 = vmatprep.subr.mxu0 0.0
        %4042 = vmatpush1.msra.mxu0 0.0
        %4043 = vmatprep.subr.mxu0 0.0
        %4044 = vmatpush1.msra.mxu0 0.0
        %4045 = vmatprep.subr.mxu0 0.0
        %4046 = vmatpush1.msra.mxu0 0.0
        %4047 = vmatprep.subr.mxu0 0.0
        %4048 = vmatpush1.msra.mxu0 0.0
        %4049 = vmatprep.subr.mxu0 0.0
        %4050 = vmatpush1.msra.mxu0 0.0
        %4051 = vmatprep.subr.mxu0 0.0
        %v4052 = vand.u32 %v3759, 4294901760
        %4053 = vmatpush1.msra.mxu0 %v4052
        %4054 = vmatprep.subr.mxu0 0.0
        %v4055 = vand.u32 %v3758, 4294901760
        %4056 = vmatpush1.msra.mxu0 %v4055
        %4057 = vmatprep.subr.mxu0 0.0
        %v4058 = vand.u32 %v3757, 4294901760
        %4059 = vmatpush1.msra.mxu0 %v4058
        %4060 = vmatprep.subr.mxu0 0.0
        %v4061 = vand.u32 %v3756, 4294901760
        %4062 = vmatpush1.msra.mxu0 %v4061
        %4063 = vmatprep.subr.mxu0 0.0
        %4064 = vmatpush2.msra.mxu0 0.0
        %4065 = vmatprep.subr.mxu0 0.0
        %4066 = vmatpush2.msra.mxu0 0.0
        %4067 = vmatprep.subr.mxu0 0.0
        %4068 = vmatpush2.msra.mxu0 0.0
        %4069 = vmatprep.subr.mxu0 0.0
        %4070 = vmatpush2.msra.mxu0 0.0
        %4071 = vmatprep.subr.mxu0 0.0
        %4072 = vmatpush2.msra.mxu0 0.0
        %4073 = vmatprep.subr.mxu0 0.0
        %4074 = vmatpush2.msra.mxu0 0.0
        %4075 = vmatprep.subr.mxu0 0.0
        %4076 = vmatpush2.msra.mxu0 0.0
        %4077 = vmatprep.subr.mxu0 0.0
        %4078 = vmatpush2.msra.mxu0 0.0
        %4079 = vmatprep.subr.mxu0 0.0
        %4080 = vmatpush2.msra.mxu0 0.0
        %4081 = vmatprep.subr.mxu0 0.0
        %4082 = vmatpush2.msra.mxu0 0.0
        %4083 = vmatprep.subr.mxu0 0.0
        %4084 = vmatpush2.msra.mxu0 0.0
        %4085 = vmatprep.subr.mxu0 0.0
        %4086 = vmatpush2.msra.mxu0 0.0
        %4087 = vmatprep.subr.mxu0 0.0
        %4088 = vmatpush2.msra.mxu0 0.0
        %4089 = vmatprep.subr.mxu0 0.0
        %4090 = vmatpush2.msra.mxu0 0.0
        %4091 = vmatprep.subr.mxu0 0.0
        %4092 = vmatpush2.msra.mxu0 0.0
        %4093 = vmatprep.subr.mxu0 0.0
        %4094 = vmatpush2.msra.mxu0 0.0
        %4095 = vmatprep.mubr.f32.mxu0 0.0
        %v4096 = vand.u32 %v3775, 4294901760
        %v4097 = vsub.f32 %v3775, %v4096
        %v4098 = vand.u32 %v4097, 4294901760
        %4099 = vmatmul.mubr.f32.gmra.mxu0 %v4098
        %v4100 = vpop.f32.mrf.mxu0
        %v4101 = vadd.f32 %v4024, %v4100
        %v4102 = vpop.f32.mrf.mxu0
        %4103 = vdwg.mxu0
        %4104 = vmatprep.subr.mxu0 0.0
        %4105 = vmatpush1.msra.mxu0 0.0
        %4106 = vmatprep.subr.mxu0 0.0
        %4107 = vmatpush1.msra.mxu0 0.0
        %4108 = vmatprep.subr.mxu0 0.0
        %4109 = vmatpush1.msra.mxu0 0.0
        %4110 = vmatprep.subr.mxu0 0.0
        %4111 = vmatpush1.msra.mxu0 0.0
        %4112 = vmatprep.subr.mxu0 0.0
        %4113 = vmatpush1.msra.mxu0 0.0
        %4114 = vmatprep.subr.mxu0 0.0
        %4115 = vmatpush1.msra.mxu0 0.0
        %4116 = vmatprep.subr.mxu0 0.0
        %4117 = vmatpush1.msra.mxu0 0.0
        %4118 = vmatprep.subr.mxu0 0.0
        %4119 = vmatpush1.msra.mxu0 0.0
        %4120 = vmatprep.subr.mxu0 0.0
        %4121 = vmatpush1.msra.mxu0 0.0
        %4122 = vmatprep.subr.mxu0 0.0
        %4123 = vmatpush1.msra.mxu0 0.0
        %4124 = vmatprep.subr.mxu0 0.0
        %4125 = vmatpush1.msra.mxu0 0.0
        %4126 = vmatprep.subr.mxu0 0.0
        %4127 = vmatpush1.msra.mxu0 0.0
        %4128 = vmatprep.subr.mxu0 0.0
        %v4129 = vand.u32 %v3759, 4294901760
        %v4130 = vsub.f32 %v3759, %v4129
        %v4131 = vand.u32 %v4130, 4294901760
        %4132 = vmatpush1.msra.mxu0 %v4131
        %4133 = vmatprep.subr.mxu0 0.0
        %v4134 = vand.u32 %v3758, 4294901760
        %v4135 = vsub.f32 %v3758, %v4134
        %v4136 = vand.u32 %v4135, 4294901760
        %4137 = vmatpush1.msra.mxu0 %v4136
        %4138 = vmatprep.subr.mxu0 0.0
        %v4139 = vand.u32 %v3757, 4294901760
        %v4140 = vsub.f32 %v3757, %v4139
        %v4141 = vand.u32 %v4140, 4294901760
        %4142 = vmatpush1.msra.mxu0 %v4141
        %4143 = vmatprep.subr.mxu0 0.0
        %v4144 = vand.u32 %v3756, 4294901760
        %v4145 = vsub.f32 %v3756, %v4144
        %v4146 = vand.u32 %v4145, 4294901760
        %4147 = vmatpush1.msra.mxu0 %v4146
        %4148 = vmatprep.subr.mxu0 0.0
        %4149 = vmatpush2.msra.mxu0 0.0
        %4150 = vmatprep.subr.mxu0 0.0
        %4151 = vmatpush2.msra.mxu0 0.0
        %4152 = vmatprep.subr.mxu0 0.0
        %4153 = vmatpush2.msra.mxu0 0.0
        %4154 = vmatprep.subr.mxu0 0.0
        %4155 = vmatpush2.msra.mxu0 0.0
        %4156 = vmatprep.subr.mxu0 0.0
        %4157 = vmatpush2.msra.mxu0 0.0
        %4158 = vmatprep.subr.mxu0 0.0
        %4159 = vmatpush2.msra.mxu0 0.0
        %4160 = vmatprep.subr.mxu0 0.0
        %4161 = vmatpush2.msra.mxu0 0.0
        %4162 = vmatprep.subr.mxu0 0.0
        %4163 = vmatpush2.msra.mxu0 0.0
        %4164 = vmatprep.subr.mxu0 0.0
        %4165 = vmatpush2.msra.mxu0 0.0
        %4166 = vmatprep.subr.mxu0 0.0
        %4167 = vmatpush2.msra.mxu0 0.0
        %4168 = vmatprep.subr.mxu0 0.0
        %4169 = vmatpush2.msra.mxu0 0.0
        %4170 = vmatprep.subr.mxu0 0.0
        %4171 = vmatpush2.msra.mxu0 0.0
        %4172 = vmatprep.subr.mxu0 0.0
        %4173 = vmatpush2.msra.mxu0 0.0
        %4174 = vmatprep.subr.mxu0 0.0
        %4175 = vmatpush2.msra.mxu0 0.0
        %4176 = vmatprep.subr.mxu0 0.0
        %4177 = vmatpush2.msra.mxu0 0.0
        %4178 = vmatprep.subr.mxu0 0.0
        %4179 = vmatpush2.msra.mxu0 0.0
        %4180 = vmatprep.mubr.f32.mxu0 0.0
        %v4181 = vand.u32 %v3775, 4294901760
        %4182 = vmatmul.mubr.f32.gmra.mxu0 %v4181
        %v4183 = vpop.f32.mrf.mxu0
        %v4184 = vadd.f32 %v4101, %v4183
        %v4185 = vpop.f32.mrf.mxu0
        %4186 = vdwg.mxu0
        %4187 = vmatprep.subr.mxu0 0.0
        %4188 = vmatpush1.msra.mxu0 0.0
        %4189 = vmatprep.subr.mxu0 0.0
        %4190 = vmatpush1.msra.mxu0 0.0
        %4191 = vmatprep.subr.mxu0 0.0
        %4192 = vmatpush1.msra.mxu0 0.0
        %4193 = vmatprep.subr.mxu0 0.0
        %4194 = vmatpush1.msra.mxu0 0.0
        %4195 = vmatprep.subr.mxu0 0.0
        %4196 = vmatpush1.msra.mxu0 0.0
        %4197 = vmatprep.subr.mxu0 0.0
        %4198 = vmatpush1.msra.mxu0 0.0
        %4199 = vmatprep.subr.mxu0 0.0
        %4200 = vmatpush1.msra.mxu0 0.0
        %4201 = vmatprep.subr.mxu0 0.0
        %4202 = vmatpush1.msra.mxu0 0.0
        %4203 = vmatprep.subr.mxu0 0.0
        %4204 = vmatpush1.msra.mxu0 0.0
        %4205 = vmatprep.subr.mxu0 0.0
        %4206 = vmatpush1.msra.mxu0 0.0
        %4207 = vmatprep.subr.mxu0 0.0
        %4208 = vmatpush1.msra.mxu0 0.0
        %4209 = vmatprep.subr.mxu0 0.0
        %4210 = vmatpush1.msra.mxu0 0.0
        %4211 = vmatprep.subr.mxu0 0.0
        %v4212 = vand.u32 %v3759, 4294901760
        %4213 = vmatpush1.msra.mxu0 %v4212
        %4214 = vmatprep.subr.mxu0 0.0
        %v4215 = vand.u32 %v3758, 4294901760
        %4216 = vmatpush1.msra.mxu0 %v4215
        %4217 = vmatprep.subr.mxu0 0.0
        %v4218 = vand.u32 %v3757, 4294901760
        %4219 = vmatpush1.msra.mxu0 %v4218
        %4220 = vmatprep.subr.mxu0 0.0
        %v4221 = vand.u32 %v3756, 4294901760
        %4222 = vmatpush1.msra.mxu0 %v4221
        %4223 = vmatprep.subr.mxu0 0.0
        %4224 = vmatpush2.msra.mxu0 0.0
        %4225 = vmatprep.subr.mxu0 0.0
        %4226 = vmatpush2.msra.mxu0 0.0
        %4227 = vmatprep.subr.mxu0 0.0
        %4228 = vmatpush2.msra.mxu0 0.0
        %4229 = vmatprep.subr.mxu0 0.0
        %4230 = vmatpush2.msra.mxu0 0.0
        %4231 = vmatprep.subr.mxu0 0.0
        %4232 = vmatpush2.msra.mxu0 0.0
        %4233 = vmatprep.subr.mxu0 0.0
        %4234 = vmatpush2.msra.mxu0 0.0
        %4235 = vmatprep.subr.mxu0 0.0
        %4236 = vmatpush2.msra.mxu0 0.0
        %4237 = vmatprep.subr.mxu0 0.0
        %4238 = vmatpush2.msra.mxu0 0.0
        %4239 = vmatprep.subr.mxu0 0.0
        %4240 = vmatpush2.msra.mxu0 0.0
        %4241 = vmatprep.subr.mxu0 0.0
        %4242 = vmatpush2.msra.mxu0 0.0
        %4243 = vmatprep.subr.mxu0 0.0
        %4244 = vmatpush2.msra.mxu0 0.0
        %4245 = vmatprep.subr.mxu0 0.0
        %4246 = vmatpush2.msra.mxu0 0.0
        %4247 = vmatprep.subr.mxu0 0.0
        %4248 = vmatpush2.msra.mxu0 0.0
        %4249 = vmatprep.subr.mxu0 0.0
        %4250 = vmatpush2.msra.mxu0 0.0
        %4251 = vmatprep.subr.mxu0 0.0
        %4252 = vmatpush2.msra.mxu0 0.0
        %4253 = vmatprep.subr.mxu0 0.0
        %4254 = vmatpush2.msra.mxu0 0.0
        %4255 = vmatprep.mubr.f32.mxu0 0.0
        %v4256 = vand.u32 %v3775, 4294901760
        %4257 = vmatmul.mubr.f32.gmra.mxu0 %v4256
        %v4258 = vpop.f32.mrf.mxu0
        %v4259 = vadd.f32 %v4184, %v4258
        %v4260 = vpop.f32.mrf.mxu0
        %4261 = vdwg.mxu0
        %4262 = vmatprep.subr.mxu0 0.0
        %4263 = vmatpush1.msra.mxu0 0.0
        %4264 = vmatprep.subr.mxu0 0.0
        %4265 = vmatpush1.msra.mxu0 0.0
        %4266 = vmatprep.subr.mxu0 0.0
        %4267 = vmatpush1.msra.mxu0 0.0
        %4268 = vmatprep.subr.mxu0 0.0
        %4269 = vmatpush1.msra.mxu0 0.0
        %4270 = vmatprep.subr.mxu0 0.0
        %4271 = vmatpush1.msra.mxu0 0.0
        %4272 = vmatprep.subr.mxu0 0.0
        %4273 = vmatpush1.msra.mxu0 0.0
        %4274 = vmatprep.subr.mxu0 0.0
        %4275 = vmatpush1.msra.mxu0 0.0
        %4276 = vmatprep.subr.mxu0 0.0
        %4277 = vmatpush1.msra.mxu0 0.0
        %4278 = vmatprep.subr.mxu0 0.0
        %4279 = vmatpush1.msra.mxu0 0.0
        %4280 = vmatprep.subr.mxu0 0.0
        %4281 = vmatpush1.msra.mxu0 0.0
        %4282 = vmatprep.subr.mxu0 0.0
        %4283 = vmatpush1.msra.mxu0 0.0
        %4284 = vmatprep.subr.mxu0 0.0
        %4285 = vmatpush1.msra.mxu0 0.0
        %4286 = vmatprep.subr.mxu0 0.0
        %v4287 = vand.u32 %v3755, 4294901760
        %4288 = vmatpush1.msra.mxu0 %v4287
        %4289 = vmatprep.subr.mxu0 0.0
        %v4290 = vand.u32 %v3754, 4294901760
        %4291 = vmatpush1.msra.mxu0 %v4290
        %4292 = vmatprep.subr.mxu0 0.0
        %v4293 = vand.u32 %v3753, 4294901760
        %4294 = vmatpush1.msra.mxu0 %v4293
        %4295 = vmatprep.subr.mxu0 0.0
        %v4296 = vand.u32 %v3752, 4294901760
        %4297 = vmatpush1.msra.mxu0 %v4296
        %4298 = vmatprep.subr.mxu0 0.0
        %4299 = vmatpush2.msra.mxu0 0.0
        %4300 = vmatprep.subr.mxu0 0.0
        %4301 = vmatpush2.msra.mxu0 0.0
        %4302 = vmatprep.subr.mxu0 0.0
        %4303 = vmatpush2.msra.mxu0 0.0
        %4304 = vmatprep.subr.mxu0 0.0
        %4305 = vmatpush2.msra.mxu0 0.0
        %4306 = vmatprep.subr.mxu0 0.0
        %4307 = vmatpush2.msra.mxu0 0.0
        %4308 = vmatprep.subr.mxu0 0.0
        %4309 = vmatpush2.msra.mxu0 0.0
        %4310 = vmatprep.subr.mxu0 0.0
        %4311 = vmatpush2.msra.mxu0 0.0
        %4312 = vmatprep.subr.mxu0 0.0
        %4313 = vmatpush2.msra.mxu0 0.0
        %4314 = vmatprep.subr.mxu0 0.0
        %4315 = vmatpush2.msra.mxu0 0.0
        %4316 = vmatprep.subr.mxu0 0.0
        %4317 = vmatpush2.msra.mxu0 0.0
        %4318 = vmatprep.subr.mxu0 0.0
        %4319 = vmatpush2.msra.mxu0 0.0
        %4320 = vmatprep.subr.mxu0 0.0
        %4321 = vmatpush2.msra.mxu0 0.0
        %4322 = vmatprep.subr.mxu0 0.0
        %4323 = vmatpush2.msra.mxu0 0.0
        %4324 = vmatprep.subr.mxu0 0.0
        %4325 = vmatpush2.msra.mxu0 0.0
        %4326 = vmatprep.subr.mxu0 0.0
        %4327 = vmatpush2.msra.mxu0 0.0
        %4328 = vmatprep.subr.mxu0 0.0
        %4329 = vmatpush2.msra.mxu0 0.0
        %4330 = vmatprep.mubr.f32.mxu0 0.0
        %v4331 = vand.u32 %v1255, 4294901760
        %v4332 = vsub.f32 %v1255, %v4331
        %v4333 = vand.u32 %v4332, 4294901760
        %v4334 = vsub.f32 %v4332, %v4333
        %v4335 = vand.u32 %v4334, 4294901760
        %4336 = vmatmul.mubr.f32.gmra.mxu0 %v4335
        %v4337 = vpop.f32.mrf.mxu0
        %v4338 = vadd.f32 %v4259, %v4337
        %v4339 = vpop.f32.mrf.mxu0
        %4340 = vdwg.mxu0
        %4341 = vmatprep.subr.mxu0 0.0
        %4342 = vmatpush1.msra.mxu0 0.0
        %4343 = vmatprep.subr.mxu0 0.0
        %4344 = vmatpush1.msra.mxu0 0.0
        %4345 = vmatprep.subr.mxu0 0.0
        %4346 = vmatpush1.msra.mxu0 0.0
        %4347 = vmatprep.subr.mxu0 0.0
        %4348 = vmatpush1.msra.mxu0 0.0
        %4349 = vmatprep.subr.mxu0 0.0
        %4350 = vmatpush1.msra.mxu0 0.0
        %4351 = vmatprep.subr.mxu0 0.0
        %4352 = vmatpush1.msra.mxu0 0.0
        %4353 = vmatprep.subr.mxu0 0.0
        %4354 = vmatpush1.msra.mxu0 0.0
        %4355 = vmatprep.subr.mxu0 0.0
        %4356 = vmatpush1.msra.mxu0 0.0
        %4357 = vmatprep.subr.mxu0 0.0
        %4358 = vmatpush1.msra.mxu0 0.0
        %4359 = vmatprep.subr.mxu0 0.0
        %4360 = vmatpush1.msra.mxu0 0.0
        %4361 = vmatprep.subr.mxu0 0.0
        %4362 = vmatpush1.msra.mxu0 0.0
        %4363 = vmatprep.subr.mxu0 0.0
        %4364 = vmatpush1.msra.mxu0 0.0
        %4365 = vmatprep.subr.mxu0 0.0
        %v4366 = vand.u32 %v3755, 4294901760
        %v4367 = vsub.f32 %v3755, %v4366
        %v4368 = vand.u32 %v4367, 4294901760
        %v4369 = vsub.f32 %v4367, %v4368
        %v4370 = vand.u32 %v4369, 4294901760
        %4371 = vmatpush1.msra.mxu0 %v4370
        %4372 = vmatprep.subr.mxu0 0.0
        %v4373 = vand.u32 %v3754, 4294901760
        %v4374 = vsub.f32 %v3754, %v4373
        %v4375 = vand.u32 %v4374, 4294901760
        %v4376 = vsub.f32 %v4374, %v4375
        %v4377 = vand.u32 %v4376, 4294901760
        %4378 = vmatpush1.msra.mxu0 %v4377
        %4379 = vmatprep.subr.mxu0 0.0
        %v4380 = vand.u32 %v3753, 4294901760
        %v4381 = vsub.f32 %v3753, %v4380
        %v4382 = vand.u32 %v4381, 4294901760
        %v4383 = vsub.f32 %v4381, %v4382
        %v4384 = vand.u32 %v4383, 4294901760
        %4385 = vmatpush1.msra.mxu0 %v4384
        %4386 = vmatprep.subr.mxu0 0.0
        %v4387 = vand.u32 %v3752, 4294901760
        %v4388 = vsub.f32 %v3752, %v4387
        %v4389 = vand.u32 %v4388, 4294901760
        %v4390 = vsub.f32 %v4388, %v4389
        %v4391 = vand.u32 %v4390, 4294901760
        %4392 = vmatpush1.msra.mxu0 %v4391
        %4393 = vmatprep.subr.mxu0 0.0
        %4394 = vmatpush2.msra.mxu0 0.0
        %4395 = vmatprep.subr.mxu0 0.0
        %4396 = vmatpush2.msra.mxu0 0.0
        %4397 = vmatprep.subr.mxu0 0.0
        %4398 = vmatpush2.msra.mxu0 0.0
        %4399 = vmatprep.subr.mxu0 0.0
        %4400 = vmatpush2.msra.mxu0 0.0
        %4401 = vmatprep.subr.mxu0 0.0
        %4402 = vmatpush2.msra.mxu0 0.0
        %4403 = vmatprep.subr.mxu0 0.0
        %4404 = vmatpush2.msra.mxu0 0.0
        %4405 = vmatprep.subr.mxu0 0.0
        %4406 = vmatpush2.msra.mxu0 0.0
        %4407 = vmatprep.subr.mxu0 0.0
        %4408 = vmatpush2.msra.mxu0 0.0
        %4409 = vmatprep.subr.mxu0 0.0
        %4410 = vmatpush2.msra.mxu0 0.0
        %4411 = vmatprep.subr.mxu0 0.0
        %4412 = vmatpush2.msra.mxu0 0.0
        %4413 = vmatprep.subr.mxu0 0.0
        %4414 = vmatpush2.msra.mxu0 0.0
        %4415 = vmatprep.subr.mxu0 0.0
        %4416 = vmatpush2.msra.mxu0 0.0
        %4417 = vmatprep.subr.mxu0 0.0
        %4418 = vmatpush2.msra.mxu0 0.0
        %4419 = vmatprep.subr.mxu0 0.0
        %4420 = vmatpush2.msra.mxu0 0.0
        %4421 = vmatprep.subr.mxu0 0.0
        %4422 = vmatpush2.msra.mxu0 0.0
        %4423 = vmatprep.subr.mxu0 0.0
        %4424 = vmatpush2.msra.mxu0 0.0
        %4425 = vmatprep.mubr.f32.mxu0 0.0
        %v4426 = vand.u32 %v1255, 4294901760
        %4427 = vmatmul.mubr.f32.gmra.mxu0 %v4426
        %v4428 = vpop.f32.mrf.mxu0
        %v4429 = vadd.f32 %v4338, %v4428
        %v4430 = vpop.f32.mrf.mxu0
        %4431 = vdwg.mxu0
        %4432 = vmatprep.subr.mxu0 0.0
        %4433 = vmatpush1.msra.mxu0 0.0
        %4434 = vmatprep.subr.mxu0 0.0
        %4435 = vmatpush1.msra.mxu0 0.0
        %4436 = vmatprep.subr.mxu0 0.0
        %4437 = vmatpush1.msra.mxu0 0.0
        %4438 = vmatprep.subr.mxu0 0.0
        %4439 = vmatpush1.msra.mxu0 0.0
        %4440 = vmatprep.subr.mxu0 0.0
        %4441 = vmatpush1.msra.mxu0 0.0
        %4442 = vmatprep.subr.mxu0 0.0
        %4443 = vmatpush1.msra.mxu0 0.0
        %4444 = vmatprep.subr.mxu0 0.0
        %4445 = vmatpush1.msra.mxu0 0.0
        %4446 = vmatprep.subr.mxu0 0.0
        %4447 = vmatpush1.msra.mxu0 0.0
        %4448 = vmatprep.subr.mxu0 0.0
        %4449 = vmatpush1.msra.mxu0 0.0
        %4450 = vmatprep.subr.mxu0 0.0
        %4451 = vmatpush1.msra.mxu0 0.0
        %4452 = vmatprep.subr.mxu0 0.0
        %4453 = vmatpush1.msra.mxu0 0.0
        %4454 = vmatprep.subr.mxu0 0.0
        %4455 = vmatpush1.msra.mxu0 0.0
        %4456 = vmatprep.subr.mxu0 0.0
        %v4457 = vand.u32 %v3755, 4294901760
        %v4458 = vsub.f32 %v3755, %v4457
        %4459 = vmatpush1.msra.mxu0 %v4458
        %4460 = vmatprep.subr.mxu0 0.0
        %v4461 = vand.u32 %v3754, 4294901760
        %v4462 = vsub.f32 %v3754, %v4461
        %4463 = vmatpush1.msra.mxu0 %v4462
        %4464 = vmatprep.subr.mxu0 0.0
        %v4465 = vand.u32 %v3753, 4294901760
        %v4466 = vsub.f32 %v3753, %v4465
        %4467 = vmatpush1.msra.mxu0 %v4466
        %4468 = vmatprep.subr.mxu0 0.0
        %v4469 = vand.u32 %v3752, 4294901760
        %v4470 = vsub.f32 %v3752, %v4469
        %4471 = vmatpush1.msra.mxu0 %v4470
        %4472 = vmatprep.subr.mxu0 0.0
        %4473 = vmatpush2.msra.mxu0 0.0
        %4474 = vmatprep.subr.mxu0 0.0
        %4475 = vmatpush2.msra.mxu0 0.0
        %4476 = vmatprep.subr.mxu0 0.0
        %4477 = vmatpush2.msra.mxu0 0.0
        %4478 = vmatprep.subr.mxu0 0.0
        %4479 = vmatpush2.msra.mxu0 0.0
        %4480 = vmatprep.subr.mxu0 0.0
        %4481 = vmatpush2.msra.mxu0 0.0
        %4482 = vmatprep.subr.mxu0 0.0
        %4483 = vmatpush2.msra.mxu0 0.0
        %4484 = vmatprep.subr.mxu0 0.0
        %4485 = vmatpush2.msra.mxu0 0.0
        %4486 = vmatprep.subr.mxu0 0.0
        %4487 = vmatpush2.msra.mxu0 0.0
        %4488 = vmatprep.subr.mxu0 0.0
        %4489 = vmatpush2.msra.mxu0 0.0
        %4490 = vmatprep.subr.mxu0 0.0
        %4491 = vmatpush2.msra.mxu0 0.0
        %4492 = vmatprep.subr.mxu0 0.0
        %4493 = vmatpush2.msra.mxu0 0.0
        %4494 = vmatprep.subr.mxu0 0.0
        %4495 = vmatpush2.msra.mxu0 0.0
        %4496 = vmatprep.subr.mxu0 0.0
        %4497 = vmatpush2.msra.mxu0 0.0
        %4498 = vmatprep.subr.mxu0 0.0
        %4499 = vmatpush2.msra.mxu0 0.0
        %4500 = vmatprep.subr.mxu0 0.0
        %4501 = vmatpush2.msra.mxu0 0.0
        %4502 = vmatprep.subr.mxu0 0.0
        %4503 = vmatpush2.msra.mxu0 0.0
        %4504 = vmatprep.mubr.f32.mxu0 0.0
        %v4505 = vand.u32 %v1255, 4294901760
        %v4506 = vsub.f32 %v1255, %v4505
        %4507 = vmatmul.mubr.f32.gmra.mxu0 %v4506
        %v4508 = vpop.f32.mrf.mxu0
        %v4509 = vadd.f32 %v4429, %v4508
        %v4510 = vpop.f32.mrf.mxu0
        %4511 = vdwg.mxu0
        %4512 = vmatprep.subr.mxu0 0.0
        %4513 = vmatpush1.msra.mxu0 0.0
        %4514 = vmatprep.subr.mxu0 0.0
        %4515 = vmatpush1.msra.mxu0 0.0
        %4516 = vmatprep.subr.mxu0 0.0
        %4517 = vmatpush1.msra.mxu0 0.0
        %4518 = vmatprep.subr.mxu0 0.0
        %4519 = vmatpush1.msra.mxu0 0.0
        %4520 = vmatprep.subr.mxu0 0.0
        %4521 = vmatpush1.msra.mxu0 0.0
        %4522 = vmatprep.subr.mxu0 0.0
        %4523 = vmatpush1.msra.mxu0 0.0
        %4524 = vmatprep.subr.mxu0 0.0
        %4525 = vmatpush1.msra.mxu0 0.0
        %4526 = vmatprep.subr.mxu0 0.0
        %4527 = vmatpush1.msra.mxu0 0.0
        %4528 = vmatprep.subr.mxu0 0.0
        %4529 = vmatpush1.msra.mxu0 0.0
        %4530 = vmatprep.subr.mxu0 0.0
        %4531 = vmatpush1.msra.mxu0 0.0
        %4532 = vmatprep.subr.mxu0 0.0
        %4533 = vmatpush1.msra.mxu0 0.0
        %4534 = vmatprep.subr.mxu0 0.0
        %4535 = vmatpush1.msra.mxu0 0.0
        %4536 = vmatprep.subr.mxu0 0.0
        %v4537 = vand.u32 %v3755, 4294901760
        %4538 = vmatpush1.msra.mxu0 %v4537
        %4539 = vmatprep.subr.mxu0 0.0
        %v4540 = vand.u32 %v3754, 4294901760
        %4541 = vmatpush1.msra.mxu0 %v4540
        %4542 = vmatprep.subr.mxu0 0.0
        %v4543 = vand.u32 %v3753, 4294901760
        %4544 = vmatpush1.msra.mxu0 %v4543
        %4545 = vmatprep.subr.mxu0 0.0
        %v4546 = vand.u32 %v3752, 4294901760
        %4547 = vmatpush1.msra.mxu0 %v4546
        %4548 = vmatprep.subr.mxu0 0.0
        %4549 = vmatpush2.msra.mxu0 0.0
        %4550 = vmatprep.subr.mxu0 0.0
        %4551 = vmatpush2.msra.mxu0 0.0
        %4552 = vmatprep.subr.mxu0 0.0
        %4553 = vmatpush2.msra.mxu0 0.0
        %4554 = vmatprep.subr.mxu0 0.0
        %4555 = vmatpush2.msra.mxu0 0.0
        %4556 = vmatprep.subr.mxu0 0.0
        %4557 = vmatpush2.msra.mxu0 0.0
        %4558 = vmatprep.subr.mxu0 0.0
        %4559 = vmatpush2.msra.mxu0 0.0
        %4560 = vmatprep.subr.mxu0 0.0
        %4561 = vmatpush2.msra.mxu0 0.0
        %4562 = vmatprep.subr.mxu0 0.0
        %4563 = vmatpush2.msra.mxu0 0.0
        %4564 = vmatprep.subr.mxu0 0.0
        %4565 = vmatpush2.msra.mxu0 0.0
        %4566 = vmatprep.subr.mxu0 0.0
        %4567 = vmatpush2.msra.mxu0 0.0
        %4568 = vmatprep.subr.mxu0 0.0
        %4569 = vmatpush2.msra.mxu0 0.0
        %4570 = vmatprep.subr.mxu0 0.0
        %4571 = vmatpush2.msra.mxu0 0.0
        %4572 = vmatprep.subr.mxu0 0.0
        %4573 = vmatpush2.msra.mxu0 0.0
        %4574 = vmatprep.subr.mxu0 0.0
        %4575 = vmatpush2.msra.mxu0 0.0
        %4576 = vmatprep.subr.mxu0 0.0
        %4577 = vmatpush2.msra.mxu0 0.0
        %4578 = vmatprep.subr.mxu0 0.0
        %4579 = vmatpush2.msra.mxu0 0.0
        %4580 = vmatprep.mubr.f32.mxu0 0.0
        %v4581 = vand.u32 %v1255, 4294901760
        %v4582 = vsub.f32 %v1255, %v4581
        %v4583 = vand.u32 %v4582, 4294901760
        %4584 = vmatmul.mubr.f32.gmra.mxu0 %v4583
        %v4585 = vpop.f32.mrf.mxu0
        %v4586 = vadd.f32 %v4509, %v4585
        %v4587 = vpop.f32.mrf.mxu0
        %4588 = vdwg.mxu0
        %4589 = vmatprep.subr.mxu0 0.0
        %4590 = vmatpush1.msra.mxu0 0.0
        %4591 = vmatprep.subr.mxu0 0.0
        %4592 = vmatpush1.msra.mxu0 0.0
        %4593 = vmatprep.subr.mxu0 0.0
        %4594 = vmatpush1.msra.mxu0 0.0
        %4595 = vmatprep.subr.mxu0 0.0
        %4596 = vmatpush1.msra.mxu0 0.0
        %4597 = vmatprep.subr.mxu0 0.0
        %4598 = vmatpush1.msra.mxu0 0.0
        %4599 = vmatprep.subr.mxu0 0.0
        %4600 = vmatpush1.msra.mxu0 0.0
        %4601 = vmatprep.subr.mxu0 0.0
        %4602 = vmatpush1.msra.mxu0 0.0
        %4603 = vmatprep.subr.mxu0 0.0
        %4604 = vmatpush1.msra.mxu0 0.0
        %4605 = vmatprep.subr.mxu0 0.0
        %4606 = vmatpush1.msra.mxu0 0.0
        %4607 = vmatprep.subr.mxu0 0.0
        %4608 = vmatpush1.msra.mxu0 0.0
        %4609 = vmatprep.subr.mxu0 0.0
        %4610 = vmatpush1.msra.mxu0 0.0
        %4611 = vmatprep.subr.mxu0 0.0
        %4612 = vmatpush1.msra.mxu0 0.0
        %4613 = vmatprep.subr.mxu0 0.0
        %v4614 = vand.u32 %v3755, 4294901760
        %v4615 = vsub.f32 %v3755, %v4614
        %v4616 = vand.u32 %v4615, 4294901760
        %4617 = vmatpush1.msra.mxu0 %v4616
        %4618 = vmatprep.subr.mxu0 0.0
        %v4619 = vand.u32 %v3754, 4294901760
        %v4620 = vsub.f32 %v3754, %v4619
        %v4621 = vand.u32 %v4620, 4294901760
        %4622 = vmatpush1.msra.mxu0 %v4621
        %4623 = vmatprep.subr.mxu0 0.0
        %v4624 = vand.u32 %v3753, 4294901760
        %v4625 = vsub.f32 %v3753, %v4624
        %v4626 = vand.u32 %v4625, 4294901760
        %4627 = vmatpush1.msra.mxu0 %v4626
        %4628 = vmatprep.subr.mxu0 0.0
        %v4629 = vand.u32 %v3752, 4294901760
        %v4630 = vsub.f32 %v3752, %v4629
        %v4631 = vand.u32 %v4630, 4294901760
        %4632 = vmatpush1.msra.mxu0 %v4631
        %4633 = vmatprep.subr.mxu0 0.0
        %4634 = vmatpush2.msra.mxu0 0.0
        %4635 = vmatprep.subr.mxu0 0.0
        %4636 = vmatpush2.msra.mxu0 0.0
        %4637 = vmatprep.subr.mxu0 0.0
        %4638 = vmatpush2.msra.mxu0 0.0
        %4639 = vmatprep.subr.mxu0 0.0
        %4640 = vmatpush2.msra.mxu0 0.0
        %4641 = vmatprep.subr.mxu0 0.0
        %4642 = vmatpush2.msra.mxu0 0.0
        %4643 = vmatprep.subr.mxu0 0.0
        %4644 = vmatpush2.msra.mxu0 0.0
        %4645 = vmatprep.subr.mxu0 0.0
        %4646 = vmatpush2.msra.mxu0 0.0
        %4647 = vmatprep.subr.mxu0 0.0
        %4648 = vmatpush2.msra.mxu0 0.0
        %4649 = vmatprep.subr.mxu0 0.0
        %4650 = vmatpush2.msra.mxu0 0.0
        %4651 = vmatprep.subr.mxu0 0.0
        %4652 = vmatpush2.msra.mxu0 0.0
        %4653 = vmatprep.subr.mxu0 0.0
        %4654 = vmatpush2.msra.mxu0 0.0
        %4655 = vmatprep.subr.mxu0 0.0
        %4656 = vmatpush2.msra.mxu0 0.0
        %4657 = vmatprep.subr.mxu0 0.0
        %4658 = vmatpush2.msra.mxu0 0.0
        %4659 = vmatprep.subr.mxu0 0.0
        %4660 = vmatpush2.msra.mxu0 0.0
        %4661 = vmatprep.subr.mxu0 0.0
        %4662 = vmatpush2.msra.mxu0 0.0
        %4663 = vmatprep.subr.mxu0 0.0
        %4664 = vmatpush2.msra.mxu0 0.0
        %4665 = vmatprep.mubr.f32.mxu0 0.0
        %v4666 = vand.u32 %v1255, 4294901760
        %4667 = vmatmul.mubr.f32.gmra.mxu0 %v4666
        %v4668 = vpop.f32.mrf.mxu0
        %v4669 = vadd.f32 %v4586, %v4668
        %v4670 = vpop.f32.mrf.mxu0
        %4671 = vdwg.mxu0
        %4672 = vmatprep.subr.mxu0 0.0
        %4673 = vmatpush1.msra.mxu0 0.0
        %4674 = vmatprep.subr.mxu0 0.0
        %4675 = vmatpush1.msra.mxu0 0.0
        %4676 = vmatprep.subr.mxu0 0.0
        %4677 = vmatpush1.msra.mxu0 0.0
        %4678 = vmatprep.subr.mxu0 0.0
        %4679 = vmatpush1.msra.mxu0 0.0
        %4680 = vmatprep.subr.mxu0 0.0
        %4681 = vmatpush1.msra.mxu0 0.0
        %4682 = vmatprep.subr.mxu0 0.0
        %4683 = vmatpush1.msra.mxu0 0.0
        %4684 = vmatprep.subr.mxu0 0.0
        %4685 = vmatpush1.msra.mxu0 0.0
        %4686 = vmatprep.subr.mxu0 0.0
        %4687 = vmatpush1.msra.mxu0 0.0
        %4688 = vmatprep.subr.mxu0 0.0
        %4689 = vmatpush1.msra.mxu0 0.0
        %4690 = vmatprep.subr.mxu0 0.0
        %4691 = vmatpush1.msra.mxu0 0.0
        %4692 = vmatprep.subr.mxu0 0.0
        %4693 = vmatpush1.msra.mxu0 0.0
        %4694 = vmatprep.subr.mxu0 0.0
        %4695 = vmatpush1.msra.mxu0 0.0
        %4696 = vmatprep.subr.mxu0 0.0
        %v4697 = vand.u32 %v3755, 4294901760
        %4698 = vmatpush1.msra.mxu0 %v4697
        %4699 = vmatprep.subr.mxu0 0.0
        %v4700 = vand.u32 %v3754, 4294901760
        %4701 = vmatpush1.msra.mxu0 %v4700
        %4702 = vmatprep.subr.mxu0 0.0
        %v4703 = vand.u32 %v3753, 4294901760
        %4704 = vmatpush1.msra.mxu0 %v4703
        %4705 = vmatprep.subr.mxu0 0.0
        %v4706 = vand.u32 %v3752, 4294901760
        %4707 = vmatpush1.msra.mxu0 %v4706
        %4708 = vmatprep.subr.mxu0 0.0
        %4709 = vmatpush2.msra.mxu0 0.0
        %4710 = vmatprep.subr.mxu0 0.0
        %4711 = vmatpush2.msra.mxu0 0.0
        %4712 = vmatprep.subr.mxu0 0.0
        %4713 = vmatpush2.msra.mxu0 0.0
        %4714 = vmatprep.subr.mxu0 0.0
        %4715 = vmatpush2.msra.mxu0 0.0
        %4716 = vmatprep.subr.mxu0 0.0
        %4717 = vmatpush2.msra.mxu0 0.0
        %4718 = vmatprep.subr.mxu0 0.0
        %4719 = vmatpush2.msra.mxu0 0.0
        %4720 = vmatprep.subr.mxu0 0.0
        %4721 = vmatpush2.msra.mxu0 0.0
        %4722 = vmatprep.subr.mxu0 0.0
        %4723 = vmatpush2.msra.mxu0 0.0
        %4724 = vmatprep.subr.mxu0 0.0
        %4725 = vmatpush2.msra.mxu0 0.0
        %4726 = vmatprep.subr.mxu0 0.0
        %4727 = vmatpush2.msra.mxu0 0.0
        %4728 = vmatprep.subr.mxu0 0.0
        %4729 = vmatpush2.msra.mxu0 0.0
        %4730 = vmatprep.subr.mxu0 0.0
        %4731 = vmatpush2.msra.mxu0 0.0
        %4732 = vmatprep.subr.mxu0 0.0
        %4733 = vmatpush2.msra.mxu0 0.0
        %4734 = vmatprep.subr.mxu0 0.0
        %4735 = vmatpush2.msra.mxu0 0.0
        %4736 = vmatprep.subr.mxu0 0.0
        %4737 = vmatpush2.msra.mxu0 0.0
        %4738 = vmatprep.subr.mxu0 0.0
        %4739 = vmatpush2.msra.mxu0 0.0
        %4740 = vmatprep.mubr.f32.mxu0 0.0
        %v4741 = vand.u32 %v1255, 4294901760
        %4742 = vmatmul.mubr.f32.gmra.mxu0 %v4741
        %v4743 = vpop.f32.mrf.mxu0
        %v4744 = vadd.f32 %v4669, %v4743
        %v4745 = vpop.f32.mrf.mxu0
        %4746 = vdwg.mxu0
        %v4747 = vld [vmem:[%s16] sm:$0x1]
        %v4749 = vlaneseq
        %v4750 = vshrl.u32 %v4749, 7
        %v4751 = vsub.s32 0, %v4750
        %v4752 = vrot.slane %v4747, %v4751
        %v4754 = vadd.f32 %v4744, %v4752
        %v4755 = vmul.f32 %v4754, 0.5
        %v4756 = vtanh.pop %v4755
        %v4757 = vadd.f32 %v4756, 1.0
        %v4758 = vmul.f32 %v4755, %v4757
        %v4759 = vld [vmem:[%s17] sm:$0xff]
        %v4760 = vld [vmem:[%s17 + $0x8] sm:$0xff]
        %v4761 = vld [vmem:[%s17 + $0x10] sm:$0xff]
        %v4762 = vld [vmem:[%s17 + $0x18] sm:$0xff]
        %v4763 = vld [vmem:[%s17 + $0x20] sm:$0xff]
        %v4764 = vld [vmem:[%s17 + $0x28] sm:$0xff]
        %v4765 = vld [vmem:[%s17 + $0x30] sm:$0xff]
        %v4766 = vld [vmem:[%s17 + $0x38] sm:$0xff]
        %v4767 = vld [vmem:[%s18] sm:$0x1]
        %v4769 = vlaneseq
        %v4770 = vshrl.u32 %v4769, 7
        %v4771 = vsub.s32 0, %v4770
        %v4772 = vrot.slane %v4767, %v4771
        %vm4774 = vcmask 523264
        %v4776 = vsel %vm4774, %v4758, 0
        %4778 = vmatprep.subr.mxu0 0.0
        %4779 = vmatpush1.msra.mxu0 0.0
        %4780 = vmatprep.subr.mxu0 0.0
        %4781 = vmatpush1.msra.mxu0 0.0
        %4782 = vmatprep.subr.mxu0 0.0
        %4783 = vmatpush1.msra.mxu0 0.0
        %4784 = vmatprep.subr.mxu0 0.0
        %4785 = vmatpush1.msra.mxu0 0.0
        %4786 = vmatprep.subr.mxu0 0.0
        %4787 = vmatpush1.msra.mxu0 0.0
        %4788 = vmatprep.subr.mxu0 0.0
        %4789 = vmatpush1.msra.mxu0 0.0
        %4790 = vmatprep.subr.mxu0 0.0
        %4791 = vmatpush1.msra.mxu0 0.0
        %4792 = vmatprep.subr.mxu0 0.0
        %4793 = vmatpush1.msra.mxu0 0.0
        %4794 = vmatprep.subr.mxu0 0.0
        %v4795 = vand.u32 %v4766, 4294901760
        %4796 = vmatpush1.msra.mxu0 %v4795
        %4797 = vmatprep.subr.mxu0 0.0
        %v4798 = vand.u32 %v4765, 4294901760
        %4799 = vmatpush1.msra.mxu0 %v4798
        %4800 = vmatprep.subr.mxu0 0.0
        %v4801 = vand.u32 %v4764, 4294901760
        %4802 = vmatpush1.msra.mxu0 %v4801
        %4803 = vmatprep.subr.mxu0 0.0
        %v4804 = vand.u32 %v4763, 4294901760
        %4805 = vmatpush1.msra.mxu0 %v4804
        %4806 = vmatprep.subr.mxu0 0.0
        %v4807 = vand.u32 %v4762, 4294901760
        %4808 = vmatpush1.msra.mxu0 %v4807
        %4809 = vmatprep.subr.mxu0 0.0
        %v4810 = vand.u32 %v4761, 4294901760
        %4811 = vmatpush1.msra.mxu0 %v4810
        %4812 = vmatprep.subr.mxu0 0.0
        %v4813 = vand.u32 %v4760, 4294901760
        %4814 = vmatpush1.msra.mxu0 %v4813
        %4815 = vmatprep.subr.mxu0 0.0
        %v4816 = vand.u32 %v4759, 4294901760
        %4817 = vmatpush1.msra.mxu0 %v4816
        %4818 = vmatprep.subr.mxu0 0.0
        %4819 = vmatpush2.msra.mxu0 0.0
        %4820 = vmatprep.subr.mxu0 0.0
        %4821 = vmatpush2.msra.mxu0 0.0
        %4822 = vmatprep.subr.mxu0 0.0
        %4823 = vmatpush2.msra.mxu0 0.0
        %4824 = vmatprep.subr.mxu0 0.0
        %4825 = vmatpush2.msra.mxu0 0.0
        %4826 = vmatprep.subr.mxu0 0.0
        %4827 = vmatpush2.msra.mxu0 0.0
        %4828 = vmatprep.subr.mxu0 0.0
        %4829 = vmatpush2.msra.mxu0 0.0
        %4830 = vmatprep.subr.mxu0 0.0
        %4831 = vmatpush2.msra.mxu0 0.0
        %4832 = vmatprep.subr.mxu0 0.0
        %4833 = vmatpush2.msra.mxu0 0.0
        %4834 = vmatprep.subr.mxu0 0.0
        %4835 = vmatpush2.msra.mxu0 0.0
        %4836 = vmatprep.subr.mxu0 0.0
        %4837 = vmatpush2.msra.mxu0 0.0
        %4838 = vmatprep.subr.mxu0 0.0
        %4839 = vmatpush2.msra.mxu0 0.0
        %4840 = vmatprep.subr.mxu0 0.0
        %4841 = vmatpush2.msra.mxu0 0.0
        %4842 = vmatprep.subr.mxu0 0.0
        %4843 = vmatpush2.msra.mxu0 0.0
        %4844 = vmatprep.subr.mxu0 0.0
        %4845 = vmatpush2.msra.mxu0 0.0
        %4846 = vmatprep.subr.mxu0 0.0
        %4847 = vmatpush2.msra.mxu0 0.0
        %4848 = vmatprep.subr.mxu0 0.0
        %4849 = vmatpush2.msra.mxu0 0.0
        %4850 = vmatprep.mubr.f32.mxu0 0.0
        %v4851 = vand.u32 %v4776, 4294901760
        %v4852 = vsub.f32 %v4776, %v4851
        %v4853 = vand.u32 %v4852, 4294901760
        %v4854 = vsub.f32 %v4852, %v4853
        %v4855 = vand.u32 %v4854, 4294901760
        %4856 = vmatmul.mubr.f32.gmra.mxu0 %v4855
        %v4857 = vpop.f32.mrf.mxu0
        %v4858 = vadd.f32 %v4772, %v4857
        %v4859 = vpop.f32.mrf.mxu0
        %4860 = vdwg.mxu0
        %4861 = vmatprep.subr.mxu0 0.0
        %4862 = vmatpush1.msra.mxu0 0.0
        %4863 = vmatprep.subr.mxu0 0.0
        %4864 = vmatpush1.msra.mxu0 0.0
        %4865 = vmatprep.subr.mxu0 0.0
        %4866 = vmatpush1.msra.mxu0 0.0
        %4867 = vmatprep.subr.mxu0 0.0
        %4868 = vmatpush1.msra.mxu0 0.0
        %4869 = vmatprep.subr.mxu0 0.0
        %4870 = vmatpush1.msra.mxu0 0.0
        %4871 = vmatprep.subr.mxu0 0.0
        %4872 = vmatpush1.msra.mxu0 0.0
        %4873 = vmatprep.subr.mxu0 0.0
        %4874 = vmatpush1.msra.mxu0 0.0
        %4875 = vmatprep.subr.mxu0 0.0
        %4876 = vmatpush1.msra.mxu0 0.0
        %4877 = vmatprep.subr.mxu0 0.0
        %v4878 = vand.u32 %v4766, 4294901760
        %v4879 = vsub.f32 %v4766, %v4878
        %v4880 = vand.u32 %v4879, 4294901760
        %v4881 = vsub.f32 %v4879, %v4880
        %v4882 = vand.u32 %v4881, 4294901760
        %4883 = vmatpush1.msra.mxu0 %v4882
        %4884 = vmatprep.subr.mxu0 0.0
        %v4885 = vand.u32 %v4765, 4294901760
        %v4886 = vsub.f32 %v4765, %v4885
        %v4887 = vand.u32 %v4886, 4294901760
        %v4888 = vsub.f32 %v4886, %v4887
        %v4889 = vand.u32 %v4888, 4294901760
        %4890 = vmatpush1.msra.mxu0 %v4889
        %4891 = vmatprep.subr.mxu0 0.0
        %v4892 = vand.u32 %v4764, 4294901760
        %v4893 = vsub.f32 %v4764, %v4892
        %v4894 = vand.u32 %v4893, 4294901760
        %v4895 = vsub.f32 %v4893, %v4894
        %v4896 = vand.u32 %v4895, 4294901760
        %4897 = vmatpush1.msra.mxu0 %v4896
        %4898 = vmatprep.subr.mxu0 0.0
        %v4899 = vand.u32 %v4763, 4294901760
        %v4900 = vsub.f32 %v4763, %v4899
        %v4901 = vand.u32 %v4900, 4294901760
        %v4902 = vsub.f32 %v4900, %v4901
        %v4903 = vand.u32 %v4902, 4294901760
        %4904 = vmatpush1.msra.mxu0 %v4903
        %4905 = vmatprep.subr.mxu0 0.0
        %v4906 = vand.u32 %v4762, 4294901760
        %v4907 = vsub.f32 %v4762, %v4906
        %v4908 = vand.u32 %v4907, 4294901760
        %v4909 = vsub.f32 %v4907, %v4908
        %v4910 = vand.u32 %v4909, 4294901760
        %4911 = vmatpush1.msra.mxu0 %v4910
        %4912 = vmatprep.subr.mxu0 0.0
        %v4913 = vand.u32 %v4761, 4294901760
        %v4914 = vsub.f32 %v4761, %v4913
        %v4915 = vand.u32 %v4914, 4294901760
        %v4916 = vsub.f32 %v4914, %v4915
        %v4917 = vand.u32 %v4916, 4294901760
        %4918 = vmatpush1.msra.mxu0 %v4917
        %4919 = vmatprep.subr.mxu0 0.0
        %v4920 = vand.u32 %v4760, 4294901760
        %v4921 = vsub.f32 %v4760, %v4920
        %v4922 = vand.u32 %v4921, 4294901760
        %v4923 = vsub.f32 %v4921, %v4922
        %v4924 = vand.u32 %v4923, 4294901760
        %4925 = vmatpush1.msra.mxu0 %v4924
        %4926 = vmatprep.subr.mxu0 0.0
        %v4927 = vand.u32 %v4759, 4294901760
        %v4928 = vsub.f32 %v4759, %v4927
        %v4929 = vand.u32 %v4928, 4294901760
        %v4930 = vsub.f32 %v4928, %v4929
        %v4931 = vand.u32 %v4930, 4294901760
        %4932 = vmatpush1.msra.mxu0 %v4931
        %4933 = vmatprep.subr.mxu0 0.0
        %4934 = vmatpush2.msra.mxu0 0.0
        %4935 = vmatprep.subr.mxu0 0.0
        %4936 = vmatpush2.msra.mxu0 0.0
        %4937 = vmatprep.subr.mxu0 0.0
        %4938 = vmatpush2.msra.mxu0 0.0
        %4939 = vmatprep.subr.mxu0 0.0
        %4940 = vmatpush2.msra.mxu0 0.0
        %4941 = vmatprep.subr.mxu0 0.0
        %4942 = vmatpush2.msra.mxu0 0.0
        %4943 = vmatprep.subr.mxu0 0.0
        %4944 = vmatpush2.msra.mxu0 0.0
        %4945 = vmatprep.subr.mxu0 0.0
        %4946 = vmatpush2.msra.mxu0 0.0
        %4947 = vmatprep.subr.mxu0 0.0
        %4948 = vmatpush2.msra.mxu0 0.0
        %4949 = vmatprep.subr.mxu0 0.0
        %4950 = vmatpush2.msra.mxu0 0.0
        %4951 = vmatprep.subr.mxu0 0.0
        %4952 = vmatpush2.msra.mxu0 0.0
        %4953 = vmatprep.subr.mxu0 0.0
        %4954 = vmatpush2.msra.mxu0 0.0
        %4955 = vmatprep.subr.mxu0 0.0
        %4956 = vmatpush2.msra.mxu0 0.0
        %4957 = vmatprep.subr.mxu0 0.0
        %4958 = vmatpush2.msra.mxu0 0.0
        %4959 = vmatprep.subr.mxu0 0.0
        %4960 = vmatpush2.msra.mxu0 0.0
        %4961 = vmatprep.subr.mxu0 0.0
        %4962 = vmatpush2.msra.mxu0 0.0
        %4963 = vmatprep.subr.mxu0 0.0
        %4964 = vmatpush2.msra.mxu0 0.0
        %4965 = vmatprep.mubr.f32.mxu0 0.0
        %v4966 = vand.u32 %v4776, 4294901760
        %4967 = vmatmul.mubr.f32.gmra.mxu0 %v4966
        %v4968 = vpop.f32.mrf.mxu0
        %v4969 = vadd.f32 %v4858, %v4968
        %v4970 = vpop.f32.mrf.mxu0
        %4971 = vdwg.mxu0
        %4972 = vmatprep.subr.mxu0 0.0
        %4973 = vmatpush1.msra.mxu0 0.0
        %4974 = vmatprep.subr.mxu0 0.0
        %4975 = vmatpush1.msra.mxu0 0.0
        %4976 = vmatprep.subr.mxu0 0.0
        %4977 = vmatpush1.msra.mxu0 0.0
        %4978 = vmatprep.subr.mxu0 0.0
        %4979 = vmatpush1.msra.mxu0 0.0
        %4980 = vmatprep.subr.mxu0 0.0
        %4981 = vmatpush1.msra.mxu0 0.0
        %4982 = vmatprep.subr.mxu0 0.0
        %4983 = vmatpush1.msra.mxu0 0.0
        %4984 = vmatprep.subr.mxu0 0.0
        %4985 = vmatpush1.msra.mxu0 0.0
        %4986 = vmatprep.subr.mxu0 0.0
        %4987 = vmatpush1.msra.mxu0 0.0
        %4988 = vmatprep.subr.mxu0 0.0
        %v4989 = vand.u32 %v4766, 4294901760
        %v4990 = vsub.f32 %v4766, %v4989
        %4991 = vmatpush1.msra.mxu0 %v4990
        %4992 = vmatprep.subr.mxu0 0.0
        %v4993 = vand.u32 %v4765, 4294901760
        %v4994 = vsub.f32 %v4765, %v4993
        %4995 = vmatpush1.msra.mxu0 %v4994
        %4996 = vmatprep.subr.mxu0 0.0
        %v4997 = vand.u32 %v4764, 4294901760
        %v4998 = vsub.f32 %v4764, %v4997
        %4999 = vmatpush1.msra.mxu0 %v4998
        %5000 = vmatprep.subr.mxu0 0.0
        %v5001 = vand.u32 %v4763, 4294901760
        %v5002 = vsub.f32 %v4763, %v5001
        %5003 = vmatpush1.msra.mxu0 %v5002
        %5004 = vmatprep.subr.mxu0 0.0
        %v5005 = vand.u32 %v4762, 4294901760
        %v5006 = vsub.f32 %v4762, %v5005
        %5007 = vmatpush1.msra.mxu0 %v5006
        %5008 = vmatprep.subr.mxu0 0.0
        %v5009 = vand.u32 %v4761, 4294901760
        %v5010 = vsub.f32 %v4761, %v5009
        %5011 = vmatpush1.msra.mxu0 %v5010
        %5012 = vmatprep.subr.mxu0 0.0
        %v5013 = vand.u32 %v4760, 4294901760
        %v5014 = vsub.f32 %v4760, %v5013
        %5015 = vmatpush1.msra.mxu0 %v5014
        %5016 = vmatprep.subr.mxu0 0.0
        %v5017 = vand.u32 %v4759, 4294901760
        %v5018 = vsub.f32 %v4759, %v5017
        %5019 = vmatpush1.msra.mxu0 %v5018
        %5020 = vmatprep.subr.mxu0 0.0
        %5021 = vmatpush2.msra.mxu0 0.0
        %5022 = vmatprep.subr.mxu0 0.0
        %5023 = vmatpush2.msra.mxu0 0.0
        %5024 = vmatprep.subr.mxu0 0.0
        %5025 = vmatpush2.msra.mxu0 0.0
        %5026 = vmatprep.subr.mxu0 0.0
        %5027 = vmatpush2.msra.mxu0 0.0
        %5028 = vmatprep.subr.mxu0 0.0
        %5029 = vmatpush2.msra.mxu0 0.0
        %5030 = vmatprep.subr.mxu0 0.0
        %5031 = vmatpush2.msra.mxu0 0.0
        %5032 = vmatprep.subr.mxu0 0.0
        %5033 = vmatpush2.msra.mxu0 0.0
        %5034 = vmatprep.subr.mxu0 0.0
        %5035 = vmatpush2.msra.mxu0 0.0
        %5036 = vmatprep.subr.mxu0 0.0
        %5037 = vmatpush2.msra.mxu0 0.0
        %5038 = vmatprep.subr.mxu0 0.0
        %5039 = vmatpush2.msra.mxu0 0.0
        %5040 = vmatprep.subr.mxu0 0.0
        %5041 = vmatpush2.msra.mxu0 0.0
        %5042 = vmatprep.subr.mxu0 0.0
        %5043 = vmatpush2.msra.mxu0 0.0
        %5044 = vmatprep.subr.mxu0 0.0
        %5045 = vmatpush2.msra.mxu0 0.0
        %5046 = vmatprep.subr.mxu0 0.0
        %5047 = vmatpush2.msra.mxu0 0.0
        %5048 = vmatprep.subr.mxu0 0.0
        %5049 = vmatpush2.msra.mxu0 0.0
        %5050 = vmatprep.subr.mxu0 0.0
        %5051 = vmatpush2.msra.mxu0 0.0
        %5052 = vmatprep.mubr.f32.mxu0 0.0
        %v5053 = vand.u32 %v4776, 4294901760
        %v5054 = vsub.f32 %v4776, %v5053
        %5055 = vmatmul.mubr.f32.gmra.mxu0 %v5054
        %v5056 = vpop.f32.mrf.mxu0
        %v5057 = vadd.f32 %v4969, %v5056
        %v5058 = vpop.f32.mrf.mxu0
        %5059 = vdwg.mxu0
        %5060 = vmatprep.subr.mxu0 0.0
        %5061 = vmatpush1.msra.mxu0 0.0
        %5062 = vmatprep.subr.mxu0 0.0
        %5063 = vmatpush1.msra.mxu0 0.0
        %5064 = vmatprep.subr.mxu0 0.0
        %5065 = vmatpush1.msra.mxu0 0.0
        %5066 = vmatprep.subr.mxu0 0.0
        %5067 = vmatpush1.msra.mxu0 0.0
        %5068 = vmatprep.subr.mxu0 0.0
        %5069 = vmatpush1.msra.mxu0 0.0
        %5070 = vmatprep.subr.mxu0 0.0
        %5071 = vmatpush1.msra.mxu0 0.0
        %5072 = vmatprep.subr.mxu0 0.0
        %5073 = vmatpush1.msra.mxu0 0.0
        %5074 = vmatprep.subr.mxu0 0.0
        %5075 = vmatpush1.msra.mxu0 0.0
        %5076 = vmatprep.subr.mxu0 0.0
        %v5077 = vand.u32 %v4766, 4294901760
        %5078 = vmatpush1.msra.mxu0 %v5077
        %5079 = vmatprep.subr.mxu0 0.0
        %v5080 = vand.u32 %v4765, 4294901760
        %5081 = vmatpush1.msra.mxu0 %v5080
        %5082 = vmatprep.subr.mxu0 0.0
        %v5083 = vand.u32 %v4764, 4294901760
        %5084 = vmatpush1.msra.mxu0 %v5083
        %5085 = vmatprep.subr.mxu0 0.0
        %v5086 = vand.u32 %v4763, 4294901760
        %5087 = vmatpush1.msra.mxu0 %v5086
        %5088 = vmatprep.subr.mxu0 0.0
        %v5089 = vand.u32 %v4762, 4294901760
        %5090 = vmatpush1.msra.mxu0 %v5089
        %5091 = vmatprep.subr.mxu0 0.0
        %v5092 = vand.u32 %v4761, 4294901760
        %5093 = vmatpush1.msra.mxu0 %v5092
        %5094 = vmatprep.subr.mxu0 0.0
        %v5095 = vand.u32 %v4760, 4294901760
        %5096 = vmatpush1.msra.mxu0 %v5095
        %5097 = vmatprep.subr.mxu0 0.0
        %v5098 = vand.u32 %v4759, 4294901760
        %5099 = vmatpush1.msra.mxu0 %v5098
        %5100 = vmatprep.subr.mxu0 0.0
        %5101 = vmatpush2.msra.mxu0 0.0
        %5102 = vmatprep.subr.mxu0 0.0
        %5103 = vmatpush2.msra.mxu0 0.0
        %5104 = vmatprep.subr.mxu0 0.0
        %5105 = vmatpush2.msra.mxu0 0.0
        %5106 = vmatprep.subr.mxu0 0.0
        %5107 = vmatpush2.msra.mxu0 0.0
        %5108 = vmatprep.subr.mxu0 0.0
        %5109 = vmatpush2.msra.mxu0 0.0
        %5110 = vmatprep.subr.mxu0 0.0
        %5111 = vmatpush2.msra.mxu0 0.0
        %5112 = vmatprep.subr.mxu0 0.0
        %5113 = vmatpush2.msra.mxu0 0.0
        %5114 = vmatprep.subr.mxu0 0.0
        %5115 = vmatpush2.msra.mxu0 0.0
        %5116 = vmatprep.subr.mxu0 0.0
        %5117 = vmatpush2.msra.mxu0 0.0
        %5118 = vmatprep.subr.mxu0 0.0
        %5119 = vmatpush2.msra.mxu0 0.0
        %5120 = vmatprep.subr.mxu0 0.0
        %5121 = vmatpush2.msra.mxu0 0.0
        %5122 = vmatprep.subr.mxu0 0.0
        %5123 = vmatpush2.msra.mxu0 0.0
        %5124 = vmatprep.subr.mxu0 0.0
        %5125 = vmatpush2.msra.mxu0 0.0
        %5126 = vmatprep.subr.mxu0 0.0
        %5127 = vmatpush2.msra.mxu0 0.0
        %5128 = vmatprep.subr.mxu0 0.0
        %5129 = vmatpush2.msra.mxu0 0.0
        %5130 = vmatprep.subr.mxu0 0.0
        %5131 = vmatpush2.msra.mxu0 0.0
        %5132 = vmatprep.mubr.f32.mxu0 0.0
        %v5133 = vand.u32 %v4776, 4294901760
        %v5134 = vsub.f32 %v4776, %v5133
        %v5135 = vand.u32 %v5134, 4294901760
        %5136 = vmatmul.mubr.f32.gmra.mxu0 %v5135
        %v5137 = vpop.f32.mrf.mxu0
        %v5138 = vadd.f32 %v5057, %v5137
        %v5139 = vpop.f32.mrf.mxu0
        %5140 = vdwg.mxu0
        %5141 = vmatprep.subr.mxu0 0.0
        %5142 = vmatpush1.msra.mxu0 0.0
        %5143 = vmatprep.subr.mxu0 0.0
        %5144 = vmatpush1.msra.mxu0 0.0
        %5145 = vmatprep.subr.mxu0 0.0
        %5146 = vmatpush1.msra.mxu0 0.0
        %5147 = vmatprep.subr.mxu0 0.0
        %5148 = vmatpush1.msra.mxu0 0.0
        %5149 = vmatprep.subr.mxu0 0.0
        %5150 = vmatpush1.msra.mxu0 0.0
        %5151 = vmatprep.subr.mxu0 0.0
        %5152 = vmatpush1.msra.mxu0 0.0
        %5153 = vmatprep.subr.mxu0 0.0
        %5154 = vmatpush1.msra.mxu0 0.0
        %5155 = vmatprep.subr.mxu0 0.0
        %5156 = vmatpush1.msra.mxu0 0.0
        %5157 = vmatprep.subr.mxu0 0.0
        %v5158 = vand.u32 %v4766, 4294901760
        %v5159 = vsub.f32 %v4766, %v5158
        %v5160 = vand.u32 %v5159, 4294901760
        %5161 = vmatpush1.msra.mxu0 %v5160
        %5162 = vmatprep.subr.mxu0 0.0
        %v5163 = vand.u32 %v4765, 4294901760
        %v5164 = vsub.f32 %v4765, %v5163
        %v5165 = vand.u32 %v5164, 4294901760
        %5166 = vmatpush1.msra.mxu0 %v5165
        %5167 = vmatprep.subr.mxu0 0.0
        %v5168 = vand.u32 %v4764, 4294901760
        %v5169 = vsub.f32 %v4764, %v5168
        %v5170 = vand.u32 %v5169, 4294901760
        %5171 = vmatpush1.msra.mxu0 %v5170
        %5172 = vmatprep.subr.mxu0 0.0
        %v5173 = vand.u32 %v4763, 4294901760
        %v5174 = vsub.f32 %v4763, %v5173
        %v5175 = vand.u32 %v5174, 4294901760
        %5176 = vmatpush1.msra.mxu0 %v5175
        %5177 = vmatprep.subr.mxu0 0.0
        %v5178 = vand.u32 %v4762, 4294901760
        %v5179 = vsub.f32 %v4762, %v5178
        %v5180 = vand.u32 %v5179, 4294901760
        %5181 = vmatpush1.msra.mxu0 %v5180
        %5182 = vmatprep.subr.mxu0 0.0
        %v5183 = vand.u32 %v4761, 4294901760
        %v5184 = vsub.f32 %v4761, %v5183
        %v5185 = vand.u32 %v5184, 4294901760
        %5186 = vmatpush1.msra.mxu0 %v5185
        %5187 = vmatprep.subr.mxu0 0.0
        %v5188 = vand.u32 %v4760, 4294901760
        %v5189 = vsub.f32 %v4760, %v5188
        %v5190 = vand.u32 %v5189, 4294901760
        %5191 = vmatpush1.msra.mxu0 %v5190
        %5192 = vmatprep.subr.mxu0 0.0
        %v5193 = vand.u32 %v4759, 4294901760
        %v5194 = vsub.f32 %v4759, %v5193
        %v5195 = vand.u32 %v5194, 4294901760
        %5196 = vmatpush1.msra.mxu0 %v5195
        %5197 = vmatprep.subr.mxu0 0.0
        %5198 = vmatpush2.msra.mxu0 0.0
        %5199 = vmatprep.subr.mxu0 0.0
        %5200 = vmatpush2.msra.mxu0 0.0
        %5201 = vmatprep.subr.mxu0 0.0
        %5202 = vmatpush2.msra.mxu0 0.0
        %5203 = vmatprep.subr.mxu0 0.0
        %5204 = vmatpush2.msra.mxu0 0.0
        %5205 = vmatprep.subr.mxu0 0.0
        %5206 = vmatpush2.msra.mxu0 0.0
        %5207 = vmatprep.subr.mxu0 0.0
        %5208 = vmatpush2.msra.mxu0 0.0
        %5209 = vmatprep.subr.mxu0 0.0
        %5210 = vmatpush2.msra.mxu0 0.0
        %5211 = vmatprep.subr.mxu0 0.0
        %5212 = vmatpush2.msra.mxu0 0.0
        %5213 = vmatprep.subr.mxu0 0.0
        %5214 = vmatpush2.msra.mxu0 0.0
        %5215 = vmatprep.subr.mxu0 0.0
        %5216 = vmatpush2.msra.mxu0 0.0
        %5217 = vmatprep.subr.mxu0 0.0
        %5218 = vmatpush2.msra.mxu0 0.0
        %5219 = vmatprep.subr.mxu0 0.0
        %5220 = vmatpush2.msra.mxu0 0.0
        %5221 = vmatprep.subr.mxu0 0.0
        %5222 = vmatpush2.msra.mxu0 0.0
        %5223 = vmatprep.subr.mxu0 0.0
        %5224 = vmatpush2.msra.mxu0 0.0
        %5225 = vmatprep.subr.mxu0 0.0
        %5226 = vmatpush2.msra.mxu0 0.0
        %5227 = vmatprep.subr.mxu0 0.0
        %5228 = vmatpush2.msra.mxu0 0.0
        %5229 = vmatprep.mubr.f32.mxu0 0.0
        %v5230 = vand.u32 %v4776, 4294901760
        %5231 = vmatmul.mubr.f32.gmra.mxu0 %v5230
        %v5232 = vpop.f32.mrf.mxu0
        %v5233 = vadd.f32 %v5138, %v5232
        %v5234 = vpop.f32.mrf.mxu0
        %5235 = vdwg.mxu0
        %5236 = vmatprep.subr.mxu0 0.0
        %5237 = vmatpush1.msra.mxu0 0.0
        %5238 = vmatprep.subr.mxu0 0.0
        %5239 = vmatpush1.msra.mxu0 0.0
        %5240 = vmatprep.subr.mxu0 0.0
        %5241 = vmatpush1.msra.mxu0 0.0
        %5242 = vmatprep.subr.mxu0 0.0
        %5243 = vmatpush1.msra.mxu0 0.0
        %5244 = vmatprep.subr.mxu0 0.0
        %5245 = vmatpush1.msra.mxu0 0.0
        %5246 = vmatprep.subr.mxu0 0.0
        %5247 = vmatpush1.msra.mxu0 0.0
        %5248 = vmatprep.subr.mxu0 0.0
        %5249 = vmatpush1.msra.mxu0 0.0
        %5250 = vmatprep.subr.mxu0 0.0
        %5251 = vmatpush1.msra.mxu0 0.0
        %5252 = vmatprep.subr.mxu0 0.0
        %v5253 = vand.u32 %v4766, 4294901760
        %5254 = vmatpush1.msra.mxu0 %v5253
        %5255 = vmatprep.subr.mxu0 0.0
        %v5256 = vand.u32 %v4765, 4294901760
        %5257 = vmatpush1.msra.mxu0 %v5256
        %5258 = vmatprep.subr.mxu0 0.0
        %v5259 = vand.u32 %v4764, 4294901760
        %5260 = vmatpush1.msra.mxu0 %v5259
        %5261 = vmatprep.subr.mxu0 0.0
        %v5262 = vand.u32 %v4763, 4294901760
        %5263 = vmatpush1.msra.mxu0 %v5262
        %5264 = vmatprep.subr.mxu0 0.0
        %v5265 = vand.u32 %v4762, 4294901760
        %5266 = vmatpush1.msra.mxu0 %v5265
        %5267 = vmatprep.subr.mxu0 0.0
        %v5268 = vand.u32 %v4761, 4294901760
        %5269 = vmatpush1.msra.mxu0 %v5268
        %5270 = vmatprep.subr.mxu0 0.0
        %v5271 = vand.u32 %v4760, 4294901760
        %5272 = vmatpush1.msra.mxu0 %v5271
        %5273 = vmatprep.subr.mxu0 0.0
        %v5274 = vand.u32 %v4759, 4294901760
        %5275 = vmatpush1.msra.mxu0 %v5274
        %5276 = vmatprep.subr.mxu0 0.0
        %5277 = vmatpush2.msra.mxu0 0.0
        %5278 = vmatprep.subr.mxu0 0.0
        %5279 = vmatpush2.msra.mxu0 0.0
        %5280 = vmatprep.subr.mxu0 0.0
        %5281 = vmatpush2.msra.mxu0 0.0
        %5282 = vmatprep.subr.mxu0 0.0
        %5283 = vmatpush2.msra.mxu0 0.0
        %5284 = vmatprep.subr.mxu0 0.0
        %5285 = vmatpush2.msra.mxu0 0.0
        %5286 = vmatprep.subr.mxu0 0.0
        %5287 = vmatpush2.msra.mxu0 0.0
        %5288 = vmatprep.subr.mxu0 0.0
        %5289 = vmatpush2.msra.mxu0 0.0
        %5290 = vmatprep.subr.mxu0 0.0
        %5291 = vmatpush2.msra.mxu0 0.0
        %5292 = vmatprep.subr.mxu0 0.0
        %5293 = vmatpush2.msra.mxu0 0.0
        %5294 = vmatprep.subr.mxu0 0.0
        %5295 = vmatpush2.msra.mxu0 0.0
        %5296 = vmatprep.subr.mxu0 0.0
        %5297 = vmatpush2.msra.mxu0 0.0
        %5298 = vmatprep.subr.mxu0 0.0
        %5299 = vmatpush2.msra.mxu0 0.0
        %5300 = vmatprep.subr.mxu0 0.0
        %5301 = vmatpush2.msra.mxu0 0.0
        %5302 = vmatprep.subr.mxu0 0.0
        %5303 = vmatpush2.msra.mxu0 0.0
        %5304 = vmatprep.subr.mxu0 0.0
        %5305 = vmatpush2.msra.mxu0 0.0
        %5306 = vmatprep.subr.mxu0 0.0
        %5307 = vmatpush2.msra.mxu0 0.0
        %5308 = vmatprep.mubr.f32.mxu0 0.0
        %v5309 = vand.u32 %v4776, 4294901760
        %5310 = vmatmul.mubr.f32.gmra.mxu0 %v5309
        %v5311 = vpop.f32.mrf.mxu0
        %v5312 = vadd.f32 %v5233, %v5311
        %v5313 = vpop.f32.mrf.mxu0
        %5314 = vdwg.mxu0
        %v5315 = vadd.f32 %v5312, %v764
        %5316 = vst.msk [vmem:[%s723] sm:$0xff] %vm1253, %v5315
        %s5317 = sand.u32 %s506, 1
        %s5318 = scalar_lea.sflag [#allocation5], %s5317
        %s5319 = sand.u32 %s506, 1
        %s5320 = smul.addr %s5319, 8
        %s5321 = scalar_lea.vmem [#allocation4], %s5320
        %p5322 = scmp.lt.s32.totalorder %s44, 1
        %s5323 = scalar_select %p5322, %s44, 1
        %p5324 = scmp.lt.s32.totalorder %s45, 0
        %s5325 = scalar_select %p5324, %s45, 0
        %s5326 = sadd.s32 %s5325, %s5323
        %s5327 = smul.addr %s5326, 8
        %s5328 = scalar_lea.vmem %s21, %s5327
        // Predicated region
        $region101: #{egnn_forward.1} parent=99 // pred_check
          %p5329 = pneg %p516
        $region102: #{egnn_forward.1} parent=99 // pred_check_branch
          %5331 = sbr.rel (%p5329) target = $region104
        $region103: #{egnn_forward.1} parent=99 // pred_region
          %s5333 = ssub.s32 128, 128
          %5334 = vsyncadd %s5318, %s5333
          %s5335 = sadd.s32 %s45, %s44
          %s5336 = smul.addr %s5335, 128
          %s5337 = scalar_lea.hbm %s20, %s5336
          %s5339 = sshll.u32 %s5321, 4
          %s5340 = int_to_ptr.vmem [resolvable:$true] %s5339
          %5342 = dma.vmem_to_hbm [thread:$0]  %s5340, 128, %s5337, %s5318
        $region104: #{egnn_forward.1} parent=99 // pred_fallthru
          _
        // Predicated region
        $region105: #{egnn_forward.1} parent=99 // pred_check
          %p5343 = pneg %p544
        $region106: #{egnn_forward.1} parent=99 // pred_check_branch
          %5345 = sbr.rel (%p5343) target = $region108
        $region107: #{egnn_forward.1} parent=99 // pred_region
          _
        $region108: #{egnn_forward.1} parent=99 // pred_fallthru
          _
      $region100: #{egnn_forward.1} parent=5 // pred_fallthru
        _
      %p5346 = scmp.le.s32.totalorder 2, %s35
      // Predicated region
      $region109: #{egnn_forward.1} parent=5 // pred_check
        %p5347 = pneg %p5346
      $region110: #{egnn_forward.1} parent=5 // pred_check_branch
        %5349 = sbr.rel (%p5347) target = $region112
      $region111: #{egnn_forward.1} parent=5 // pred_region
        %s5350 = ssub.s32 %s35, 2
        // Predicated region
        $region113: #{egnn_forward.1} parent=111 // pred_check
          %p5351 = pneg %p522
        $region114: #{egnn_forward.1} parent=111 // pred_check_branch
          %5353 = sbr.rel (%p5351) target = $region116
        $region115: #{egnn_forward.1} parent=111 // pred_region
          %s5354 = sand.u32 %s507, 1
          %s5355 = scalar_lea.sflag [#allocation5], %s5354
          %s5356 = sand.u32 %s507, 1
          %s5357 = smul.addr %s5356, 8
          %s5358 = scalar_lea.vmem [#allocation4], %s5357
          %5359 = dma.done %s5355, 128
        $region116: #{egnn_forward.1} parent=111 // pred_fallthru
          _
        // Predicated region
        $region117: #{egnn_forward.1} parent=111 // pred_check
          %p5360 = pneg %p550
        $region118: #{egnn_forward.1} parent=111 // pred_check_branch
          %5362 = sbr.rel (%p5360) target = $region120
        $region119: #{egnn_forward.1} parent=111 // pred_region
          %p5363 = scmp.lt.s32.totalorder %s46, 1
          %s5364 = scalar_select %p5363, %s46, 1
          %p5365 = scmp.lt.s32.totalorder %s47, 0
          %s5366 = scalar_select %p5365, %s47, 0
          %s5367 = sadd.s32 %s5366, %s5364
          %s5368 = smul.addr %s5367, 8
          %s5369 = scalar_lea.vmem %s21, %s5368
        $region120: #{egnn_forward.1} parent=111 // pred_fallthru
          _
      $region112: #{egnn_forward.1} parent=5 // pred_fallthru
        _
    $region6: #{egnn_forward.1} parent=1 // loop_footer
      %s39 = sadd.s32 1, %s35
    $region7: #{egnn_forward.1} parent=1 // loop_footer_branch
      %34 = sbr.rel target = $region3
    $region8: #{egnn_forward.1} parent=1 // loop_exit
      _
    %5370 = vsyncpa [#allocation5], 1
    %s5371 = scalar_lea.sflag [#allocation5], 1
    %5372 = vsyncpa %s5371, 1

</llo_original>
